<compile_context>
chip_gen: v5e
topology: v5e:2x2
jax: 0.10.0
libtpu: 0.0.40
codegen_flags: <defaults>
</compile_context>

<pallas_src>
import jax
import jax.numpy as jnp
import numpy as np
from jax.experimental import pallas as pl
from jax.experimental.pallas import tpu as pltpu


# --------------------------------------------------------------------------- #
# Kernel
# --------------------------------------------------------------------------- #
def _cbam_head_kernel(x_ref,          # (Bt, Cin, HW)   f32
                      cam_w1t_ref,    # (Cin, Cr)       f32   (W1 transposed)
                      cam_b1_ref,     # (1, Cr)         f32
                      cam_w2t_ref,    # (Cr, Cin)       f32   (W2 transposed)
                      cam_b2_ref,     # (1, Cin)        f32
                      sam_max_ref,    # (HW, HW)        bf16  (7x7 conv operator, max channel)
                      sam_avg_ref,    # (HW, HW)        bf16  (7x7 conv operator, avg channel)
                      c1w_ref,        # (Cout, Cin)     f32
                      c2w_ref,        # (Cout, Cout)    f32
                      c3w_ref,        # (Cout, Cout)    f32
                      head_b_ref,     # (Cout, 3)       f32   [c1b | c2b | c3b]
                      out_ref):       # (Bt, Cout, HW)  f32
    Bt, Cin, HW = x_ref.shape
    inv_hw = 1.0 / float(HW)
    inv_cin = 1.0 / float(Cin)

    x = x_ref[...]                                           # (Bt, Cin, HW)

    # ---------------- CAM: channel attention ----------------
    mx = jnp.max(x, axis=2)                                  # (Bt, Cin)
    av = jnp.sum(x, axis=2) * inv_hw                         # (Bt, Cin)  mean via const mul
    pooled = jnp.concatenate([mx, av], axis=0)               # (2*Bt, Cin) -> one shared-MLP pass
    h = jnp.dot(pooled, cam_w1t_ref[...],
                preferred_element_type=jnp.float32) + cam_b1_ref[...]
    h = jnp.maximum(h, 0.0)                                  # (2*Bt, Cr)
    o = jnp.dot(h, cam_w2t_ref[...],
                preferred_element_type=jnp.float32) + cam_b2_ref[...]   # (2*Bt, Cin)
    att_c = jax.nn.sigmoid(o[:Bt] + o[Bt:])                  # (Bt, Cin)
    cam = x * att_c[:, :, None]                              # (Bt, Cin, HW)

    # ---------------- SAM: spatial attention (7x7 conv, pad 3) ----------------
    mxc = jnp.max(cam, axis=1)                               # (Bt, HW)
    avc = jnp.sum(cam, axis=1) * inv_cin                     # (Bt, HW)
    # bf16 operands on the MXU, f32 accumulation.  No lane-axis concatenate.
    conv = (jnp.dot(mxc.astype(jnp.bfloat16), sam_max_ref[...],
                    preferred_element_type=jnp.float32) +
            jnp.dot(avc.astype(jnp.bfloat16), sam_avg_ref[...],
                    preferred_element_type=jnp.float32))     # (Bt, HW)
    att_s = jax.nn.sigmoid(conv)                             # (Bt, HW)

    # residual fused directly into the head operand
    cbam = cam * att_s[:, None, :] + x                       # (Bt, Cin, HW)

    # ---------------- Head: three 1x1 convs (channels-major matmuls) ----------
    c1w = c1w_ref[...]
    c2w = c2w_ref[...]
    c3w = c3w_ref[...]
    b1 = head_b_ref[:, 0:1]
    b2 = head_b_ref[:, 1:2]
    b3 = head_b_ref[:, 2:3]
    for i in range(Bt):                                      # short static unroll over the tile
        z = cbam[i]                                          # (Cin, HW)
        y = jnp.maximum(jnp.dot(c1w, z, preferred_element_type=jnp.float32) + b1, 0.0)
        y = jnp.maximum(jnp.dot(c2w, y, preferred_element_type=jnp.float32) + b2, 0.0)
        y = jnp.maximum(jnp.dot(c3w, y, preferred_element_type=jnp.float32) + b3, 0.0)
        out_ref[i] = y                                       # (Cout, HW) lane-dense store


# --------------------------------------------------------------------------- #
# One-time parameter preparation (hoisted out of the forward pass)
# --------------------------------------------------------------------------- #
def _build_sam_operators(sam_w, H, W):
    """Fold the 7x7 depth-2 spatial conv (padding 3, cross-correlation, no bias)
    into two dense (H*W, H*W) matrices (one per pooled channel: [max, avg]) so
    the kernel can apply it as bf16 MXU matmuls.  Built once on the host."""
    sam_w = np.asarray(sam_w, np.float32)                    # (2, K, K)
    K = sam_w.shape[-1]
    pad = (K - 1) // 2
    ii = np.arange(H)[:, None, None, None]                   # input  row
    jj = np.arange(W)[None, :, None, None]                   # input  col
    oi = np.arange(H)[None, None, :, None]                   # output row
    oj = np.arange(W)[None, None, None, :]                   # output col
    kh = ii - oi + pad
    kw = jj - oj + pad
    valid = (kh >= 0) & (kh < K) & (kw >= 0) & (kw < K)      # (H, W, H, W)
    kh = np.clip(kh, 0, K - 1)
    kw = np.clip(kw, 0, K - 1)
    taps = sam_w[:, kh, kw] * valid[None].astype(np.float32)  # (2, H, W, H, W)
    ops = taps.reshape(2, H * W, H * W)
    return (jnp.asarray(ops[0], dtype=jnp.bfloat16),
            jnp.asarray(ops[1], dtype=jnp.bfloat16))


def prepare_cbam_head_params(params, H, W):
    """Call once per weight set; the result is reused by every forward call."""
    Cr, Cin = params["cam_w1"].shape
    f32 = lambda a: jnp.asarray(a, jnp.float32)
    op_max, op_avg = _build_sam_operators(np.asarray(params["sam_w"]), H, W)
    return dict(
        cam_w1t=f32(params["cam_w1"]).T,                     # (Cin, Cr)
        cam_b1=f32(params["cam_b1"]).reshape(1, Cr),
        cam_w2t=f32(params["cam_w2"]).T,                     # (Cr, Cin)
        cam_b2=f32(params["cam_b2"]).reshape(1, Cin),
        sam_op_max=op_max,                                   # (HW, HW) bf16
        sam_op_avg=op_avg,                                   # (HW, HW) bf16
        c1w=f32(params["c1w"]),
        c2w=f32(params["c2w"]),
        c3w=f32(params["c3w"]),
        head_b=jnp.stack([f32(params["c1b"]), f32(params["c2b"]),
                          f32(params["c3b"])], axis=1),      # (Cout, 3)
    )


def _pick_batch_tile(B, target=8):
    """Largest divisor of B that is <= target, while keeping >= 2 grid steps
    (when B >= 2) so both v7x TensorCores get work."""
    divisors = [d for d in range(1, B + 1) if B % d == 0 and d <= target]
    if B >= 2:
        two_step = [d for d in divisors if B // d >= 2]
        if two_step:
            return max(two_step)
    return max(divisors)


# --------------------------------------------------------------------------- #
# Forward wrapper
# --------------------------------------------------------------------------- #
def concat_head_with_cbam(x_nchw, prepared, *, batch_tile=8):
    """x_nchw: (B, Cin, H, W) float32 (PyTorch NCHW). `prepared` from
    prepare_cbam_head_params."""
    B, Cin, H, W = x_nchw.shape
    HW = H * W
    Cout = prepared["c1w"].shape[0]
    Cr = prepared["cam_w1t"].shape[1]
    Bt = _pick_batch_tile(B, batch_tile)

    x_flat = jnp.asarray(x_nchw, jnp.float32).reshape(B, Cin, HW)  # free, no transpose

    # Raise the scoped VMEM default only when the dense SAM operators need it.
    sam_bytes = 2 * HW * HW * 2                      # two bf16 (HW, HW) operators
    vmem_limit = None
    if sam_bytes > (8 << 20):
        vmem_limit = min(100 << 20, 4 * sam_bytes + (16 << 20))

    def run(single_buffer_consts):
        def const_spec(shape):
            nd = len(shape)
            idx = lambda b, _nd=nd: (0,) * _nd
            if single_buffer_consts:
                # constant index_map -> one DMA ever; single buffer halves VMEM
                return pl.BlockSpec(shape, idx, pipeline_mode=pl.Buffered(1))
            return pl.BlockSpec(shape, idx)

        out = pl.pallas_call(
            _cbam_head_kernel,
            out_shape=jax.ShapeDtypeStruct((B, Cout, HW), jnp.float32),
            grid=(B // Bt,),
            in_specs=[
                pl.BlockSpec((Bt, Cin, HW), lambda b: (b, 0, 0)),
                const_spec((Cin, Cr)),
                const_spec((1, Cr)),
                const_spec((Cr, Cin)),
                const_spec((1, Cin)),
                const_spec((HW, HW)),
                const_spec((HW, HW)),
                const_spec((Cout, Cin)),
                const_spec((Cout, Cout)),
                const_spec((Cout, Cout)),
                const_spec((Cout, 3)),
            ],
            out_specs=pl.BlockSpec((Bt, Cout, HW), lambda b: (b, 0, 0)),
            compiler_params=pltpu.CompilerParams(
                dimension_semantics=("parallel",),
                vmem_limit_bytes=vmem_limit),
        )(x_flat,
          prepared["cam_w1t"], prepared["cam_b1"],
          prepared["cam_w2t"], prepared["cam_b2"],
          prepared["sam_op_max"], prepared["sam_op_avg"],
          prepared["c1w"], prepared["c2w"], prepared["c3w"],
          prepared["head_b"])
        return jax.block_until_ready(out)

    try:
        out = run(True)
    except Exception:
        # Fallback: pipeline_mode=pl.Buffered(1) not supported on this JAX ->
        # use the default (double-buffered) constant specs.
        out = run(False)

    return out.reshape(B, Cout, H, W)                # metadata-only reshape back to NCHW


# --------------------------------------------------------------------------- #
# Pure-JAX reference (mirrors the PyTorch forward, NCHW / PyTorch weight layout)
# --------------------------------------------------------------------------- #
def reference(x_nchw, params):
    x = x_nchw.astype(jnp.float32)
    w1, b1 = params["cam_w1"], params["cam_b1"]
    w2, b2 = params["cam_w2"], params["cam_b2"]

    def mlp(v):                                      # v: (B, Cin)
        return jnp.maximum(v @ w1.T + b1, 0.0) @ w2.T + b2

    mx = jnp.max(x, axis=(2, 3))
    av = jnp.mean(x, axis=(2, 3))
    att_c = jax.nn.sigmoid(mlp(mx) + mlp(av))[:, :, None, None]
    cam = att_c * x

    mxc = jnp.max(cam, axis=1, keepdims=True)
    avc = jnp.mean(cam, axis=1, keepdims=True)
    cat = jnp.concatenate([mxc, avc], axis=1)        # (B, 2, H, W)
    conv = jax.lax.conv_general_dilated(
        cat, params["sam_w"][None], window_strides=(1, 1),
        padding=((3, 3), (3, 3)),
        dimension_numbers=("NCHW", "OIHW", "NCHW"))
    cbam = jax.nn.sigmoid(conv) * cam + x

    def conv1x1(z, w, b):
        return jnp.einsum("bchw,oc->bohw", z, w) + b[None, :, None, None]

    y = jnp.maximum(conv1x1(cbam, params["c1w"], params["c1b"]), 0.0)
    y = jnp.maximum(conv1x1(y, params["c2w"], params["c2b"]), 0.0)
    y = jnp.maximum(conv1x1(y, params["c3w"], params["c3b"]), 0.0)
    return y


# --------------------------------------------------------------------------- #
# Test
# --------------------------------------------------------------------------- #
if __name__ == "__main__":
    B, Cin, H, W = 4, 4, 16, 16      # B=4 -> batch tile Bt=2, grid of 2 steps
    Cout, r = 8, 2
    Cr = Cin // r

    key = jax.random.PRNGKey(0)
    ks = jax.random.split(key, 12)
    params = {
        "cam_w1": jax.random.normal(ks[0], (Cr, Cin), jnp.float32) * 0.5,
        "cam_b1": jax.random.normal(ks[1], (Cr,), jnp.float32) * 0.1,
        "cam_w2": jax.random.normal(ks[2], (Cin, Cr), jnp.float32) * 0.5,
        "cam_b2": jax.random.normal(ks[3], (Cin,), jnp.float32) * 0.1,
        "sam_w": jax.random.normal(ks[4], (2, 7, 7), jnp.float32) * 0.2,   # [max, avg]
        "c1w": jax.random.normal(ks[5], (Cout, Cin), jnp.float32) * 0.5,
        "c1b": jax.random.normal(ks[6], (Cout,), jnp.float32) * 0.1,
        "c2w": jax.random.normal(ks[7], (Cout, Cout), jnp.float32) * 0.3,
        "c2b": jax.random.normal(ks[8], (Cout,), jnp.float32) * 0.1,
        "c3w": jax.random.normal(ks[9], (Cout, Cout), jnp.float32) * 0.3,
        "c3b": jax.random.normal(ks[10], (Cout,), jnp.float32) * 0.1,
    }
    x = jax.random.normal(ks[11], (B, Cin, H, W), jnp.float32)

    prepared = prepare_cbam_head_params(params, H, W)   # one-time, hoisted out of forward
    out = jax.block_until_ready(concat_head_with_cbam(x, prepared))
    ref = jax.block_until_ready(reference(x, params))

    assert out.shape == (B, Cout, H, W)
    np.testing.assert_allclose(np.asarray(out), np.asarray(ref), rtol=1e-2, atol=1e-2)
    print("KERNEL_OK")
</pallas_src>

<mosaic_0001>
module attributes {stable_mosaic.version = 11 : i64} {
  func.func @_cbam_head_kernel(%arg0: i32, %arg1: memref<2x4x256xf32, #tpu.memory_space<vmem>>, %arg2: memref<4x2xf32, #tpu.memory_space<vmem>>, %arg3: memref<1x2xf32, #tpu.memory_space<vmem>>, %arg4: memref<2x4xf32, #tpu.memory_space<vmem>>, %arg5: memref<1x4xf32, #tpu.memory_space<vmem>>, %arg6: memref<256x256xbf16, #tpu.memory_space<vmem>>, %arg7: memref<256x256xbf16, #tpu.memory_space<vmem>>, %arg8: memref<8x4xf32, #tpu.memory_space<vmem>>, %arg9: memref<8x8xf32, #tpu.memory_space<vmem>>, %arg10: memref<8x8xf32, #tpu.memory_space<vmem>>, %arg11: memref<8x3xf32, #tpu.memory_space<vmem>>, %arg12: memref<2x8x256xf32, #tpu.memory_space<vmem>>) attributes {dimension_semantics = [#tpu.dimension_semantics<parallel>], iteration_bounds = array<i64: 2>, scalar_prefetch = 0 : i64, scratch_operands = 0 : i64, tpu.core_type = #tpu.core_type<tc>, window_params = [{transform_indices = @transform_0, window_bounds = array<i64: 2, 4, 256>}, {pipeline_mode = #tpu.pipeline_mode<synchronous>, transform_indices = @transform_1, window_bounds = array<i64: 4, 2>}, {pipeline_mode = #tpu.pipeline_mode<synchronous>, transform_indices = @transform_2, window_bounds = array<i64: 1, 2>}, {pipeline_mode = #tpu.pipeline_mode<synchronous>, transform_indices = @transform_3, window_bounds = array<i64: 2, 4>}, {pipeline_mode = #tpu.pipeline_mode<synchronous>, transform_indices = @transform_4, window_bounds = array<i64: 1, 4>}, {pipeline_mode = #tpu.pipeline_mode<synchronous>, transform_indices = @transform_5, window_bounds = array<i64: 256, 256>}, {pipeline_mode = #tpu.pipeline_mode<synchronous>, transform_indices = @transform_6, window_bounds = array<i64: 256, 256>}, {pipeline_mode = #tpu.pipeline_mode<synchronous>, transform_indices = @transform_7, window_bounds = array<i64: 8, 4>}, {pipeline_mode = #tpu.pipeline_mode<synchronous>, transform_indices = @transform_8, window_bounds = array<i64: 8, 8>}, {pipeline_mode = #tpu.pipeline_mode<synchronous>, transform_indices = @transform_9, window_bounds = array<i64: 8, 8>}, {pipeline_mode = #tpu.pipeline_mode<synchronous>, transform_indices = @transform_10, window_bounds = array<i64: 8, 3>}, {transform_indices = @transform_11, window_bounds = array<i64: 2, 8, 256>}]} {
    %c0 = arith.constant 0 : index
    %c0_0 = arith.constant 0 : index
    %c0_1 = arith.constant 0 : index
    %0 = vector.load %arg1[%c0, %c0_0, %c0_1] : memref<2x4x256xf32, #tpu.memory_space<vmem>>, vector<2x4x256xf32>
    %cst = arith.constant dense<0xFF800000> : vector<2x4xf32>
    %1 = vector.multi_reduction <maximumf>, %0, %cst [2] : vector<2x4x256xf32> to vector<2x4xf32>
    %cst_2 = arith.constant dense<0.000000e+00> : vector<2x4xf32>
    %2 = vector.multi_reduction <add>, %0, %cst_2 [2] : vector<2x4x256xf32> to vector<2x4xf32>
    %cst_3 = arith.constant 3.906250e-03 : f32
    %3 = vector.broadcast %cst_3 : f32 to vector<2x4xf32>
    %4 = arith.mulf %2, %3 : vector<2x4xf32>
    %5 = tpu.concatenate %1, %4 in 0 : vector<2x4xf32>, vector<2x4xf32> -> vector<4x4xf32>
    %c0_4 = arith.constant 0 : index
    %c0_5 = arith.constant 0 : index
    %6 = vector.load %arg2[%c0_4, %c0_5] : memref<4x2xf32, #tpu.memory_space<vmem>>, vector<4x2xf32>
    %cst_6 = arith.constant dense<0.000000e+00> : vector<4x2xf32>
    %7 = tpu.matmul %5, %6, %cst_6 {dimension_numbers = #tpu.dot_dimension_numbers<[1], [0], [0], [1], [0, 0, 1, 1], [], []>} : vector<4x4xf32>, vector<4x2xf32>, vector<4x2xf32> -> vector<4x2xf32>
    %c0_7 = arith.constant 0 : index
    %c0_8 = arith.constant 0 : index
    %8 = vector.load %arg3[%c0_7, %c0_8] : memref<1x2xf32, #tpu.memory_space<vmem>>, vector<1x2xf32>
    %9 = vector.broadcast %8 : vector<1x2xf32> to vector<4x2xf32>
    %10 = arith.addf %7, %9 : vector<4x2xf32>
    %cst_9 = arith.constant 0.000000e+00 : f32
    %11 = vector.broadcast %cst_9 : f32 to vector<4x2xf32>
    %12 = arith.maximumf %10, %11 : vector<4x2xf32>
    %c0_10 = arith.constant 0 : index
    %c0_11 = arith.constant 0 : index
    %13 = vector.load %arg4[%c0_10, %c0_11] : memref<2x4xf32, #tpu.memory_space<vmem>>, vector<2x4xf32>
    %cst_12 = arith.constant dense<0.000000e+00> : vector<4x4xf32>
    %14 = tpu.matmul %12, %13, %cst_12 {dimension_numbers = #tpu.dot_dimension_numbers<[1], [0], [0], [1], [0, 0, 1, 1], [], []>} : vector<4x2xf32>, vector<2x4xf32>, vector<4x4xf32> -> vector<4x4xf32>
    %c0_13 = arith.constant 0 : index
    %c0_14 = arith.constant 0 : index
    %15 = vector.load %arg5[%c0_13, %c0_14] : memref<1x4xf32, #tpu.memory_space<vmem>>, vector<1x4xf32>
    %16 = vector.broadcast %15 : vector<1x4xf32> to vector<4x4xf32>
    %17 = arith.addf %14, %16 : vector<4x4xf32>
    %18 = vector.extract_strided_slice %17 {offsets = [0, 0], sizes = [2, 4], strides = [1, 1]} : vector<4x4xf32> to vector<2x4xf32>
    %19 = vector.extract_strided_slice %17 {offsets = [2, 0], sizes = [2, 4], strides = [1, 1]} : vector<4x4xf32> to vector<2x4xf32>
    %20 = arith.addf %18, %19 : vector<2x4xf32>
    %21 = arith.negf %20 : vector<2x4xf32>
    %22 = math.exp %21 : vector<2x4xf32>
    %cst_15 = arith.constant 1.000000e+00 : f32
    %23 = vector.broadcast %cst_15 : f32 to vector<2x4xf32>
    %24 = arith.addf %23, %22 : vector<2x4xf32>
    %25 = arith.divf %23, %24 : vector<2x4xf32>
    %26 = vector.shape_cast %25 : vector<2x4xf32> to vector<2x4x1xf32>
    %27 = vector.broadcast %26 : vector<2x4x1xf32> to vector<2x4x256xf32>
    %28 = arith.mulf %0, %27 : vector<2x4x256xf32>
    %cst_16 = arith.constant dense<0xFF800000> : vector<2x256xf32>
    %29 = vector.multi_reduction <maximumf>, %28, %cst_16 [1] : vector<2x4x256xf32> to vector<2x256xf32>
    %cst_17 = arith.constant dense<0.000000e+00> : vector<2x256xf32>
    %30 = vector.multi_reduction <add>, %28, %cst_17 [1] : vector<2x4x256xf32> to vector<2x256xf32>
    %cst_18 = arith.constant 2.500000e-01 : f32
    %31 = vector.broadcast %cst_18 : f32 to vector<2x256xf32>
    %32 = arith.mulf %30, %31 : vector<2x256xf32>
    %33 = arith.truncf %29 : vector<2x256xf32> to vector<2x256xbf16>
    %c0_19 = arith.constant 0 : index
    %c0_20 = arith.constant 0 : index
    %34 = vector.load %arg6[%c0_19, %c0_20] : memref<256x256xbf16, #tpu.memory_space<vmem>>, vector<256x256xbf16>
    %cst_21 = arith.constant dense<0.000000e+00> : vector<2x256xf32>
    %35 = tpu.matmul %33, %34, %cst_21 {dimension_numbers = #tpu.dot_dimension_numbers<[1], [0], [0], [1], [0, 0, 1, 1], [], []>} : vector<2x256xbf16>, vector<256x256xbf16>, vector<2x256xf32> -> vector<2x256xf32>
    %36 = arith.truncf %32 : vector<2x256xf32> to vector<2x256xbf16>
    %c0_22 = arith.constant 0 : index
    %c0_23 = arith.constant 0 : index
    %37 = vector.load %arg7[%c0_22, %c0_23] : memref<256x256xbf16, #tpu.memory_space<vmem>>, vector<256x256xbf16>
    %cst_24 = arith.constant dense<0.000000e+00> : vector<2x256xf32>
    %38 = tpu.matmul %36, %37, %cst_24 {dimension_numbers = #tpu.dot_dimension_numbers<[1], [0], [0], [1], [0, 0, 1, 1], [], []>} : vector<2x256xbf16>, vector<256x256xbf16>, vector<2x256xf32> -> vector<2x256xf32>
    %39 = arith.addf %35, %38 : vector<2x256xf32>
    %40 = arith.negf %39 : vector<2x256xf32>
    %41 = math.exp %40 : vector<2x256xf32>
    %cst_25 = arith.constant 1.000000e+00 : f32
    %42 = vector.broadcast %cst_25 : f32 to vector<2x256xf32>
    %43 = arith.addf %42, %41 : vector<2x256xf32>
    %44 = arith.divf %42, %43 : vector<2x256xf32>
    %45 = vector.shape_cast %44 : vector<2x256xf32> to vector<2x1x256xf32>
    %46 = vector.broadcast %45 : vector<2x1x256xf32> to vector<2x4x256xf32>
    %47 = arith.mulf %28, %46 : vector<2x4x256xf32>
    %48 = arith.addf %47, %0 : vector<2x4x256xf32>
    %c0_26 = arith.constant 0 : index
    %c0_27 = arith.constant 0 : index
    %49 = vector.load %arg8[%c0_26, %c0_27] : memref<8x4xf32, #tpu.memory_space<vmem>>, vector<8x4xf32>
    %c0_28 = arith.constant 0 : index
    %c0_29 = arith.constant 0 : index
    %50 = vector.load %arg9[%c0_28, %c0_29] : memref<8x8xf32, #tpu.memory_space<vmem>>, vector<8x8xf32>
    %c0_30 = arith.constant 0 : index
    %c0_31 = arith.constant 0 : index
    %51 = vector.load %arg10[%c0_30, %c0_31] : memref<8x8xf32, #tpu.memory_space<vmem>>, vector<8x8xf32>
    %c0_32 = arith.constant 0 : index
    %c0_33 = arith.constant 0 : index
    %52 = vector.load %arg11[%c0_32, %c0_33] : memref<8x3xf32, #tpu.memory_space<vmem>>, vector<8x1xf32>
    %c0_34 = arith.constant 0 : index
    %c1 = arith.constant 1 : index
    %53 = vector.load %arg11[%c0_34, %c1] : memref<8x3xf32, #tpu.memory_space<vmem>>, vector<8x1xf32>
    %c0_35 = arith.constant 0 : index
    %c2 = arith.constant 2 : index
    %54 = vector.load %arg11[%c0_35, %c2] : memref<8x3xf32, #tpu.memory_space<vmem>>, vector<8x1xf32>
    %55 = vector.extract_strided_slice %48 {offsets = [0, 0, 0], sizes = [1, 4, 256], strides = [1, 1, 1]} : vector<2x4x256xf32> to vector<1x4x256xf32>
    %56 = vector.shape_cast %55 : vector<1x4x256xf32> to vector<4x256xf32>
    %cst_36 = arith.constant dense<0.000000e+00> : vector<8x256xf32>
    %57 = tpu.matmul %49, %56, %cst_36 {dimension_numbers = #tpu.dot_dimension_numbers<[1], [0], [0], [1], [0, 0, 1, 1], [], []>} : vector<8x4xf32>, vector<4x256xf32>, vector<8x256xf32> -> vector<8x256xf32>
    %58 = vector.broadcast %52 : vector<8x1xf32> to vector<8x256xf32>
    %59 = arith.addf %57, %58 : vector<8x256xf32>
    %cst_37 = arith.constant 0.000000e+00 : f32
    %60 = vector.broadcast %cst_37 : f32 to vector<8x256xf32>
    %61 = arith.maximumf %59, %60 : vector<8x256xf32>
    %cst_38 = arith.constant dense<0.000000e+00> : vector<8x256xf32>
    %62 = tpu.matmul %50, %61, %cst_38 {dimension_numbers = #tpu.dot_dimension_numbers<[1], [0], [0], [1], [0, 0, 1, 1], [], []>} : vector<8x8xf32>, vector<8x256xf32>, vector<8x256xf32> -> vector<8x256xf32>
    %63 = vector.broadcast %53 : vector<8x1xf32> to vector<8x256xf32>
    %64 = arith.addf %62, %63 : vector<8x256xf32>
    %cst_39 = arith.constant 0.000000e+00 : f32
    %65 = vector.broadcast %cst_39 : f32 to vector<8x256xf32>
    %66 = arith.maximumf %64, %65 : vector<8x256xf32>
    %cst_40 = arith.constant dense<0.000000e+00> : vector<8x256xf32>
    %67 = tpu.matmul %51, %66, %cst_40 {dimension_numbers = #tpu.dot_dimension_numbers<[1], [0], [0], [1], [0, 0, 1, 1], [], []>} : vector<8x8xf32>, vector<8x256xf32>, vector<8x256xf32> -> vector<8x256xf32>
    %68 = vector.broadcast %54 : vector<8x1xf32> to vector<8x256xf32>
    %69 = arith.addf %67, %68 : vector<8x256xf32>
    %cst_41 = arith.constant 0.000000e+00 : f32
    %70 = vector.broadcast %cst_41 : f32 to vector<8x256xf32>
    %71 = arith.maximumf %69, %70 : vector<8x256xf32>
    %c0_42 = arith.constant 0 : index
    %c0_43 = arith.constant 0 : index
    %c0_44 = arith.constant 0 : index
    %72 = vector.load %arg12[%c0_42, %c0_43, %c0_44] : memref<2x8x256xf32, #tpu.memory_space<vmem>>, vector<1x8x256xf32>
    %73 = vector.shape_cast %72 : vector<1x8x256xf32> to vector<8x256xf32>
    %74 = vector.shape_cast %71 : vector<8x256xf32> to vector<1x8x256xf32>
    tpu.vector_store %arg12[%c0_42, %c0_43, %c0_44], %74 {strides = array<i32>} : memref<2x8x256xf32, #tpu.memory_space<vmem>>, vector<1x8x256xf32>,
    %75 = vector.extract_strided_slice %48 {offsets = [1, 0, 0], sizes = [1, 4, 256], strides = [1, 1, 1]} : vector<2x4x256xf32> to vector<1x4x256xf32>
    %76 = vector.shape_cast %75 : vector<1x4x256xf32> to vector<4x256xf32>
    %cst_45 = arith.constant dense<0.000000e+00> : vector<8x256xf32>
    %77 = tpu.matmul %49, %76, %cst_45 {dimension_numbers = #tpu.dot_dimension_numbers<[1], [0], [0], [1], [0, 0, 1, 1], [], []>} : vector<8x4xf32>, vector<4x256xf32>, vector<8x256xf32> -> vector<8x256xf32>
    %78 = vector.broadcast %52 : vector<8x1xf32> to vector<8x256xf32>
    %79 = arith.addf %77, %78 : vector<8x256xf32>
    %cst_46 = arith.constant 0.000000e+00 : f32
    %80 = vector.broadcast %cst_46 : f32 to vector<8x256xf32>
    %81 = arith.maximumf %79, %80 : vector<8x256xf32>
    %cst_47 = arith.constant dense<0.000000e+00> : vector<8x256xf32>
    %82 = tpu.matmul %50, %81, %cst_47 {dimension_numbers = #tpu.dot_dimension_numbers<[1], [0], [0], [1], [0, 0, 1, 1], [], []>} : vector<8x8xf32>, vector<8x256xf32>, vector<8x256xf32> -> vector<8x256xf32>
    %83 = vector.broadcast %53 : vector<8x1xf32> to vector<8x256xf32>
    %84 = arith.addf %82, %83 : vector<8x256xf32>
    %cst_48 = arith.constant 0.000000e+00 : f32
    %85 = vector.broadcast %cst_48 : f32 to vector<8x256xf32>
    %86 = arith.maximumf %84, %85 : vector<8x256xf32>
    %cst_49 = arith.constant dense<0.000000e+00> : vector<8x256xf32>
    %87 = tpu.matmul %51, %86, %cst_49 {dimension_numbers = #tpu.dot_dimension_numbers<[1], [0], [0], [1], [0, 0, 1, 1], [], []>} : vector<8x8xf32>, vector<8x256xf32>, vector<8x256xf32> -> vector<8x256xf32>
    %88 = vector.broadcast %54 : vector<8x1xf32> to vector<8x256xf32>
    %89 = arith.addf %87, %88 : vector<8x256xf32>
    %cst_50 = arith.constant 0.000000e+00 : f32
    %90 = vector.broadcast %cst_50 : f32 to vector<8x256xf32>
    %91 = arith.maximumf %89, %90 : vector<8x256xf32>
    %c1_51 = arith.constant 1 : index
    %c0_52 = arith.constant 0 : index
    %c0_53 = arith.constant 0 : index
    %92 = vector.load %arg12[%c1_51, %c0_52, %c0_53] : memref<2x8x256xf32, #tpu.memory_space<vmem>>, vector<1x8x256xf32>
    %93 = vector.shape_cast %92 : vector<1x8x256xf32> to vector<8x256xf32>
    %94 = vector.shape_cast %91 : vector<8x256xf32> to vector<1x8x256xf32>
    tpu.vector_store %arg12[%c1_51, %c0_52, %c0_53], %94 {strides = array<i32>} : memref<2x8x256xf32, #tpu.memory_space<vmem>>, vector<1x8x256xf32>,
    return
  }
  func.func @transform_0(%arg0: i32) -> (i32, i32, i32) {
    %c0_i32 = arith.constant 0 : i32
    %c0_i32_0 = arith.constant 0 : i32
    %c0_i32_1 = arith.constant 0 : i32
    return %arg0, %c0_i32, %c0_i32_0 : i32, i32, i32
  }
  func.func @transform_1(%arg0: i32) -> (i32, i32) {
    %c0_i32 = arith.constant 0 : i32
    %c0_i32_0 = arith.constant 0 : i32
    %c0_i32_1 = arith.constant 0 : i32
    return %c0_i32, %c0_i32_0 : i32, i32
  }
  func.func @transform_2(%arg0: i32) -> (i32, i32) {
    %c0_i32 = arith.constant 0 : i32
    %c0_i32_0 = arith.constant 0 : i32
    %c0_i32_1 = arith.constant 0 : i32
    return %c0_i32, %c0_i32_0 : i32, i32
  }
  func.func @transform_3(%arg0: i32) -> (i32, i32) {
    %c0_i32 = arith.constant 0 : i32
    %c0_i32_0 = arith.constant 0 : i32
    %c0_i32_1 = arith.constant 0 : i32
    return %c0_i32, %c0_i32_0 : i32, i32
  }
  func.func @transform_4(%arg0: i32) -> (i32, i32) {
    %c0_i32 = arith.constant 0 : i32
    %c0_i32_0 = arith.constant 0 : i32
    %c0_i32_1 = arith.constant 0 : i32
    return %c0_i32, %c0_i32_0 : i32, i32
  }
  func.func @transform_5(%arg0: i32) -> (i32, i32) {
    %c0_i32 = arith.constant 0 : i32
    %c0_i32_0 = arith.constant 0 : i32
    %c0_i32_1 = arith.constant 0 : i32
    return %c0_i32, %c0_i32_0 : i32, i32
  }
  func.func @transform_6(%arg0: i32) -> (i32, i32) {
    %c0_i32 = arith.constant 0 : i32
    %c0_i32_0 = arith.constant 0 : i32
    %c0_i32_1 = arith.constant 0 : i32
    return %c0_i32, %c0_i32_0 : i32, i32
  }
  func.func @transform_7(%arg0: i32) -> (i32, i32) {
    %c0_i32 = arith.constant 0 : i32
    %c0_i32_0 = arith.constant 0 : i32
    %c0_i32_1 = arith.constant 0 : i32
    return %c0_i32, %c0_i32_0 : i32, i32
  }
  func.func @transform_8(%arg0: i32) -> (i32, i32) {
    %c0_i32 = arith.constant 0 : i32
    %c0_i32_0 = arith.constant 0 : i32
    %c0_i32_1 = arith.constant 0 : i32
    return %c0_i32, %c0_i32_0 : i32, i32
  }
  func.func @transform_9(%arg0: i32) -> (i32, i32) {
    %c0_i32 = arith.constant 0 : i32
    %c0_i32_0 = arith.constant 0 : i32
    %c0_i32_1 = arith.constant 0 : i32
    return %c0_i32, %c0_i32_0 : i32, i32
  }
  func.func @transform_10(%arg0: i32) -> (i32, i32) {
    %c0_i32 = arith.constant 0 : i32
    %c0_i32_0 = arith.constant 0 : i32
    %c0_i32_1 = arith.constant 0 : i32
    return %c0_i32, %c0_i32_0 : i32, i32
  }
  func.func @transform_11(%arg0: i32) -> (i32, i32, i32) {
    %c0_i32 = arith.constant 0 : i32
    %c0_i32_0 = arith.constant 0 : i32
    %c0_i32_1 = arith.constant 0 : i32
    return %arg0, %c0_i32, %c0_i32_0 : i32, i32, i32
  }
}

module attributes {stable_mosaic.version = 11 : i64} {
  func.func @_cbam_head_kernel(%arg0: i32, %arg1: memref<2x4x256xf32, #tpu.memory_space<vmem>>, %arg2: memref<4x2xf32, #tpu.memory_space<vmem>>, %arg3: memref<1x2xf32, #tpu.memory_space<vmem>>, %arg4: memref<2x4xf32, #tpu.memory_space<vmem>>, %arg5: memref<1x4xf32, #tpu.memory_space<vmem>>, %arg6: memref<256x256xbf16, #tpu.memory_space<vmem>>, %arg7: memref<256x256xbf16, #tpu.memory_space<vmem>>, %arg8: memref<8x4xf32, #tpu.memory_space<vmem>>, %arg9: memref<8x8xf32, #tpu.memory_space<vmem>>, %arg10: memref<8x8xf32, #tpu.memory_space<vmem>>, %arg11: memref<8x3xf32, #tpu.memory_space<vmem>>, %arg12: memref<2x8x256xf32, #tpu.memory_space<vmem>>) attributes {dimension_semantics = [#tpu.dimension_semantics<parallel>], iteration_bounds = array<i64: 2>, scalar_prefetch = 0 : i64, scratch_operands = 0 : i64, tpu.core_type = #tpu.core_type<tc>, window_params = [{transform_indices = @transform_0, window_bounds = array<i64: 2, 4, 256>}, {pipeline_mode = #tpu.pipeline_mode<synchronous>, transform_indices = @transform_1, window_bounds = array<i64: 4, 2>}, {pipeline_mode = #tpu.pipeline_mode<synchronous>, transform_indices = @transform_2, window_bounds = array<i64: 1, 2>}, {pipeline_mode = #tpu.pipeline_mode<synchronous>, transform_indices = @transform_3, window_bounds = array<i64: 2, 4>}, {pipeline_mode = #tpu.pipeline_mode<synchronous>, transform_indices = @transform_4, window_bounds = array<i64: 1, 4>}, {pipeline_mode = #tpu.pipeline_mode<synchronous>, transform_indices = @transform_5, window_bounds = array<i64: 256, 256>}, {pipeline_mode = #tpu.pipeline_mode<synchronous>, transform_indices = @transform_6, window_bounds = array<i64: 256, 256>}, {pipeline_mode = #tpu.pipeline_mode<synchronous>, transform_indices = @transform_7, window_bounds = array<i64: 8, 4>}, {pipeline_mode = #tpu.pipeline_mode<synchronous>, transform_indices = @transform_8, window_bounds = array<i64: 8, 8>}, {pipeline_mode = #tpu.pipeline_mode<synchronous>, transform_indices = @transform_9, window_bounds = array<i64: 8, 8>}, {pipeline_mode = #tpu.pipeline_mode<synchronous>, transform_indices = @transform_10, window_bounds = array<i64: 8, 3>}, {transform_indices = @transform_11, window_bounds = array<i64: 2, 8, 256>}]} {
    %c0 = arith.constant 0 : index
    %c0_0 = arith.constant 0 : index
    %c0_1 = arith.constant 0 : index
    %0 = vector.load %arg1[%c0, %c0_0, %c0_1] : memref<2x4x256xf32, #tpu.memory_space<vmem>>, vector<2x4x256xf32>
    %cst = arith.constant dense<0xFF800000> : vector<2x4xf32>
    %1 = vector.multi_reduction <maximumf>, %0, %cst [2] : vector<2x4x256xf32> to vector<2x4xf32>
    %cst_2 = arith.constant dense<0.000000e+00> : vector<2x4xf32>
    %2 = vector.multi_reduction <add>, %0, %cst_2 [2] : vector<2x4x256xf32> to vector<2x4xf32>
    %cst_3 = arith.constant 3.906250e-03 : f32
    %3 = vector.broadcast %cst_3 : f32 to vector<2x4xf32>
    %4 = arith.mulf %2, %3 : vector<2x4xf32>
    %5 = tpu.concatenate %1, %4 in 0 : vector<2x4xf32>, vector<2x4xf32> -> vector<4x4xf32>
    %c0_4 = arith.constant 0 : index
    %c0_5 = arith.constant 0 : index
    %6 = vector.load %arg2[%c0_4, %c0_5] : memref<4x2xf32, #tpu.memory_space<vmem>>, vector<4x2xf32>
    %cst_6 = arith.constant dense<0.000000e+00> : vector<4x2xf32>
    %7 = tpu.matmul %5, %6, %cst_6 {dimension_numbers = #tpu.dot_dimension_numbers<[1], [0], [0], [1], [0, 0, 1, 1], [], []>} : vector<4x4xf32>, vector<4x2xf32>, vector<4x2xf32> -> vector<4x2xf32>
    %c0_7 = arith.constant 0 : index
    %c0_8 = arith.constant 0 : index
    %8 = vector.load %arg3[%c0_7, %c0_8] : memref<1x2xf32, #tpu.memory_space<vmem>>, vector<1x2xf32>
    %9 = vector.broadcast %8 : vector<1x2xf32> to vector<4x2xf32>
    %10 = arith.addf %7, %9 : vector<4x2xf32>
    %cst_9 = arith.constant 0.000000e+00 : f32
    %11 = vector.broadcast %cst_9 : f32 to vector<4x2xf32>
    %12 = arith.maximumf %10, %11 : vector<4x2xf32>
    %c0_10 = arith.constant 0 : index
    %c0_11 = arith.constant 0 : index
    %13 = vector.load %arg4[%c0_10, %c0_11] : memref<2x4xf32, #tpu.memory_space<vmem>>, vector<2x4xf32>
    %cst_12 = arith.constant dense<0.000000e+00> : vector<4x4xf32>
    %14 = tpu.matmul %12, %13, %cst_12 {dimension_numbers = #tpu.dot_dimension_numbers<[1], [0], [0], [1], [0, 0, 1, 1], [], []>} : vector<4x2xf32>, vector<2x4xf32>, vector<4x4xf32> -> vector<4x4xf32>
    %c0_13 = arith.constant 0 : index
    %c0_14 = arith.constant 0 : index
    %15 = vector.load %arg5[%c0_13, %c0_14] : memref<1x4xf32, #tpu.memory_space<vmem>>, vector<1x4xf32>
    %16 = vector.broadcast %15 : vector<1x4xf32> to vector<4x4xf32>
    %17 = arith.addf %14, %16 : vector<4x4xf32>
    %18 = vector.extract_strided_slice %17 {offsets = [0, 0], sizes = [2, 4], strides = [1, 1]} : vector<4x4xf32> to vector<2x4xf32>
    %19 = vector.extract_strided_slice %17 {offsets = [2, 0], sizes = [2, 4], strides = [1, 1]} : vector<4x4xf32> to vector<2x4xf32>
    %20 = arith.addf %18, %19 : vector<2x4xf32>
    %21 = arith.negf %20 : vector<2x4xf32>
    %22 = math.exp %21 : vector<2x4xf32>
    %cst_15 = arith.constant 1.000000e+00 : f32
    %23 = vector.broadcast %cst_15 : f32 to vector<2x4xf32>
    %24 = arith.addf %23, %22 : vector<2x4xf32>
    %25 = arith.divf %23, %24 : vector<2x4xf32>
    %26 = vector.shape_cast %25 : vector<2x4xf32> to vector<2x4x1xf32>
    %27 = vector.broadcast %26 : vector<2x4x1xf32> to vector<2x4x256xf32>
    %28 = arith.mulf %0, %27 : vector<2x4x256xf32>
    %cst_16 = arith.constant dense<0xFF800000> : vector<2x256xf32>
    %29 = vector.multi_reduction <maximumf>, %28, %cst_16 [1] : vector<2x4x256xf32> to vector<2x256xf32>
    %cst_17 = arith.constant dense<0.000000e+00> : vector<2x256xf32>
    %30 = vector.multi_reduction <add>, %28, %cst_17 [1] : vector<2x4x256xf32> to vector<2x256xf32>
    %cst_18 = arith.constant 2.500000e-01 : f32
    %31 = vector.broadcast %cst_18 : f32 to vector<2x256xf32>
    %32 = arith.mulf %30, %31 : vector<2x256xf32>
    %33 = arith.truncf %29 : vector<2x256xf32> to vector<2x256xbf16>
    %c0_19 = arith.constant 0 : index
    %c0_20 = arith.constant 0 : index
    %34 = vector.load %arg6[%c0_19, %c0_20] : memref<256x256xbf16, #tpu.memory_space<vmem>>, vector<256x256xbf16>
    %cst_21 = arith.constant dense<0.000000e+00> : vector<2x256xf32>
    %35 = tpu.matmul %33, %34, %cst_21 {dimension_numbers = #tpu.dot_dimension_numbers<[1], [0], [0], [1], [0, 0, 1, 1], [], []>} : vector<2x256xbf16>, vector<256x256xbf16>, vector<2x256xf32> -> vector<2x256xf32>
    %36 = arith.truncf %32 : vector<2x256xf32> to vector<2x256xbf16>
    %c0_22 = arith.constant 0 : index
    %c0_23 = arith.constant 0 : index
    %37 = vector.load %arg7[%c0_22, %c0_23] : memref<256x256xbf16, #tpu.memory_space<vmem>>, vector<256x256xbf16>
    %cst_24 = arith.constant dense<0.000000e+00> : vector<2x256xf32>
    %38 = tpu.matmul %36, %37, %cst_24 {dimension_numbers = #tpu.dot_dimension_numbers<[1], [0], [0], [1], [0, 0, 1, 1], [], []>} : vector<2x256xbf16>, vector<256x256xbf16>, vector<2x256xf32> -> vector<2x256xf32>
    %39 = arith.addf %35, %38 : vector<2x256xf32>
    %40 = arith.negf %39 : vector<2x256xf32>
    %41 = math.exp %40 : vector<2x256xf32>
    %cst_25 = arith.constant 1.000000e+00 : f32
    %42 = vector.broadcast %cst_25 : f32 to vector<2x256xf32>
    %43 = arith.addf %42, %41 : vector<2x256xf32>
    %44 = arith.divf %42, %43 : vector<2x256xf32>
    %45 = vector.shape_cast %44 : vector<2x256xf32> to vector<2x1x256xf32>
    %46 = vector.broadcast %45 : vector<2x1x256xf32> to vector<2x4x256xf32>
    %47 = arith.mulf %28, %46 : vector<2x4x256xf32>
    %48 = arith.addf %47, %0 : vector<2x4x256xf32>
    %c0_26 = arith.constant 0 : index
    %c0_27 = arith.constant 0 : index
    %49 = vector.load %arg8[%c0_26, %c0_27] : memref<8x4xf32, #tpu.memory_space<vmem>>, vector<8x4xf32>
    %c0_28 = arith.constant 0 : index
    %c0_29 = arith.constant 0 : index
    %50 = vector.load %arg9[%c0_28, %c0_29] : memref<8x8xf32, #tpu.memory_space<vmem>>, vector<8x8xf32>
    %c0_30 = arith.constant 0 : index
    %c0_31 = arith.constant 0 : index
    %51 = vector.load %arg10[%c0_30, %c0_31] : memref<8x8xf32, #tpu.memory_space<vmem>>, vector<8x8xf32>
    %c0_32 = arith.constant 0 : index
    %c0_33 = arith.constant 0 : index
    %52 = vector.load %arg11[%c0_32, %c0_33] : memref<8x3xf32, #tpu.memory_space<vmem>>, vector<8x1xf32>
    %c0_34 = arith.constant 0 : index
    %c1 = arith.constant 1 : index
    %53 = vector.load %arg11[%c0_34, %c1] : memref<8x3xf32, #tpu.memory_space<vmem>>, vector<8x1xf32>
    %c0_35 = arith.constant 0 : index
    %c2 = arith.constant 2 : index
    %54 = vector.load %arg11[%c0_35, %c2] : memref<8x3xf32, #tpu.memory_space<vmem>>, vector<8x1xf32>
    %55 = vector.extract_strided_slice %48 {offsets = [0, 0, 0], sizes = [1, 4, 256], strides = [1, 1, 1]} : vector<2x4x256xf32> to vector<1x4x256xf32>
    %56 = vector.shape_cast %55 : vector<1x4x256xf32> to vector<4x256xf32>
    %cst_36 = arith.constant dense<0.000000e+00> : vector<8x256xf32>
    %57 = tpu.matmul %49, %56, %cst_36 {dimension_numbers = #tpu.dot_dimension_numbers<[1], [0], [0], [1], [0, 0, 1, 1], [], []>} : vector<8x4xf32>, vector<4x256xf32>, vector<8x256xf32> -> vector<8x256xf32>
    %58 = vector.broadcast %52 : vector<8x1xf32> to vector<8x256xf32>
    %59 = arith.addf %57, %58 : vector<8x256xf32>
    %cst_37 = arith.constant 0.000000e+00 : f32
    %60 = vector.broadcast %cst_37 : f32 to vector<8x256xf32>
    %61 = arith.maximumf %59, %60 : vector<8x256xf32>
    %cst_38 = arith.constant dense<0.000000e+00> : vector<8x256xf32>
    %62 = tpu.matmul %50, %61, %cst_38 {dimension_numbers = #tpu.dot_dimension_numbers<[1], [0], [0], [1], [0, 0, 1, 1], [], []>} : vector<8x8xf32>, vector<8x256xf32>, vector<8x256xf32> -> vector<8x256xf32>
    %63 = vector.broadcast %53 : vector<8x1xf32> to vector<8x256xf32>
    %64 = arith.addf %62, %63 : vector<8x256xf32>
    %cst_39 = arith.constant 0.000000e+00 : f32
    %65 = vector.broadcast %cst_39 : f32 to vector<8x256xf32>
    %66 = arith.maximumf %64, %65 : vector<8x256xf32>
    %cst_40 = arith.constant dense<0.000000e+00> : vector<8x256xf32>
    %67 = tpu.matmul %51, %66, %cst_40 {dimension_numbers = #tpu.dot_dimension_numbers<[1], [0], [0], [1], [0, 0, 1, 1], [], []>} : vector<8x8xf32>, vector<8x256xf32>, vector<8x256xf32> -> vector<8x256xf32>
    %68 = vector.broadcast %54 : vector<8x1xf32> to vector<8x256xf32>
    %69 = arith.addf %67, %68 : vector<8x256xf32>
    %cst_41 = arith.constant 0.000000e+00 : f32
    %70 = vector.broadcast %cst_41 : f32 to vector<8x256xf32>
    %71 = arith.maximumf %69, %70 : vector<8x256xf32>
    %c0_42 = arith.constant 0 : index
    %c0_43 = arith.constant 0 : index
    %c0_44 = arith.constant 0 : index
    %72 = vector.load %arg12[%c0_42, %c0_43, %c0_44] : memref<2x8x256xf32, #tpu.memory_space<vmem>>, vector<1x8x256xf32>
    %73 = vector.shape_cast %72 : vector<1x8x256xf32> to vector<8x256xf32>
    %74 = vector.shape_cast %71 : vector<8x256xf32> to vector<1x8x256xf32>
    tpu.vector_store %arg12[%c0_42, %c0_43, %c0_44], %74 {strides = array<i32>} : memref<2x8x256xf32, #tpu.memory_space<vmem>>, vector<1x8x256xf32>,
    %75 = vector.extract_strided_slice %48 {offsets = [1, 0, 0], sizes = [1, 4, 256], strides = [1, 1, 1]} : vector<2x4x256xf32> to vector<1x4x256xf32>
    %76 = vector.shape_cast %75 : vector<1x4x256xf32> to vector<4x256xf32>
    %cst_45 = arith.constant dense<0.000000e+00> : vector<8x256xf32>
    %77 = tpu.matmul %49, %76, %cst_45 {dimension_numbers = #tpu.dot_dimension_numbers<[1], [0], [0], [1], [0, 0, 1, 1], [], []>} : vector<8x4xf32>, vector<4x256xf32>, vector<8x256xf32> -> vector<8x256xf32>
    %78 = vector.broadcast %52 : vector<8x1xf32> to vector<8x256xf32>
    %79 = arith.addf %77, %78 : vector<8x256xf32>
    %cst_46 = arith.constant 0.000000e+00 : f32
    %80 = vector.broadcast %cst_46 : f32 to vector<8x256xf32>
    %81 = arith.maximumf %79, %80 : vector<8x256xf32>
    %cst_47 = arith.constant dense<0.000000e+00> : vector<8x256xf32>
    %82 = tpu.matmul %50, %81, %cst_47 {dimension_numbers = #tpu.dot_dimension_numbers<[1], [0], [0], [1], [0, 0, 1, 1], [], []>} : vector<8x8xf32>, vector<8x256xf32>, vector<8x256xf32> -> vector<8x256xf32>
    %83 = vector.broadcast %53 : vector<8x1xf32> to vector<8x256xf32>
    %84 = arith.addf %82, %83 : vector<8x256xf32>
    %cst_48 = arith.constant 0.000000e+00 : f32
    %85 = vector.broadcast %cst_48 : f32 to vector<8x256xf32>
    %86 = arith.maximumf %84, %85 : vector<8x256xf32>
    %cst_49 = arith.constant dense<0.000000e+00> : vector<8x256xf32>
    %87 = tpu.matmul %51, %86, %cst_49 {dimension_numbers = #tpu.dot_dimension_numbers<[1], [0], [0], [1], [0, 0, 1, 1], [], []>} : vector<8x8xf32>, vector<8x256xf32>, vector<8x256xf32> -> vector<8x256xf32>
    %88 = vector.broadcast %54 : vector<8x1xf32> to vector<8x256xf32>
    %89 = arith.addf %87, %88 : vector<8x256xf32>
    %cst_50 = arith.constant 0.000000e+00 : f32
    %90 = vector.broadcast %cst_50 : f32 to vector<8x256xf32>
    %91 = arith.maximumf %89, %90 : vector<8x256xf32>
    %c1_51 = arith.constant 1 : index
    %c0_52 = arith.constant 0 : index
    %c0_53 = arith.constant 0 : index
    %92 = vector.load %arg12[%c1_51, %c0_52, %c0_53] : memref<2x8x256xf32, #tpu.memory_space<vmem>>, vector<1x8x256xf32>
    %93 = vector.shape_cast %92 : vector<1x8x256xf32> to vector<8x256xf32>
    %94 = vector.shape_cast %91 : vector<8x256xf32> to vector<1x8x256xf32>
    tpu.vector_store %arg12[%c1_51, %c0_52, %c0_53], %94 {strides = array<i32>} : memref<2x8x256xf32, #tpu.memory_space<vmem>>, vector<1x8x256xf32>,
    return
  }
  func.func @transform_0(%arg0: i32) -> (i32, i32, i32) {
    %c0_i32 = arith.constant 0 : i32
    %c0_i32_0 = arith.constant 0 : i32
    %c0_i32_1 = arith.constant 0 : i32
    return %arg0, %c0_i32, %c0_i32_0 : i32, i32, i32
  }
  func.func @transform_1(%arg0: i32) -> (i32, i32) {
    %c0_i32 = arith.constant 0 : i32
    %c0_i32_0 = arith.constant 0 : i32
    %c0_i32_1 = arith.constant 0 : i32
    return %c0_i32, %c0_i32_0 : i32, i32
  }
  func.func @transform_2(%arg0: i32) -> (i32, i32) {
    %c0_i32 = arith.constant 0 : i32
    %c0_i32_0 = arith.constant 0 : i32
    %c0_i32_1 = arith.constant 0 : i32
    return %c0_i32, %c0_i32_0 : i32, i32
  }
  func.func @transform_3(%arg0: i32) -> (i32, i32) {
    %c0_i32 = arith.constant 0 : i32
    %c0_i32_0 = arith.constant 0 : i32
    %c0_i32_1 = arith.constant 0 : i32
    return %c0_i32, %c0_i32_0 : i32, i32
  }
  func.func @transform_4(%arg0: i32) -> (i32, i32) {
    %c0_i32 = arith.constant 0 : i32
    %c0_i32_0 = arith.constant 0 : i32
    %c0_i32_1 = arith.constant 0 : i32
    return %c0_i32, %c0_i32_0 : i32, i32
  }
  func.func @transform_5(%arg0: i32) -> (i32, i32) {
    %c0_i32 = arith.constant 0 : i32
    %c0_i32_0 = arith.constant 0 : i32
    %c0_i32_1 = arith.constant 0 : i32
    return %c0_i32, %c0_i32_0 : i32, i32
  }
  func.func @transform_6(%arg0: i32) -> (i32, i32) {
    %c0_i32 = arith.constant 0 : i32
    %c0_i32_0 = arith.constant 0 : i32
    %c0_i32_1 = arith.constant 0 : i32
    return %c0_i32, %c0_i32_0 : i32, i32
  }
  func.func @transform_7(%arg0: i32) -> (i32, i32) {
    %c0_i32 = arith.constant 0 : i32
    %c0_i32_0 = arith.constant 0 : i32
    %c0_i32_1 = arith.constant 0 : i32
    return %c0_i32, %c0_i32_0 : i32, i32
  }
  func.func @transform_8(%arg0: i32) -> (i32, i32) {
    %c0_i32 = arith.constant 0 : i32
    %c0_i32_0 = arith.constant 0 : i32
    %c0_i32_1 = arith.constant 0 : i32
    return %c0_i32, %c0_i32_0 : i32, i32
  }
  func.func @transform_9(%arg0: i32) -> (i32, i32) {
    %c0_i32 = arith.constant 0 : i32
    %c0_i32_0 = arith.constant 0 : i32
    %c0_i32_1 = arith.constant 0 : i32
    return %c0_i32, %c0_i32_0 : i32, i32
  }
  func.func @transform_10(%arg0: i32) -> (i32, i32) {
    %c0_i32 = arith.constant 0 : i32
    %c0_i32_0 = arith.constant 0 : i32
    %c0_i32_1 = arith.constant 0 : i32
    return %c0_i32, %c0_i32_0 : i32, i32
  }
  func.func @transform_11(%arg0: i32) -> (i32, i32, i32) {
    %c0_i32 = arith.constant 0 : i32
    %c0_i32_0 = arith.constant 0 : i32
    %c0_i32_1 = arith.constant 0 : i32
    return %arg0, %c0_i32, %c0_i32_0 : i32, i32, i32
  }
}

</mosaic_0001>

<llo_original>
// kernel: tpu_custom_call.1
$region0: #{tpu_custom_call.1}
  #allocation0 [shape = 'u32[]', space=smem, size = 0x4, offset = 0x4, fixed_abs, tag = 'smem constant byte address 0x4 - core index']
  #allocation1 [shape = 'u32[72,128]{1,0:T(1,128)}', space=vmem, size = 0x9000, scoped, tag = 'internal scratch']
  %s0 = inlined_call_operand.hbm [shape: f32[4,4,256], index: 0, kind: input, shape index: {}]
  %s1 = inlined_call_operand.vmem [shape: f32[4,2], index: 1, kind: input, shape index: {}]
  %s2 = inlined_call_operand.vmem [shape: f32[1,2], index: 2, kind: input, shape index: {}]
  %s3 = inlined_call_operand.vmem [shape: f32[2,4], index: 3, kind: input, shape index: {}]
  %s4 = inlined_call_operand.vmem [shape: f32[1,4], index: 4, kind: input, shape index: {}]
  %s5 = inlined_call_operand.hbm [shape: bf16[256,256], index: 5, kind: input, shape index: {}]
  %s6 = inlined_call_operand.hbm [shape: bf16[256,256], index: 6, kind: input, shape index: {}]
  %s7 = inlined_call_operand.vmem [shape: f32[8,4], index: 7, kind: input, shape index: {}]
  %s8 = inlined_call_operand.vmem [shape: f32[8,8], index: 8, kind: input, shape index: {}]
  %s9 = inlined_call_operand.vmem [shape: f32[8,8], index: 9, kind: input, shape index: {}]
  %s10 = inlined_call_operand.vmem [shape: f32[8,3], index: 10, kind: input, shape index: {}]
  %s11 = inlined_call_operand.hbm [shape: f32[4,8,256], index: 11, kind: output, shape index: {}]
  %s12 = sld [smem:[#allocation0]]
  $region89: #{tpu_custom_call.1} parent=0
    _
  %s14 = ssub.s32 1, %s12
  %s15 = scalar_select 0, %s14, %s12
  $region1: #{tpu_custom_call.1} parent=0
    #allocation2 [shape = 'u8[16384]{0}', space=vmem, size = 0x4000, scoped, tag = 'input window, operand 0']
    #allocation3 [shape = 's32[2]{0}', space=sflag, size = 0x8, scoped, tag = 'scoped memory for tpu_custom_call.1']
    #allocation4 [shape = 's32[2]{0}', space=sflag, size = 0x8, scoped, tag = 'scoped memory for tpu_custom_call.1']
    #allocation5 [shape = 'u8[131072]{0}', space=vmem, size = 0x20000, scoped, tag = 'input window, operand 5, single buffered']
    #allocation6 [shape = 's32[1]{0}', space=sflag, size = 0x4, scoped, tag = 'scoped memory for tpu_custom_call.1']
    #allocation7 [shape = 'u8[131072]{0}', space=vmem, size = 0x20000, scoped, tag = 'input window, operand 6, single buffered']
    #allocation8 [shape = 'u8[32768]{0}', space=vmem, size = 0x8000, scoped, tag = 'output window, operand 0']
    %16 = vsyncpa [#allocation3], 0
    %s17 = scalar_lea.sflag [#allocation3], 1
    %18 = vsyncpa %s17, 0
    %19 = vsyncpa [#allocation6], 0
    %20 = vsyncpa [#allocation4], 0
    %s21 = scalar_lea.sflag [#allocation4], 1
    %22 = vsyncpa %s21, 0
    loop: start=0, step=1, limit=4
    $region2: #{tpu_custom_call.1} parent=1 // loop_pre_header
      _
    $region3: #{tpu_custom_call.1} parent=1 // loop_header
      %s24 = sphi 0, %s28
      %p25 = scmp.ge.s32.totalorder %s24, 4
      %s34 = sphi 0, %s36
      %s37 = sphi 0, %s34
      %s38 = sphi 0, %s37
      %s54 = sphi 0, %s38
      %s58 = sphi 0, %s58
      %s60 = sphi 0, %s58
      %s61 = sphi 0, %s60
      %s75 = sphi 0, %s61
      %s79 = sphi 0, %s79
      %s81 = sphi 0, %s79
      %s82 = sphi 0, %s81
      %s96 = sphi 0, %s82
      %s100 = sphi 0, %s100
      %s102 = sphi 0, %s100
      %s103 = sphi 0, %s102
      %s117 = sphi 0, %s103
      %s121 = sphi 0, %s121
      %s123 = sphi 0, %s121
      %s124 = sphi 0, %s123
      %s138 = sphi 0, %s124
      %s142 = sphi 0, %s142
      %s144 = sphi 0, %s142
      %s145 = sphi 0, %s144
      %s159 = sphi 0, %s145
      %s163 = sphi 0, %s163
      %s165 = sphi 0, %s163
      %s166 = sphi 0, %s165
      %s180 = sphi 0, %s166
      %s184 = sphi 0, %s184
      %s186 = sphi 0, %s184
      %s187 = sphi 0, %s186
      %s201 = sphi 0, %s187
      %s205 = sphi 0, %s205
      %s207 = sphi 0, %s205
      %s208 = sphi 0, %s207
      %s222 = sphi 0, %s208
      %s226 = sphi 0, %s226
      %s228 = sphi 0, %s226
      %s229 = sphi 0, %s228
      %s243 = sphi 0, %s229
      %s247 = sphi 0, %s247
      %s249 = sphi 0, %s247
      %s250 = sphi 0, %s249
      %s264 = sphi 0, %s250
      %s270 = sphi 0, %s272
      %s273 = sphi 0, %s270
      %s274 = sphi 0, %s273
      %s290 = sphi 0, %s274
    $region4: #{tpu_custom_call.1} parent=1 // loop_header_branch
      %27 = sbr.rel (%p25) target = $region8
    $region5: #{tpu_custom_call.1} parent=1 // loop_body
      %s29 = ssub.s32 %s24, 1
      %s30 = ssub.s32 %s24, 2
      %s31 = sadd.s32 %s24, 1
      %s32 = ssub.s32 %s24, %s31
      %p33 = scmp.eq.s32.totalorder %s32, 0
      %s35 = sadd.s32 %s34, 1
      %s36 = scalar_select %p33, %s34, %s35
      %p39 = pneg %p33
      %p40 = scmp.eq.s32.totalorder %s24, 1
      %p41 = por %p39, %p40
      %p42 = scmp.ne.s32.totalorder %s34, %s37
      %p43 = scmp.eq.s32.totalorder %s24, 0
      %p44 = por %p42, %p43
      %p45 = scmp.ne.s32.totalorder %s34, %s37
      %p46 = scmp.eq.s32.totalorder %s29, 1
      %p47 = por %p45, %p46
      %p48 = scmp.ne.s32.totalorder %s37, %s38
      %p49 = scmp.eq.s32.totalorder %s29, 0
      %p50 = por %p48, %p49
      %p51 = scmp.ne.s32.totalorder %s37, %s38
      %p52 = scmp.eq.s32.totalorder %s30, 1
      %p53 = por %p51, %p52
      %p55 = scmp.ne.s32.totalorder %s38, %s54
      %p56 = scmp.eq.s32.totalorder %s30, 0
      %p57 = por %p55, %p56
      %s59 = sadd.s32 %s58, 1
      %p62 = scmp.eq.s32.totalorder %s24, 1
      %p63 = scmp.ne.s32.totalorder %s58, %s60
      %p64 = scmp.eq.s32.totalorder %s24, 0
      %p65 = por %p63, %p64
      %p66 = scmp.ne.s32.totalorder %s58, %s60
      %p67 = scmp.eq.s32.totalorder %s29, 1
      %p68 = por %p66, %p67
      %p69 = scmp.ne.s32.totalorder %s60, %s61
      %p70 = scmp.eq.s32.totalorder %s29, 0
      %p71 = por %p69, %p70
      %p72 = scmp.ne.s32.totalorder %s60, %s61
      %p73 = scmp.eq.s32.totalorder %s30, 1
      %p74 = por %p72, %p73
      %p76 = scmp.ne.s32.totalorder %s61, %s75
      %p77 = scmp.eq.s32.totalorder %s30, 0
      %p78 = por %p76, %p77
      %s80 = sadd.s32 %s79, 1
      %p83 = scmp.eq.s32.totalorder %s24, 1
      %p84 = scmp.ne.s32.totalorder %s79, %s81
      %p85 = scmp.eq.s32.totalorder %s24, 0
      %p86 = por %p84, %p85
      %p87 = scmp.ne.s32.totalorder %s79, %s81
      %p88 = scmp.eq.s32.totalorder %s29, 1
      %p89 = por %p87, %p88
      %p90 = scmp.ne.s32.totalorder %s81, %s82
      %p91 = scmp.eq.s32.totalorder %s29, 0
      %p92 = por %p90, %p91
      %p93 = scmp.ne.s32.totalorder %s81, %s82
      %p94 = scmp.eq.s32.totalorder %s30, 1
      %p95 = por %p93, %p94
      %p97 = scmp.ne.s32.totalorder %s82, %s96
      %p98 = scmp.eq.s32.totalorder %s30, 0
      %p99 = por %p97, %p98
      %s101 = sadd.s32 %s100, 1
      %p104 = scmp.eq.s32.totalorder %s24, 1
      %p105 = scmp.ne.s32.totalorder %s100, %s102
      %p106 = scmp.eq.s32.totalorder %s24, 0
      %p107 = por %p105, %p106
      %p108 = scmp.ne.s32.totalorder %s100, %s102
      %p109 = scmp.eq.s32.totalorder %s29, 1
      %p110 = por %p108, %p109
      %p111 = scmp.ne.s32.totalorder %s102, %s103
      %p112 = scmp.eq.s32.totalorder %s29, 0
      %p113 = por %p111, %p112
      %p114 = scmp.ne.s32.totalorder %s102, %s103
      %p115 = scmp.eq.s32.totalorder %s30, 1
      %p116 = por %p114, %p115
      %p118 = scmp.ne.s32.totalorder %s103, %s117
      %p119 = scmp.eq.s32.totalorder %s30, 0
      %p120 = por %p118, %p119
      %s122 = sadd.s32 %s121, 1
      %p125 = scmp.eq.s32.totalorder %s24, 1
      %p126 = scmp.ne.s32.totalorder %s121, %s123
      %p127 = scmp.eq.s32.totalorder %s24, 0
      %p128 = por %p126, %p127
      %p129 = scmp.ne.s32.totalorder %s121, %s123
      %p130 = scmp.eq.s32.totalorder %s29, 1
      %p131 = por %p129, %p130
      %p132 = scmp.ne.s32.totalorder %s123, %s124
      %p133 = scmp.eq.s32.totalorder %s29, 0
      %p134 = por %p132, %p133
      %p135 = scmp.ne.s32.totalorder %s123, %s124
      %p136 = scmp.eq.s32.totalorder %s30, 1
      %p137 = por %p135, %p136
      %p139 = scmp.ne.s32.totalorder %s124, %s138
      %p140 = scmp.eq.s32.totalorder %s30, 0
      %p141 = por %p139, %p140
      %s143 = sadd.s32 %s142, 1
      %p146 = scmp.eq.s32.totalorder %s24, 1
      %p147 = scmp.ne.s32.totalorder %s142, %s144
      %p148 = scmp.eq.s32.totalorder %s24, 0
      %p149 = por %p147, %p148
      %p150 = scmp.ne.s32.totalorder %s142, %s144
      %p151 = scmp.eq.s32.totalorder %s29, 1
      %p152 = por %p150, %p151
      %p153 = scmp.ne.s32.totalorder %s144, %s145
      %p154 = scmp.eq.s32.totalorder %s29, 0
      %p155 = por %p153, %p154
      %p156 = scmp.ne.s32.totalorder %s144, %s145
      %p157 = scmp.eq.s32.totalorder %s30, 1
      %p158 = por %p156, %p157
      %p160 = scmp.ne.s32.totalorder %s145, %s159
      %p161 = scmp.eq.s32.totalorder %s30, 0
      %p162 = por %p160, %p161
      %s164 = sadd.s32 %s163, 1
      %p167 = scmp.eq.s32.totalorder %s24, 1
      %p168 = scmp.ne.s32.totalorder %s163, %s165
      %p169 = scmp.eq.s32.totalorder %s24, 0
      %p170 = por %p168, %p169
      %p171 = scmp.ne.s32.totalorder %s163, %s165
      %p172 = scmp.eq.s32.totalorder %s29, 1
      %p173 = por %p171, %p172
      %p174 = scmp.ne.s32.totalorder %s165, %s166
      %p175 = scmp.eq.s32.totalorder %s29, 0
      %p176 = por %p174, %p175
      %p177 = scmp.ne.s32.totalorder %s165, %s166
      %p178 = scmp.eq.s32.totalorder %s30, 1
      %p179 = por %p177, %p178
      %p181 = scmp.ne.s32.totalorder %s166, %s180
      %p182 = scmp.eq.s32.totalorder %s30, 0
      %p183 = por %p181, %p182
      %s185 = sadd.s32 %s184, 1
      %p188 = scmp.eq.s32.totalorder %s24, 1
      %p189 = scmp.ne.s32.totalorder %s184, %s186
      %p190 = scmp.eq.s32.totalorder %s24, 0
      %p191 = por %p189, %p190
      %p192 = scmp.ne.s32.totalorder %s184, %s186
      %p193 = scmp.eq.s32.totalorder %s29, 1
      %p194 = por %p192, %p193
      %p195 = scmp.ne.s32.totalorder %s186, %s187
      %p196 = scmp.eq.s32.totalorder %s29, 0
      %p197 = por %p195, %p196
      %p198 = scmp.ne.s32.totalorder %s186, %s187
      %p199 = scmp.eq.s32.totalorder %s30, 1
      %p200 = por %p198, %p199
      %p202 = scmp.ne.s32.totalorder %s187, %s201
      %p203 = scmp.eq.s32.totalorder %s30, 0
      %p204 = por %p202, %p203
      %s206 = sadd.s32 %s205, 1
      %p209 = scmp.eq.s32.totalorder %s24, 1
      %p210 = scmp.ne.s32.totalorder %s205, %s207
      %p211 = scmp.eq.s32.totalorder %s24, 0
      %p212 = por %p210, %p211
      %p213 = scmp.ne.s32.totalorder %s205, %s207
      %p214 = scmp.eq.s32.totalorder %s29, 1
      %p215 = por %p213, %p214
      %p216 = scmp.ne.s32.totalorder %s207, %s208
      %p217 = scmp.eq.s32.totalorder %s29, 0
      %p218 = por %p216, %p217
      %p219 = scmp.ne.s32.totalorder %s207, %s208
      %p220 = scmp.eq.s32.totalorder %s30, 1
      %p221 = por %p219, %p220
      %p223 = scmp.ne.s32.totalorder %s208, %s222
      %p224 = scmp.eq.s32.totalorder %s30, 0
      %p225 = por %p223, %p224
      %s227 = sadd.s32 %s226, 1
      %p230 = scmp.eq.s32.totalorder %s24, 1
      %p231 = scmp.ne.s32.totalorder %s226, %s228
      %p232 = scmp.eq.s32.totalorder %s24, 0
      %p233 = por %p231, %p232
      %p234 = scmp.ne.s32.totalorder %s226, %s228
      %p235 = scmp.eq.s32.totalorder %s29, 1
      %p236 = por %p234, %p235
      %p237 = scmp.ne.s32.totalorder %s228, %s229
      %p238 = scmp.eq.s32.totalorder %s29, 0
      %p239 = por %p237, %p238
      %p240 = scmp.ne.s32.totalorder %s228, %s229
      %p241 = scmp.eq.s32.totalorder %s30, 1
      %p242 = por %p240, %p241
      %p244 = scmp.ne.s32.totalorder %s229, %s243
      %p245 = scmp.eq.s32.totalorder %s30, 0
      %p246 = por %p244, %p245
      %s248 = sadd.s32 %s247, 1
      %p251 = scmp.eq.s32.totalorder %s24, 1
      %p252 = scmp.ne.s32.totalorder %s247, %s249
      %p253 = scmp.eq.s32.totalorder %s24, 0
      %p254 = por %p252, %p253
      %p255 = scmp.ne.s32.totalorder %s247, %s249
      %p256 = scmp.eq.s32.totalorder %s29, 1
      %p257 = por %p255, %p256
      %p258 = scmp.ne.s32.totalorder %s249, %s250
      %p259 = scmp.eq.s32.totalorder %s29, 0
      %p260 = por %p258, %p259
      %p261 = scmp.ne.s32.totalorder %s249, %s250
      %p262 = scmp.eq.s32.totalorder %s30, 1
      %p263 = por %p261, %p262
      %p265 = scmp.ne.s32.totalorder %s250, %s264
      %p266 = scmp.eq.s32.totalorder %s30, 0
      %p267 = por %p265, %p266
      %s268 = ssub.s32 %s24, %s31
      %p269 = scmp.eq.s32.totalorder %s268, 0
      %s271 = sadd.s32 %s270, 1
      %s272 = scalar_select %p269, %s270, %s271
      %p275 = pneg %p269
      %p276 = scmp.eq.s32.totalorder %s24, 1
      %p277 = por %p275, %p276
      %p278 = scmp.ne.s32.totalorder %s270, %s273
      %p279 = scmp.eq.s32.totalorder %s24, 0
      %p280 = por %p278, %p279
      %p281 = scmp.ne.s32.totalorder %s270, %s273
      %p282 = scmp.eq.s32.totalorder %s29, 1
      %p283 = por %p281, %p282
      %p284 = scmp.ne.s32.totalorder %s273, %s274
      %p285 = scmp.eq.s32.totalorder %s29, 0
      %p286 = por %p284, %p285
      %p287 = scmp.ne.s32.totalorder %s273, %s274
      %p288 = scmp.eq.s32.totalorder %s30, 1
      %p289 = por %p287, %p288
      %p291 = scmp.ne.s32.totalorder %s274, %s290
      %p292 = scmp.eq.s32.totalorder %s30, 0
      %p293 = por %p291, %p292
      %p294 = scmp.le.s32.totalorder 1, %s24
      %p295 = scmp.lt.s32.totalorder %s24, 3
      %p296 = pnand %p294, %p295
      %p297 = pneg %p296
      // Predicated region
      $region9: #{tpu_custom_call.1} parent=5 // pred_check
        _
      $region10: #{tpu_custom_call.1} parent=5 // pred_check_branch
        %299 = sbr.rel (%p296) target = $region12
      $region11: #{tpu_custom_call.1} parent=5 // pred_region
        %s300 = ssub.s32 %s24, 1
        // Predicated region
        $region13: #{tpu_custom_call.1} parent=11 // pred_check
          %p301 = pneg %p71
        $region14: #{tpu_custom_call.1} parent=11 // pred_check_branch
          %303 = sbr.rel (%p301) target = $region16
        $region15: #{tpu_custom_call.1} parent=11 // pred_region
          _
        $region16: #{tpu_custom_call.1} parent=11 // pred_fallthru
          _
        // Predicated region
        $region17: #{tpu_custom_call.1} parent=11 // pred_check
          %p304 = pneg %p92
        $region18: #{tpu_custom_call.1} parent=11 // pred_check_branch
          %306 = sbr.rel (%p304) target = $region20
        $region19: #{tpu_custom_call.1} parent=11 // pred_region
          _
        $region20: #{tpu_custom_call.1} parent=11 // pred_fallthru
          _
        // Predicated region
        $region21: #{tpu_custom_call.1} parent=11 // pred_check
          %p307 = pneg %p113
        $region22: #{tpu_custom_call.1} parent=11 // pred_check_branch
          %309 = sbr.rel (%p307) target = $region24
        $region23: #{tpu_custom_call.1} parent=11 // pred_region
          _
        $region24: #{tpu_custom_call.1} parent=11 // pred_fallthru
          _
        // Predicated region
        $region25: #{tpu_custom_call.1} parent=11 // pred_check
          %p310 = pneg %p134
        $region26: #{tpu_custom_call.1} parent=11 // pred_check_branch
          %312 = sbr.rel (%p310) target = $region28
        $region27: #{tpu_custom_call.1} parent=11 // pred_region
          _
        $region28: #{tpu_custom_call.1} parent=11 // pred_fallthru
          _
        // Predicated region
        $region29: #{tpu_custom_call.1} parent=11 // pred_check
          %p313 = pneg %p155
        $region30: #{tpu_custom_call.1} parent=11 // pred_check_branch
          %315 = sbr.rel (%p313) target = $region32
        $region31: #{tpu_custom_call.1} parent=11 // pred_region
          %317 = vsyncadd [#allocation6], 0
          %s318 = sshll.u32 %s5, 4
          %s319 = int_to_ptr.hbm [resolvable:$true] %s318
          %s320 = sshll.u32 [#allocation5], 4
          %s321 = int_to_ptr.vmem [resolvable:$true] %s320
          %326 = dma.hbm_to_vmem [thread:$0]  %s319, 4096, %s321, [#allocation6], 128, 128, 8
        $region32: #{tpu_custom_call.1} parent=11 // pred_fallthru
          _
        // Predicated region
        $region33: #{tpu_custom_call.1} parent=11 // pred_check
          %p327 = pneg %p176
        $region34: #{tpu_custom_call.1} parent=11 // pred_check_branch
          %329 = sbr.rel (%p327) target = $region36
        $region35: #{tpu_custom_call.1} parent=11 // pred_region
          %331 = vsyncadd [#allocation6], 0
          %s332 = sshll.u32 %s6, 4
          %s333 = int_to_ptr.hbm [resolvable:$true] %s332
          %s334 = sshll.u32 [#allocation7], 4
          %s335 = int_to_ptr.vmem [resolvable:$true] %s334
          %340 = dma.hbm_to_vmem [thread:$0]  %s333, 4096, %s335, [#allocation6], 128, 128, 8
        $region36: #{tpu_custom_call.1} parent=11 // pred_fallthru
          _
        // Predicated region
        $region37: #{tpu_custom_call.1} parent=11 // pred_check
          %p341 = pneg %p197
        $region38: #{tpu_custom_call.1} parent=11 // pred_check_branch
          %343 = sbr.rel (%p341) target = $region40
        $region39: #{tpu_custom_call.1} parent=11 // pred_region
          _
        $region40: #{tpu_custom_call.1} parent=11 // pred_fallthru
          _
        // Predicated region
        $region41: #{tpu_custom_call.1} parent=11 // pred_check
          %p344 = pneg %p218
        $region42: #{tpu_custom_call.1} parent=11 // pred_check_branch
          %346 = sbr.rel (%p344) target = $region44
        $region43: #{tpu_custom_call.1} parent=11 // pred_region
          _
        $region44: #{tpu_custom_call.1} parent=11 // pred_fallthru
          _
        // Predicated region
        $region45: #{tpu_custom_call.1} parent=11 // pred_check
          %p347 = pneg %p239
        $region46: #{tpu_custom_call.1} parent=11 // pred_check_branch
          %349 = sbr.rel (%p347) target = $region48
        $region47: #{tpu_custom_call.1} parent=11 // pred_region
          _
        $region48: #{tpu_custom_call.1} parent=11 // pred_fallthru
          _
        // Predicated region
        $region49: #{tpu_custom_call.1} parent=11 // pred_check
          %p350 = pneg %p260
        $region50: #{tpu_custom_call.1} parent=11 // pred_check_branch
          %352 = sbr.rel (%p350) target = $region52
        $region51: #{tpu_custom_call.1} parent=11 // pred_region
          _
        $region52: #{tpu_custom_call.1} parent=11 // pred_fallthru
          _
      $region12: #{tpu_custom_call.1} parent=5 // pred_fallthru
        _
      %p353 = scmp.lt.s32.totalorder %s24, 2
      // Predicated region
      $region53: #{tpu_custom_call.1} parent=5 // pred_check
        %p354 = pneg %p353
      $region54: #{tpu_custom_call.1} parent=5 // pred_check_branch
        %356 = sbr.rel (%p354) target = $region56
      $region55: #{tpu_custom_call.1} parent=5 // pred_region
        // Predicated region
        $region57: #{tpu_custom_call.1} parent=55 // pred_check
          %p357 = pneg %p44
        $region58: #{tpu_custom_call.1} parent=55 // pred_check_branch
          %359 = sbr.rel (%p357) target = $region60
        $region59: #{tpu_custom_call.1} parent=55 // pred_region
          %s360 = sand.u32 %s34, 1
          %s361 = scalar_lea.sflag [#allocation3], %s360
          %s362 = sand.u32 %s34, 1
          %s363 = smul.addr %s362, 16
          %s364 = scalar_lea.vmem [#allocation2], %s363
          %s365 = smul.u32 2, %s24
          %367 = vsyncadd %s361, 0
          %s368 = smul.addr %s365, 2
          %s369 = smul.addr %s368, 4
          %s370 = scalar_lea.hbm %s0, %s369
          %s371 = sshll.u32 %s370, 4
          %s372 = int_to_ptr.hbm [resolvable:$true] %s371
          %s373 = sshll.u32 %s364, 4
          %s374 = int_to_ptr.vmem [resolvable:$true] %s373
          %379 = dma.hbm_to_vmem [thread:$0]  %s372, 256, %s374, %s361, 128, 128, 8
        $region60: #{tpu_custom_call.1} parent=55 // pred_fallthru
          _
      $region56: #{tpu_custom_call.1} parent=5 // pred_fallthru
        _
      %p380 = scmp.le.s32.totalorder 1, %s24
      %p381 = scmp.lt.s32.totalorder %s24, 3
      %p382 = pnand %p380, %p381
      %p383 = pneg %p382
      // Predicated region
      $region61: #{tpu_custom_call.1} parent=5 // pred_check
        _
      $region62: #{tpu_custom_call.1} parent=5 // pred_check_branch
        %385 = sbr.rel (%p382) target = $region64
      $region63: #{tpu_custom_call.1} parent=5 // pred_region
        %s386 = ssub.s32 %s24, 1
        %s387 = sand.u32 %s37, 1
        %s388 = scalar_lea.sflag [#allocation3], %s387
        %s389 = sand.u32 %s37, 1
        %s390 = smul.addr %s389, 16
        %s391 = scalar_lea.vmem [#allocation2], %s390
        // Predicated region
        $region65: #{tpu_custom_call.1} parent=63 // pred_check
          %p392 = pneg %p50
        $region66: #{tpu_custom_call.1} parent=63 // pred_check_branch
          %394 = sbr.rel (%p392) target = $region68
        $region67: #{tpu_custom_call.1} parent=63 // pred_region
          %396 = dma.done %s388, 256
        $region68: #{tpu_custom_call.1} parent=63 // pred_fallthru
          _
        // Predicated region
        $region69: #{tpu_custom_call.1} parent=63 // pred_check
          %p397 = pneg %p155
        $region70: #{tpu_custom_call.1} parent=63 // pred_check_branch
          %399 = sbr.rel (%p397) target = $region72
        $region71: #{tpu_custom_call.1} parent=63 // pred_region
          %401 = dma.done [#allocation6], 4096
        $region72: #{tpu_custom_call.1} parent=63 // pred_fallthru
          _
        // Predicated region
        $region73: #{tpu_custom_call.1} parent=63 // pred_check
          %p402 = pneg %p176
        $region74: #{tpu_custom_call.1} parent=63 // pred_check_branch
          %404 = sbr.rel (%p402) target = $region76
        $region75: #{tpu_custom_call.1} parent=63 // pred_region
          %406 = dma.done [#allocation6], 4096
        $region76: #{tpu_custom_call.1} parent=63 // pred_fallthru
          _
        %s407 = sand.u32 %s37, 1
        %s408 = scalar_lea.sflag [#allocation3], %s407
        %s409 = sand.u32 %s37, 1
        %s410 = smul.addr %s409, 16
        %s411 = scalar_lea.vmem [#allocation2], %s410
        %p412 = pneg %p50
        %p413 = pneg %p47
        %p414 = pneg %p71
        %p415 = pneg %p68
        %p416 = pneg %p92
        %p417 = pneg %p89
        %p418 = pneg %p113
        %p419 = pneg %p110
        %p420 = pneg %p134
        %p421 = pneg %p131
        %p422 = pneg %p155
        %p423 = pneg %p152
        %p424 = pneg %p176
        %p425 = pneg %p173
        %p426 = pneg %p197
        %p427 = pneg %p194
        %p428 = pneg %p218
        %p429 = pneg %p215
        %p430 = pneg %p239
        %p431 = pneg %p236
        %p432 = pneg %p260
        %p433 = pneg %p257
        %p434 = pneg %p286
        %p435 = pneg %p283
        %s436 = sand.u32 %s273, 1
        %s437 = scalar_lea.sflag [#allocation4], %s436
        %s438 = sand.u32 %s273, 1
        %s439 = smul.addr %s438, 32
        %s440 = scalar_lea.vmem [#allocation8], %s439
        %s441 = smul.u32 2, %s29
        %s442 = smul.u32 2, %s29
        %v443 = vld [vmem:[%s391] sm:$0xff]
        %v444 = vld [vmem:[%s391 + $0x8] sm:$0xff]
        %447 = vst [vmem:[#allocation1] ss:$2 sm:$0xff] %v443
        %v448 = vld.sshfl [vmem:[#allocation1] sm:$0xff pattern:$0x75316420]
        %v449 = vld.sshfl [vmem:[#allocation1 + $0x8] sm:$0xff pattern:$0x75316420]
        %s450 = scalar_lea.vmem [#allocation1], 16
        %451 = vst [vmem:[%s450] ss:$2 sm:$0xff] %v444
        %v452 = vld.sshfl [vmem:[#allocation1 + $0x10] sm:$0xff pattern:$0x75316420]
        %v453 = vld.sshfl [vmem:[#allocation1 + $0x18] sm:$0xff pattern:$0x75316420]
        %vm458 = vcmask 1043456
        %v459 = vsel %vm458, %v448, -inf
        %v460 = vsel %vm458, %v449, -inf
        %v461 = vmax.f32 %v459, %v460
        %462 = vmax.xlane.f32.xlu0 %v461
        %v463 = vpop.xlane.xlu0 %462
        %v464 = vsel %vm458, %v452, -inf
        %v465 = vsel %vm458, %v453, -inf
        %v466 = vmax.f32 %v464, %v465
        %467 = vmax.xlane.f32.xlu0 %v466
        %v468 = vpop.xlane.xlu0 %467
        %469 = vst [vmem:[#allocation1] ss:$2 sm:$0xff] %v443
        %v470 = vld.sshfl [vmem:[#allocation1] sm:$0xff pattern:$0x75316420]
        %v471 = vld.sshfl [vmem:[#allocation1 + $0x8] sm:$0xff pattern:$0x75316420]
        %s472 = scalar_lea.vmem [#allocation1], 16
        %473 = vst [vmem:[%s472] ss:$2 sm:$0xff] %v444
        %v474 = vld.sshfl [vmem:[#allocation1 + $0x10] sm:$0xff pattern:$0x75316420]
        %v475 = vld.sshfl [vmem:[#allocation1 + $0x18] sm:$0xff pattern:$0x75316420]
        %v480 = vsel %vm458, %v470, 0.0
        %v481 = vsel %vm458, %v471, 0.0
        %v482 = vadd.f32 %v480, %v481
        %483 = vadd.xlane.f32.xlu0 %v482
        %v484 = vpop.xlane.xlu0 %483
        %v485 = vsel %vm458, %v474, 0.0
        %v486 = vsel %vm458, %v475, 0.0
        %v487 = vadd.f32 %v485, %v486
        %488 = vadd.xlane.f32.xlu0 %v487
        %v489 = vpop.xlane.xlu0 %488
        %v490 = vmul.f32 %v484, 0.00390625
        %v491 = vmul.f32 %v489, 0.00390625
        %v494 = vlaneseq
        %v495 = vand.u32 %v494, 127
        %v496 = vperm.slane %v463, %v495
        %v497 = vperm.slane %v468, %v495
        %vm498 = vcmask 1041409
        %v499 = vsel %vm498, %v497, %v496
        %v503 = vperm.slane %v490, %v495
        %v504 = vperm.slane %v491, %v495
        %vm505 = vcmask 1043459
        %v506 = vsel %vm505, %v504, %v503
        %vm508 = vcmask 1041408
        %v509 = vsel %vm508, %v499, %v506
        %v510 = vld [vmem:[%s1] sm:$0xf]
        %v511 = vld [vmem:[%s2] sm:$0x1]
        %v513 = vperm.slane %v511, 0
        %vm515 = vcmask 31744
        %v517 = vsel %vm515, %v509, 0
        %v520 = vsel %vm458, %v510, 0
        %522 = vmatpush.msra.mxu0 0.0
        %523 = vmatpush.msra.mxu0 0.0
        %524 = vmatpush.msra.mxu0 0.0
        %525 = vmatpush.msra.mxu0 0.0
        %526 = vmatpush.msra.mxu0 0.0
        %527 = vmatpush.msra.mxu0 0.0
        %528 = vmatpush.msra.mxu0 0.0
        %529 = vmatpush.msra.mxu0 0.0
        %530 = vmatpush.msra.mxu0 0.0
        %531 = vmatpush.msra.mxu0 0.0
        %532 = vmatpush.msra.mxu0 0.0
        %533 = vmatpush.msra.mxu0 0.0
        %534 = vmatpush.msra.mxu0 0.0
        %535 = vmatpush.msra.mxu0 0.0
        %536 = vmatpush.msra.mxu0 0.0
        %537 = vmatpush.msra.mxu0 %v520
        %538 = vmatmul.f32.gmra.mxu0 %v517
        %v539 = vpop.f32.mrf.mxu0
        %v540 = vadd.f32 %v513, %v539
        %541 = vdwg.mxu0
        %v542 = vmax.f32 %v540, 0.0
        %v543 = vld [vmem:[%s3] sm:$0x3]
        %v544 = vld [vmem:[%s4] sm:$0x1]
        %v546 = vperm.slane %v544, 0
        %vm548 = vcmask 15360
        %v550 = vsel %vm548, %v542, 0
        %v553 = vsel %vm508, %v543, 0
        %555 = vmatpush.msra.mxu0 0.0
        %556 = vmatpush.msra.mxu0 0.0
        %557 = vmatpush.msra.mxu0 0.0
        %558 = vmatpush.msra.mxu0 0.0
        %559 = vmatpush.msra.mxu0 0.0
        %560 = vmatpush.msra.mxu0 0.0
        %561 = vmatpush.msra.mxu0 0.0
        %562 = vmatpush.msra.mxu0 0.0
        %563 = vmatpush.msra.mxu0 0.0
        %564 = vmatpush.msra.mxu0 0.0
        %565 = vmatpush.msra.mxu0 0.0
        %566 = vmatpush.msra.mxu0 0.0
        %567 = vmatpush.msra.mxu0 0.0
        %568 = vmatpush.msra.mxu0 0.0
        %569 = vmatpush.msra.mxu0 0.0
        %570 = vmatpush.msra.mxu0 %v553
        %571 = vmatmul.f32.gmra.mxu0 %v550
        %v572 = vpop.f32.mrf.mxu0
        %v573 = vadd.f32 %v546, %v572
        %574 = vdwg.mxu0
        %v576 = vrot.slane %v573, 2
        %v578 = vadd.f32 %v573, %v576
        %v579 = vxor.u32 %v578, 2147483648
        %v580 = vmul.f32 %v579, 1.442695
        %v581 = vpow.pop %v580
        %v582 = vadd.f32 %v581, 1.0
        %v583 = vrcp.pop %v582
        %v584 = vmul.f32 %v582, %v583
        %v585 = vsub.f32 1.0, %v584
        %v586 = vmul.f32 %v583, %v585
        %v587 = vadd.f32 %v583, %v586
        %vm588 = vweird.f32 %v582
        %vm589 = vweird.f32 %v583
        %vm590 = vmor %vm588, %vm589
        %v591 = vsel %vm590, %v583, %v587
        %v592 = vand.u32 2147483647, %v582
        %vm593 = vcmp.eq.f32.partialorder %v592, 8.507059e+37
        %v594 = vand.u32 %v582, 2147483648
        %v595 = vor.u32 1.1754944e-38, %v594
        %v596 = vsel %vm593, %v595, %v591
        %v597 = vmul.f32 1.0, %v596
        %v598 = vperm.slane %v597, 0
        %v599 = vlaneseq
        %v600 = vshrl.u32 %v599, 7
        %602 = vset.pattern.permute.xlu0 %v600
        %603 = vperm.xlu0 %602, %v598
        %v604 = vpop.permute.xlu0 %603
        %v605 = vperm.slane %v597, 1
        %v606 = vlaneseq
        %v607 = vshrl.u32 %v606, 7
        %609 = vset.pattern.permute.xlu0 %v607
        %610 = vperm.xlu0 %609, %v605
        %v611 = vpop.permute.xlu0 %610
        %v615 = vunpack.c.l.s4 839922192
        %v616 = vunpack.c.0.s8 %v615
        %v617 = vperm.slane %v604, %v616
        %v619 = vunpack.c.l.s4 839922192
        %v620 = vunpack.c.0.s8 %v619
        %v621 = vperm.slane %v611, %v620
        %v624 = vmul.f32 %v443, %v617
        %v625 = vmul.f32 %v444, %v621
        %628 = vst [vmem:[#allocation1] ss:$2 sm:$0xff] %v624
        %v629 = vld.sshfl [vmem:[#allocation1] sm:$0xff pattern:$0x75316420]
        %v630 = vld.sshfl [vmem:[#allocation1 + $0x8] sm:$0xff pattern:$0x75316420]
        %s631 = scalar_lea.vmem [#allocation1], 16
        %632 = vst [vmem:[%s631] ss:$2 sm:$0xff] %v625
        %v633 = vld.sshfl [vmem:[#allocation1 + $0x10] sm:$0xff pattern:$0x75316420]
        %v634 = vld.sshfl [vmem:[#allocation1 + $0x18] sm:$0xff pattern:$0x75316420]
        %v639 = vsel %vm458, %v629, -inf
        %v640 = vrot.slane %v639, 4
        %v641 = vmax.f32 %v639, %v640
        %v642 = vrot.slane %v641, 2
        %v643 = vmax.f32 %v641, %v642
        %v644 = vrot.slane %v643, 1
        %v645 = vmax.f32 %v643, %v644
        %v646 = vsel %vm458, %v630, -inf
        %v647 = vrot.slane %v646, 4
        %v648 = vmax.f32 %v646, %v647
        %v649 = vrot.slane %v648, 2
        %v650 = vmax.f32 %v648, %v649
        %v651 = vrot.slane %v650, 1
        %v652 = vmax.f32 %v650, %v651
        %v653 = vsel %vm458, %v633, -inf
        %v654 = vrot.slane %v653, 4
        %v655 = vmax.f32 %v653, %v654
        %v656 = vrot.slane %v655, 2
        %v657 = vmax.f32 %v655, %v656
        %v658 = vrot.slane %v657, 1
        %v659 = vmax.f32 %v657, %v658
        %v660 = vsel %vm458, %v634, -inf
        %v661 = vrot.slane %v660, 4
        %v662 = vmax.f32 %v660, %v661
        %v663 = vrot.slane %v662, 2
        %v664 = vmax.f32 %v662, %v663
        %v665 = vrot.slane %v664, 1
        %v666 = vmax.f32 %v664, %v665
        %667 = vst [vmem:[#allocation1] ss:$2 sm:$0xff] %v624
        %v668 = vld.sshfl [vmem:[#allocation1] sm:$0xff pattern:$0x75316420]
        %v669 = vld.sshfl [vmem:[#allocation1 + $0x8] sm:$0xff pattern:$0x75316420]
        %s670 = scalar_lea.vmem [#allocation1], 16
        %671 = vst [vmem:[%s670] ss:$2 sm:$0xff] %v625
        %v672 = vld.sshfl [vmem:[#allocation1 + $0x10] sm:$0xff pattern:$0x75316420]
        %v673 = vld.sshfl [vmem:[#allocation1 + $0x18] sm:$0xff pattern:$0x75316420]
        %v678 = vsel %vm458, %v668, 0.0
        %v679 = vrot.slane %v678, 4
        %v680 = vadd.f32 %v678, %v679
        %v681 = vrot.slane %v680, 2
        %v682 = vadd.f32 %v680, %v681
        %v683 = vrot.slane %v682, 1
        %v684 = vadd.f32 %v682, %v683
        %v685 = vsel %vm458, %v669, 0.0
        %v686 = vrot.slane %v685, 4
        %v687 = vadd.f32 %v685, %v686
        %v688 = vrot.slane %v687, 2
        %v689 = vadd.f32 %v687, %v688
        %v690 = vrot.slane %v689, 1
        %v691 = vadd.f32 %v689, %v690
        %v692 = vsel %vm458, %v672, 0.0
        %v693 = vrot.slane %v692, 4
        %v694 = vadd.f32 %v692, %v693
        %v695 = vrot.slane %v694, 2
        %v696 = vadd.f32 %v694, %v695
        %v697 = vrot.slane %v696, 1
        %v698 = vadd.f32 %v696, %v697
        %v699 = vsel %vm458, %v673, 0.0
        %v700 = vrot.slane %v699, 4
        %v701 = vadd.f32 %v699, %v700
        %v702 = vrot.slane %v701, 2
        %v703 = vadd.f32 %v701, %v702
        %v704 = vrot.slane %v703, 1
        %v705 = vadd.f32 %v703, %v704
        %v706 = vmul.f32 %v684, 0.25
        %v707 = vmul.f32 %v691, 0.25
        %v708 = vmul.f32 %v698, 0.25
        %v709 = vmul.f32 %v705, 0.25
        %v710 = vpack.c.bf16 %v645, %v645
        %v711 = vpack.c.bf16 %v652, %v652
        %v712 = vpack.c.bf16 %v659, %v659
        %v713 = vpack.c.bf16 %v666, %v666
        %v714 = vld [vmem:[#allocation5] sm:$0xff]
        %v715 = vld [vmem:[#allocation5 + $0x8] sm:$0xff]
        %v716 = vld [vmem:[#allocation5 + $0x10] sm:$0xff]
        %v717 = vld [vmem:[#allocation5 + $0x18] sm:$0xff]
        %v718 = vld [vmem:[#allocation5 + $0x20] sm:$0xff]
        %v719 = vld [vmem:[#allocation5 + $0x28] sm:$0xff]
        %v720 = vld [vmem:[#allocation5 + $0x30] sm:$0xff]
        %v721 = vld [vmem:[#allocation5 + $0x38] sm:$0xff]
        %v722 = vld [vmem:[#allocation5 + $0x40] sm:$0xff]
        %v723 = vld [vmem:[#allocation5 + $0x48] sm:$0xff]
        %v724 = vld [vmem:[#allocation5 + $0x50] sm:$0xff]
        %v725 = vld [vmem:[#allocation5 + $0x58] sm:$0xff]
        %v726 = vld [vmem:[#allocation5 + $0x60] sm:$0xff]
        %v727 = vld [vmem:[#allocation5 + $0x68] sm:$0xff]
        %v728 = vld [vmem:[#allocation5 + $0x70] sm:$0xff]
        %v729 = vld [vmem:[#allocation5 + $0x78] sm:$0xff]
        %v730 = vld [vmem:[#allocation5 + $0x80] sm:$0xff]
        %v731 = vld [vmem:[#allocation5 + $0x88] sm:$0xff]
        %v732 = vld [vmem:[#allocation5 + $0x90] sm:$0xff]
        %v733 = vld [vmem:[#allocation5 + $0x98] sm:$0xff]
        %v734 = vld [vmem:[#allocation5 + $0xa0] sm:$0xff]
        %v735 = vld [vmem:[#allocation5 + $0xa8] sm:$0xff]
        %v736 = vld [vmem:[#allocation5 + $0xb0] sm:$0xff]
        %v737 = vld [vmem:[#allocation5 + $0xb8] sm:$0xff]
        %v738 = vld [vmem:[#allocation5 + $0xc0] sm:$0xff]
        %v739 = vld [vmem:[#allocation5 + $0xc8] sm:$0xff]
        %v740 = vld [vmem:[#allocation5 + $0xd0] sm:$0xff]
        %v741 = vld [vmem:[#allocation5 + $0xd8] sm:$0xff]
        %v742 = vld [vmem:[#allocation5 + $0xe0] sm:$0xff]
        %v743 = vld [vmem:[#allocation5 + $0xe8] sm:$0xff]
        %v744 = vld [vmem:[#allocation5 + $0xf0] sm:$0xff]
        %v745 = vld [vmem:[#allocation5 + $0xf8] sm:$0xff]
        %v746 = vpack.c.bf16 %v706, %v706
        %v747 = vpack.c.bf16 %v707, %v707
        %v748 = vpack.c.bf16 %v708, %v708
        %v749 = vpack.c.bf16 %v709, %v709
        %v750 = vld [vmem:[#allocation7] sm:$0xff]
        %v751 = vld [vmem:[#allocation7 + $0x8] sm:$0xff]
        %v752 = vld [vmem:[#allocation7 + $0x10] sm:$0xff]
        %v753 = vld [vmem:[#allocation7 + $0x18] sm:$0xff]
        %v754 = vld [vmem:[#allocation7 + $0x20] sm:$0xff]
        %v755 = vld [vmem:[#allocation7 + $0x28] sm:$0xff]
        %v756 = vld [vmem:[#allocation7 + $0x30] sm:$0xff]
        %v757 = vld [vmem:[#allocation7 + $0x38] sm:$0xff]
        %v758 = vld [vmem:[#allocation7 + $0x40] sm:$0xff]
        %v759 = vld [vmem:[#allocation7 + $0x48] sm:$0xff]
        %v760 = vld [vmem:[#allocation7 + $0x50] sm:$0xff]
        %v761 = vld [vmem:[#allocation7 + $0x58] sm:$0xff]
        %v762 = vld [vmem:[#allocation7 + $0x60] sm:$0xff]
        %v763 = vld [vmem:[#allocation7 + $0x68] sm:$0xff]
        %v764 = vld [vmem:[#allocation7 + $0x70] sm:$0xff]
        %v765 = vld [vmem:[#allocation7 + $0x78] sm:$0xff]
        %v766 = vld [vmem:[#allocation7 + $0x80] sm:$0xff]
        %v767 = vld [vmem:[#allocation7 + $0x88] sm:$0xff]
        %v768 = vld [vmem:[#allocation7 + $0x90] sm:$0xff]
        %v769 = vld [vmem:[#allocation7 + $0x98] sm:$0xff]
        %v770 = vld [vmem:[#allocation7 + $0xa0] sm:$0xff]
        %v771 = vld [vmem:[#allocation7 + $0xa8] sm:$0xff]
        %v772 = vld [vmem:[#allocation7 + $0xb0] sm:$0xff]
        %v773 = vld [vmem:[#allocation7 + $0xb8] sm:$0xff]
        %v774 = vld [vmem:[#allocation7 + $0xc0] sm:$0xff]
        %v775 = vld [vmem:[#allocation7 + $0xc8] sm:$0xff]
        %v776 = vld [vmem:[#allocation7 + $0xd0] sm:$0xff]
        %v777 = vld [vmem:[#allocation7 + $0xd8] sm:$0xff]
        %v778 = vld [vmem:[#allocation7 + $0xe0] sm:$0xff]
        %v779 = vld [vmem:[#allocation7 + $0xe8] sm:$0xff]
        %v780 = vld [vmem:[#allocation7 + $0xf0] sm:$0xff]
        %v781 = vld [vmem:[#allocation7 + $0xf8] sm:$0xff]
        %v786 = vunpack.c.l.b16 %v746
        %v787 = vunpack.c.l.b16 %v747
        %v788 = vunpack.c.l.b16 %v748
        %v789 = vunpack.c.l.b16 %v749
        %v790 = vsel %vm498, %v788, %v786
        %v791 = vsel %vm498, %v789, %v787
        %v792 = vpack.c.b16 %v790, %v790
        %v793 = vpack.c.b16 %v791, %v791
        %v828 = vunpack.c.l.b16 %v750
        %v829 = vunpack.c.h.b16 %v750
        %v830 = vunpack.c.l.b16 %v751
        %v831 = vunpack.c.h.b16 %v751
        %v832 = vunpack.c.l.b16 %v752
        %v833 = vunpack.c.h.b16 %v752
        %v834 = vunpack.c.l.b16 %v753
        %v835 = vunpack.c.h.b16 %v753
        %v836 = vunpack.c.l.b16 %v754
        %v837 = vunpack.c.h.b16 %v754
        %v838 = vunpack.c.l.b16 %v755
        %v839 = vunpack.c.h.b16 %v755
        %v840 = vunpack.c.l.b16 %v756
        %v841 = vunpack.c.h.b16 %v756
        %v842 = vunpack.c.l.b16 %v757
        %v843 = vunpack.c.h.b16 %v757
        %v844 = vunpack.c.l.b16 %v758
        %v845 = vunpack.c.h.b16 %v758
        %v846 = vunpack.c.l.b16 %v759
        %v847 = vunpack.c.h.b16 %v759
        %v848 = vunpack.c.l.b16 %v760
        %v849 = vunpack.c.h.b16 %v760
        %v850 = vunpack.c.l.b16 %v761
        %v851 = vunpack.c.h.b16 %v761
        %v852 = vunpack.c.l.b16 %v762
        %v853 = vunpack.c.h.b16 %v762
        %v854 = vunpack.c.l.b16 %v763
        %v855 = vunpack.c.h.b16 %v763
        %v856 = vunpack.c.l.b16 %v764
        %v857 = vunpack.c.h.b16 %v764
        %v858 = vunpack.c.l.b16 %v765
        %v859 = vunpack.c.h.b16 %v765
        %v860 = vunpack.c.l.b16 %v766
        %v861 = vunpack.c.h.b16 %v766
        %v862 = vunpack.c.l.b16 %v767
        %v863 = vunpack.c.h.b16 %v767
        %v864 = vunpack.c.l.b16 %v768
        %v865 = vunpack.c.h.b16 %v768
        %v866 = vunpack.c.l.b16 %v769
        %v867 = vunpack.c.h.b16 %v769
        %v868 = vunpack.c.l.b16 %v770
        %v869 = vunpack.c.h.b16 %v770
        %v870 = vunpack.c.l.b16 %v771
        %v871 = vunpack.c.h.b16 %v771
        %v872 = vunpack.c.l.b16 %v772
        %v873 = vunpack.c.h.b16 %v772
        %v874 = vunpack.c.l.b16 %v773
        %v875 = vunpack.c.h.b16 %v773
        %v876 = vunpack.c.l.b16 %v774
        %v877 = vunpack.c.h.b16 %v774
        %v878 = vunpack.c.l.b16 %v775
        %v879 = vunpack.c.h.b16 %v775
        %v880 = vunpack.c.l.b16 %v776
        %v881 = vunpack.c.h.b16 %v776
        %v882 = vunpack.c.l.b16 %v777
        %v883 = vunpack.c.h.b16 %v777
        %v884 = vunpack.c.l.b16 %v778
        %v885 = vunpack.c.h.b16 %v778
        %v886 = vunpack.c.l.b16 %v779
        %v887 = vunpack.c.h.b16 %v779
        %v888 = vunpack.c.l.b16 %v780
        %v889 = vunpack.c.h.b16 %v780
        %v890 = vunpack.c.l.b16 %v781
        %v891 = vunpack.c.h.b16 %v781
        %v892 = vpack.c.b16 %v830, %v828
        %v893 = vpack.c.b16 %v831, %v829
        %v894 = vpack.c.b16 %v834, %v832
        %v895 = vpack.c.b16 %v835, %v833
        %v896 = vpack.c.b16 %v838, %v836
        %v897 = vpack.c.b16 %v839, %v837
        %v898 = vpack.c.b16 %v842, %v840
        %v899 = vpack.c.b16 %v843, %v841
        %v900 = vpack.c.b16 %v846, %v844
        %v901 = vpack.c.b16 %v847, %v845
        %v902 = vpack.c.b16 %v850, %v848
        %v903 = vpack.c.b16 %v851, %v849
        %v904 = vpack.c.b16 %v854, %v852
        %v905 = vpack.c.b16 %v855, %v853
        %v906 = vpack.c.b16 %v858, %v856
        %v907 = vpack.c.b16 %v859, %v857
        %v908 = vpack.c.b16 %v862, %v860
        %v909 = vpack.c.b16 %v863, %v861
        %v910 = vpack.c.b16 %v866, %v864
        %v911 = vpack.c.b16 %v867, %v865
        %v912 = vpack.c.b16 %v870, %v868
        %v913 = vpack.c.b16 %v871, %v869
        %v914 = vpack.c.b16 %v874, %v872
        %v915 = vpack.c.b16 %v875, %v873
        %v916 = vpack.c.b16 %v878, %v876
        %v917 = vpack.c.b16 %v879, %v877
        %v918 = vpack.c.b16 %v882, %v880
        %v919 = vpack.c.b16 %v883, %v881
        %v920 = vpack.c.b16 %v886, %v884
        %v921 = vpack.c.b16 %v887, %v885
        %v922 = vpack.c.b16 %v890, %v888
        %v923 = vpack.c.b16 %v891, %v889
        %956 = vmatpush.bf16.msra.mxu0 %v906
        %957 = vmatpush.bf16.msra.mxu0 %v904
        %958 = vmatpush.bf16.msra.mxu0 %v902
        %959 = vmatpush.bf16.msra.mxu0 %v900
        %960 = vmatpush.bf16.msra.mxu0 %v898
        %961 = vmatpush.bf16.msra.mxu0 %v896
        %962 = vmatpush.bf16.msra.mxu0 %v894
        %963 = vmatpush.bf16.msra.mxu0 %v892
        %964 = vmatmul.bf16.gmra.mxu0 %v792
        %v965 = vpop.f32.mrf.mxu0
        %v966 = vadd.f32 0.0, %v965
        %v967 = vpop.f32.mrf.mxu0
        %968 = vdwg.mxu0
        %969 = vmatpush.bf16.msra.mxu0 %v922
        %970 = vmatpush.bf16.msra.mxu0 %v920
        %971 = vmatpush.bf16.msra.mxu0 %v918
        %972 = vmatpush.bf16.msra.mxu0 %v916
        %973 = vmatpush.bf16.msra.mxu0 %v914
        %974 = vmatpush.bf16.msra.mxu0 %v912
        %975 = vmatpush.bf16.msra.mxu0 %v910
        %976 = vmatpush.bf16.msra.mxu0 %v908
        %977 = vmatmul.bf16.gmra.mxu0 %v793
        %v978 = vpop.f32.mrf.mxu0
        %v979 = vadd.f32 %v966, %v978
        %v980 = vpop.f32.mrf.mxu0
        %981 = vdwg.mxu0
        %982 = vmatpush.bf16.msra.mxu0 %v907
        %983 = vmatpush.bf16.msra.mxu0 %v905
        %984 = vmatpush.bf16.msra.mxu0 %v903
        %985 = vmatpush.bf16.msra.mxu0 %v901
        %986 = vmatpush.bf16.msra.mxu0 %v899
        %987 = vmatpush.bf16.msra.mxu0 %v897
        %988 = vmatpush.bf16.msra.mxu0 %v895
        %989 = vmatpush.bf16.msra.mxu0 %v893
        %990 = vmatmul.bf16.gmra.mxu0 %v792
        %v991 = vpop.f32.mrf.mxu0
        %v992 = vadd.f32 0.0, %v991
        %v993 = vpop.f32.mrf.mxu0
        %994 = vdwg.mxu0
        %995 = vmatpush.bf16.msra.mxu0 %v923
        %996 = vmatpush.bf16.msra.mxu0 %v921
        %997 = vmatpush.bf16.msra.mxu0 %v919
        %998 = vmatpush.bf16.msra.mxu0 %v917
        %999 = vmatpush.bf16.msra.mxu0 %v915
        %1000 = vmatpush.bf16.msra.mxu0 %v913
        %1001 = vmatpush.bf16.msra.mxu0 %v911
        %1002 = vmatpush.bf16.msra.mxu0 %v909
        %1003 = vmatmul.bf16.gmra.mxu0 %v793
        %v1004 = vpop.f32.mrf.mxu0
        %v1005 = vadd.f32 %v992, %v1004
        %v1006 = vpop.f32.mrf.mxu0
        %1007 = vdwg.mxu0
        %v1012 = vunpack.c.l.b16 %v710
        %v1013 = vunpack.c.l.b16 %v711
        %v1014 = vunpack.c.l.b16 %v712
        %v1015 = vunpack.c.l.b16 %v713
        %v1016 = vsel %vm498, %v1014, %v1012
        %v1017 = vsel %vm498, %v1015, %v1013
        %v1018 = vpack.c.b16 %v1016, %v1016
        %v1019 = vpack.c.b16 %v1017, %v1017
        %v1054 = vunpack.c.l.b16 %v714
        %v1055 = vunpack.c.h.b16 %v714
        %v1056 = vunpack.c.l.b16 %v715
        %v1057 = vunpack.c.h.b16 %v715
        %v1058 = vunpack.c.l.b16 %v716
        %v1059 = vunpack.c.h.b16 %v716
        %v1060 = vunpack.c.l.b16 %v717
        %v1061 = vunpack.c.h.b16 %v717
        %v1062 = vunpack.c.l.b16 %v718
        %v1063 = vunpack.c.h.b16 %v718
        %v1064 = vunpack.c.l.b16 %v719
        %v1065 = vunpack.c.h.b16 %v719
        %v1066 = vunpack.c.l.b16 %v720
        %v1067 = vunpack.c.h.b16 %v720
        %v1068 = vunpack.c.l.b16 %v721
        %v1069 = vunpack.c.h.b16 %v721
        %v1070 = vunpack.c.l.b16 %v722
        %v1071 = vunpack.c.h.b16 %v722
        %v1072 = vunpack.c.l.b16 %v723
        %v1073 = vunpack.c.h.b16 %v723
        %v1074 = vunpack.c.l.b16 %v724
        %v1075 = vunpack.c.h.b16 %v724
        %v1076 = vunpack.c.l.b16 %v725
        %v1077 = vunpack.c.h.b16 %v725
        %v1078 = vunpack.c.l.b16 %v726
        %v1079 = vunpack.c.h.b16 %v726
        %v1080 = vunpack.c.l.b16 %v727
        %v1081 = vunpack.c.h.b16 %v727
        %v1082 = vunpack.c.l.b16 %v728
        %v1083 = vunpack.c.h.b16 %v728
        %v1084 = vunpack.c.l.b16 %v729
        %v1085 = vunpack.c.h.b16 %v729
        %v1086 = vunpack.c.l.b16 %v730
        %v1087 = vunpack.c.h.b16 %v730
        %v1088 = vunpack.c.l.b16 %v731
        %v1089 = vunpack.c.h.b16 %v731
        %v1090 = vunpack.c.l.b16 %v732
        %v1091 = vunpack.c.h.b16 %v732
        %v1092 = vunpack.c.l.b16 %v733
        %v1093 = vunpack.c.h.b16 %v733
        %v1094 = vunpack.c.l.b16 %v734
        %v1095 = vunpack.c.h.b16 %v734
        %v1096 = vunpack.c.l.b16 %v735
        %v1097 = vunpack.c.h.b16 %v735
        %v1098 = vunpack.c.l.b16 %v736
        %v1099 = vunpack.c.h.b16 %v736
        %v1100 = vunpack.c.l.b16 %v737
        %v1101 = vunpack.c.h.b16 %v737
        %v1102 = vunpack.c.l.b16 %v738
        %v1103 = vunpack.c.h.b16 %v738
        %v1104 = vunpack.c.l.b16 %v739
        %v1105 = vunpack.c.h.b16 %v739
        %v1106 = vunpack.c.l.b16 %v740
        %v1107 = vunpack.c.h.b16 %v740
        %v1108 = vunpack.c.l.b16 %v741
        %v1109 = vunpack.c.h.b16 %v741
        %v1110 = vunpack.c.l.b16 %v742
        %v1111 = vunpack.c.h.b16 %v742
        %v1112 = vunpack.c.l.b16 %v743
        %v1113 = vunpack.c.h.b16 %v743
        %v1114 = vunpack.c.l.b16 %v744
        %v1115 = vunpack.c.h.b16 %v744
        %v1116 = vunpack.c.l.b16 %v745
        %v1117 = vunpack.c.h.b16 %v745
        %v1118 = vpack.c.b16 %v1056, %v1054
        %v1119 = vpack.c.b16 %v1057, %v1055
        %v1120 = vpack.c.b16 %v1060, %v1058
        %v1121 = vpack.c.b16 %v1061, %v1059
        %v1122 = vpack.c.b16 %v1064, %v1062
        %v1123 = vpack.c.b16 %v1065, %v1063
        %v1124 = vpack.c.b16 %v1068, %v1066
        %v1125 = vpack.c.b16 %v1069, %v1067
        %v1126 = vpack.c.b16 %v1072, %v1070
        %v1127 = vpack.c.b16 %v1073, %v1071
        %v1128 = vpack.c.b16 %v1076, %v1074
        %v1129 = vpack.c.b16 %v1077, %v1075
        %v1130 = vpack.c.b16 %v1080, %v1078
        %v1131 = vpack.c.b16 %v1081, %v1079
        %v1132 = vpack.c.b16 %v1084, %v1082
        %v1133 = vpack.c.b16 %v1085, %v1083
        %v1134 = vpack.c.b16 %v1088, %v1086
        %v1135 = vpack.c.b16 %v1089, %v1087
        %v1136 = vpack.c.b16 %v1092, %v1090
        %v1137 = vpack.c.b16 %v1093, %v1091
        %v1138 = vpack.c.b16 %v1096, %v1094
        %v1139 = vpack.c.b16 %v1097, %v1095
        %v1140 = vpack.c.b16 %v1100, %v1098
        %v1141 = vpack.c.b16 %v1101, %v1099
        %v1142 = vpack.c.b16 %v1104, %v1102
        %v1143 = vpack.c.b16 %v1105, %v1103
        %v1144 = vpack.c.b16 %v1108, %v1106
        %v1145 = vpack.c.b16 %v1109, %v1107
        %v1146 = vpack.c.b16 %v1112, %v1110
        %v1147 = vpack.c.b16 %v1113, %v1111
        %v1148 = vpack.c.b16 %v1116, %v1114
        %v1149 = vpack.c.b16 %v1117, %v1115
        %1182 = vmatpush.bf16.msra.mxu0 %v1132
        %1183 = vmatpush.bf16.msra.mxu0 %v1130
        %1184 = vmatpush.bf16.msra.mxu0 %v1128
        %1185 = vmatpush.bf16.msra.mxu0 %v1126
        %1186 = vmatpush.bf16.msra.mxu0 %v1124
        %1187 = vmatpush.bf16.msra.mxu0 %v1122
        %1188 = vmatpush.bf16.msra.mxu0 %v1120
        %1189 = vmatpush.bf16.msra.mxu0 %v1118
        %1190 = vmatmul.bf16.gmra.mxu0 %v1018
        %v1191 = vpop.f32.mrf.mxu0
        %v1192 = vadd.f32 %v979, %v1191
        %v1193 = vpop.f32.mrf.mxu0
        %1194 = vdwg.mxu0
        %1195 = vmatpush.bf16.msra.mxu0 %v1148
        %1196 = vmatpush.bf16.msra.mxu0 %v1146
        %1197 = vmatpush.bf16.msra.mxu0 %v1144
        %1198 = vmatpush.bf16.msra.mxu0 %v1142
        %1199 = vmatpush.bf16.msra.mxu0 %v1140
        %1200 = vmatpush.bf16.msra.mxu0 %v1138
        %1201 = vmatpush.bf16.msra.mxu0 %v1136
        %1202 = vmatpush.bf16.msra.mxu0 %v1134
        %1203 = vmatmul.bf16.gmra.mxu0 %v1019
        %v1204 = vpop.f32.mrf.mxu0
        %v1205 = vadd.f32 %v1192, %v1204
        %v1206 = vpop.f32.mrf.mxu0
        %1207 = vdwg.mxu0
        %1208 = vmatpush.bf16.msra.mxu0 %v1133
        %1209 = vmatpush.bf16.msra.mxu0 %v1131
        %1210 = vmatpush.bf16.msra.mxu0 %v1129
        %1211 = vmatpush.bf16.msra.mxu0 %v1127
        %1212 = vmatpush.bf16.msra.mxu0 %v1125
        %1213 = vmatpush.bf16.msra.mxu0 %v1123
        %1214 = vmatpush.bf16.msra.mxu0 %v1121
        %1215 = vmatpush.bf16.msra.mxu0 %v1119
        %1216 = vmatmul.bf16.gmra.mxu0 %v1018
        %v1217 = vpop.f32.mrf.mxu0
        %v1218 = vadd.f32 %v1005, %v1217
        %v1219 = vpop.f32.mrf.mxu0
        %1220 = vdwg.mxu0
        %1221 = vmatpush.bf16.msra.mxu0 %v1149
        %1222 = vmatpush.bf16.msra.mxu0 %v1147
        %1223 = vmatpush.bf16.msra.mxu0 %v1145
        %1224 = vmatpush.bf16.msra.mxu0 %v1143
        %1225 = vmatpush.bf16.msra.mxu0 %v1141
        %1226 = vmatpush.bf16.msra.mxu0 %v1139
        %1227 = vmatpush.bf16.msra.mxu0 %v1137
        %1228 = vmatpush.bf16.msra.mxu0 %v1135
        %1229 = vmatmul.bf16.gmra.mxu0 %v1019
        %v1230 = vpop.f32.mrf.mxu0
        %v1231 = vadd.f32 %v1218, %v1230
        %v1232 = vpop.f32.mrf.mxu0
        %1233 = vdwg.mxu0
        %v1234 = vxor.u32 %v1205, 2147483648
        %v1235 = vxor.u32 %v1231, 2147483648
        %v1236 = vmul.f32 %v1234, 1.442695
        %v1237 = vpow.pop %v1236
        %v1238 = vmul.f32 %v1235, 1.442695
        %v1239 = vpow.pop %v1238
        %v1240 = vadd.f32 %v1237, 1.0
        %v1241 = vadd.f32 %v1239, 1.0
        %v1242 = vrcp.pop %v1240
        %v1243 = vmul.f32 %v1240, %v1242
        %v1244 = vsub.f32 1.0, %v1243
        %v1245 = vmul.f32 %v1242, %v1244
        %v1246 = vadd.f32 %v1242, %v1245
        %vm1247 = vweird.f32 %v1240
        %vm1248 = vweird.f32 %v1242
        %vm1249 = vmor %vm1247, %vm1248
        %v1250 = vsel %vm1249, %v1242, %v1246
        %v1251 = vand.u32 2147483647, %v1240
        %vm1252 = vcmp.eq.f32.partialorder %v1251, 8.507059e+37
        %v1253 = vand.u32 %v1240, 2147483648
        %v1254 = vor.u32 1.1754944e-38, %v1253
        %v1255 = vsel %vm1252, %v1254, %v1250
        %v1256 = vmul.f32 1.0, %v1255
        %v1257 = vrcp.pop %v1241
        %v1258 = vmul.f32 %v1241, %v1257
        %v1259 = vsub.f32 1.0, %v1258
        %v1260 = vmul.f32 %v1257, %v1259
        %v1261 = vadd.f32 %v1257, %v1260
        %vm1262 = vweird.f32 %v1241
        %vm1263 = vweird.f32 %v1257
        %vm1264 = vmor %vm1262, %vm1263
        %v1265 = vsel %vm1264, %v1257, %v1261
        %v1266 = vand.u32 2147483647, %v1241
        %vm1267 = vcmp.eq.f32.partialorder %v1266, 8.507059e+37
        %v1268 = vand.u32 %v1241, 2147483648
        %v1269 = vor.u32 1.1754944e-38, %v1268
        %v1270 = vsel %vm1267, %v1269, %v1265
        %v1271 = vmul.f32 1.0, %v1270
        %v1274 = vrot.slane %v1271, 7
        %vm1275 = vcmask 1040384
        %v1276 = vsel %vm1275, %v1256, %v1274
        %v1277 = vsel %vm498, %v1256, %v1274
        %v1278 = vrot.slane %v1277, 1
        %v1279 = vperm.slane %v1276, 0
        %v1280 = vperm.slane %v1276, 1
        %v1281 = vperm.slane %v1278, 0
        %v1282 = vperm.slane %v1278, 1
        %v1283 = vrot.slane %v1280, 4
        %v1284 = vrot.slane %v1282, 4
        %v1285 = vsel %vm458, %v1279, %v1283
        %v1286 = vsel %vm458, %v1281, %v1284
        %v1289 = vmul.f32 %v624, %v1285
        %v1290 = vmul.f32 %v625, %v1286
        %v1291 = vadd.f32 %v1289, %v443
        %v1292 = vadd.f32 %v1290, %v444
        %v1293 = vld [vmem:[%s7] sm:$0xff]
        %v1294 = vld [vmem:[%s8] sm:$0xff]
        %v1295 = vld [vmem:[%s9] sm:$0xff]
        %v1296 = vld [vmem:[%s10] sm:$0xff]
        %1298 = vset.pattern.permute.xlu0 0
        %1299 = vperm.xlu0 %1298, %v1296
        %v1300 = vpop.permute.xlu0 %1299
        %1303 = vst [vmem:[#allocation1] ss:$2 sm:$0xff] %v1291
        %v1304 = vld.sshfl [vmem:[#allocation1] sm:$0xff pattern:$0x75316420]
        %v1305 = vld.sshfl [vmem:[#allocation1 + $0x8] sm:$0xff pattern:$0x75316420]
        %v1307 = vsel %vm515, %v1293, 0
        %v1309 = vsel %vm458, %v1304, 0
        %v1311 = vsel %vm458, %v1305, 0
        %1313 = vmatpush.msra.mxu0 0.0
        %1314 = vmatpush.msra.mxu0 0.0
        %1315 = vmatpush.msra.mxu0 0.0
        %1316 = vmatpush.msra.mxu0 0.0
        %1317 = vmatpush.msra.mxu0 0.0
        %1318 = vmatpush.msra.mxu0 0.0
        %1319 = vmatpush.msra.mxu0 0.0
        %1320 = vmatpush.msra.mxu0 0.0
        %1321 = vmatpush.msra.mxu0 0.0
        %1322 = vmatpush.msra.mxu0 0.0
        %1323 = vmatpush.msra.mxu0 0.0
        %1324 = vmatpush.msra.mxu0 0.0
        %1325 = vmatpush.msra.mxu0 0.0
        %1326 = vmatpush.msra.mxu0 0.0
        %1327 = vmatpush.msra.mxu0 0.0
        %1328 = vmatpush.msra.mxu0 %v1309
        %1329 = vmatmul.f32.gmra.mxu0 %v1307
        %v1330 = vpop.f32.mrf.mxu0
        %v1331 = vadd.f32 %v1300, %v1330
        %1332 = vdwg.mxu0
        %1333 = vmatpush.msra.mxu0 0.0
        %1334 = vmatpush.msra.mxu0 0.0
        %1335 = vmatpush.msra.mxu0 0.0
        %1336 = vmatpush.msra.mxu0 0.0
        %1337 = vmatpush.msra.mxu0 0.0
        %1338 = vmatpush.msra.mxu0 0.0
        %1339 = vmatpush.msra.mxu0 0.0
        %1340 = vmatpush.msra.mxu0 0.0
        %1341 = vmatpush.msra.mxu0 0.0
        %1342 = vmatpush.msra.mxu0 0.0
        %1343 = vmatpush.msra.mxu0 0.0
        %1344 = vmatpush.msra.mxu0 0.0
        %1345 = vmatpush.msra.mxu0 0.0
        %1346 = vmatpush.msra.mxu0 0.0
        %1347 = vmatpush.msra.mxu0 0.0
        %1348 = vmatpush.msra.mxu0 %v1311
        %1349 = vmatmul.f32.gmra.mxu0 %v1307
        %v1350 = vpop.f32.mrf.mxu0
        %v1351 = vadd.f32 %v1300, %v1350
        %1352 = vdwg.mxu0
        %v1353 = vmax.f32 %v1331, 0.0
        %v1354 = vmax.f32 %v1351, 0.0
        %1355 = vset.pattern.permute.xlu0 1
        %1356 = vperm.xlu0 %1355, %v1296
        %v1357 = vpop.permute.xlu0 %1356
        %vm1359 = vcmask 64512
        %v1361 = vsel %vm1359, %v1294, 0
        %1363 = vmatpush.msra.mxu0 0.0
        %1364 = vmatpush.msra.mxu0 0.0
        %1365 = vmatpush.msra.mxu0 0.0
        %1366 = vmatpush.msra.mxu0 0.0
        %1367 = vmatpush.msra.mxu0 0.0
        %1368 = vmatpush.msra.mxu0 0.0
        %1369 = vmatpush.msra.mxu0 0.0
        %1370 = vmatpush.msra.mxu0 0.0
        %1371 = vmatpush.msra.mxu0 0.0
        %1372 = vmatpush.msra.mxu0 0.0
        %1373 = vmatpush.msra.mxu0 0.0
        %1374 = vmatpush.msra.mxu0 0.0
        %1375 = vmatpush.msra.mxu0 0.0
        %1376 = vmatpush.msra.mxu0 0.0
        %1377 = vmatpush.msra.mxu0 0.0
        %1378 = vmatpush.msra.mxu0 %v1353
        %1379 = vmatmul.f32.gmra.mxu0 %v1361
        %v1380 = vpop.f32.mrf.mxu0
        %v1381 = vadd.f32 %v1357, %v1380
        %1382 = vdwg.mxu0
        %1383 = vmatpush.msra.mxu0 0.0
        %1384 = vmatpush.msra.mxu0 0.0
        %1385 = vmatpush.msra.mxu0 0.0
        %1386 = vmatpush.msra.mxu0 0.0
        %1387 = vmatpush.msra.mxu0 0.0
        %1388 = vmatpush.msra.mxu0 0.0
        %1389 = vmatpush.msra.mxu0 0.0
        %1390 = vmatpush.msra.mxu0 0.0
        %1391 = vmatpush.msra.mxu0 0.0
        %1392 = vmatpush.msra.mxu0 0.0
        %1393 = vmatpush.msra.mxu0 0.0
        %1394 = vmatpush.msra.mxu0 0.0
        %1395 = vmatpush.msra.mxu0 0.0
        %1396 = vmatpush.msra.mxu0 0.0
        %1397 = vmatpush.msra.mxu0 0.0
        %1398 = vmatpush.msra.mxu0 %v1354
        %1399 = vmatmul.f32.gmra.mxu0 %v1361
        %v1400 = vpop.f32.mrf.mxu0
        %v1401 = vadd.f32 %v1357, %v1400
        %1402 = vdwg.mxu0
        %v1403 = vmax.f32 %v1381, 0.0
        %v1404 = vmax.f32 %v1401, 0.0
        %1405 = vset.pattern.permute.xlu0 2
        %1406 = vperm.xlu0 %1405, %v1296
        %v1407 = vpop.permute.xlu0 %1406
        %v1410 = vsel %vm1359, %v1295, 0
        %1412 = vmatpush.msra.mxu0 0.0
        %1413 = vmatpush.msra.mxu0 0.0
        %1414 = vmatpush.msra.mxu0 0.0
        %1415 = vmatpush.msra.mxu0 0.0
        %1416 = vmatpush.msra.mxu0 0.0
        %1417 = vmatpush.msra.mxu0 0.0
        %1418 = vmatpush.msra.mxu0 0.0
        %1419 = vmatpush.msra.mxu0 0.0
        %1420 = vmatpush.msra.mxu0 0.0
        %1421 = vmatpush.msra.mxu0 0.0
        %1422 = vmatpush.msra.mxu0 0.0
        %1423 = vmatpush.msra.mxu0 0.0
        %1424 = vmatpush.msra.mxu0 0.0
        %1425 = vmatpush.msra.mxu0 0.0
        %1426 = vmatpush.msra.mxu0 0.0
        %1427 = vmatpush.msra.mxu0 %v1403
        %1428 = vmatmul.f32.gmra.mxu0 %v1410
        %v1429 = vpop.f32.mrf.mxu0
        %v1430 = vadd.f32 %v1407, %v1429
        %1431 = vdwg.mxu0
        %1432 = vmatpush.msra.mxu0 0.0
        %1433 = vmatpush.msra.mxu0 0.0
        %1434 = vmatpush.msra.mxu0 0.0
        %1435 = vmatpush.msra.mxu0 0.0
        %1436 = vmatpush.msra.mxu0 0.0
        %1437 = vmatpush.msra.mxu0 0.0
        %1438 = vmatpush.msra.mxu0 0.0
        %1439 = vmatpush.msra.mxu0 0.0
        %1440 = vmatpush.msra.mxu0 0.0
        %1441 = vmatpush.msra.mxu0 0.0
        %1442 = vmatpush.msra.mxu0 0.0
        %1443 = vmatpush.msra.mxu0 0.0
        %1444 = vmatpush.msra.mxu0 0.0
        %1445 = vmatpush.msra.mxu0 0.0
        %1446 = vmatpush.msra.mxu0 0.0
        %1447 = vmatpush.msra.mxu0 %v1404
        %1448 = vmatmul.f32.gmra.mxu0 %v1410
        %v1449 = vpop.f32.mrf.mxu0
        %v1450 = vadd.f32 %v1407, %v1449
        %1451 = vdwg.mxu0
        %v1452 = vmax.f32 %v1430, 0.0
        %v1453 = vmax.f32 %v1450, 0.0
        %1454 = vst [vmem:[%s440] sm:$0xff] %v1452
        %1455 = vst [vmem:[%s440 + $0x8] sm:$0xff] %v1453
        %1457 = vst [vmem:[#allocation1] ss:$2 sm:$0xff] %v1292
        %v1458 = vld.sshfl [vmem:[#allocation1] sm:$0xff pattern:$0x75316420]
        %v1459 = vld.sshfl [vmem:[#allocation1 + $0x8] sm:$0xff pattern:$0x75316420]
        %v1460 = vsel %vm458, %v1458, 0
        %v1462 = vsel %vm458, %v1459, 0
        %1464 = vmatpush.msra.mxu0 0.0
        %1465 = vmatpush.msra.mxu0 0.0
        %1466 = vmatpush.msra.mxu0 0.0
        %1467 = vmatpush.msra.mxu0 0.0
        %1468 = vmatpush.msra.mxu0 0.0
        %1469 = vmatpush.msra.mxu0 0.0
        %1470 = vmatpush.msra.mxu0 0.0
        %1471 = vmatpush.msra.mxu0 0.0
        %1472 = vmatpush.msra.mxu0 0.0
        %1473 = vmatpush.msra.mxu0 0.0
        %1474 = vmatpush.msra.mxu0 0.0
        %1475 = vmatpush.msra.mxu0 0.0
        %1476 = vmatpush.msra.mxu0 0.0
        %1477 = vmatpush.msra.mxu0 0.0
        %1478 = vmatpush.msra.mxu0 0.0
        %1479 = vmatpush.msra.mxu0 %v1460
        %1480 = vmatmul.f32.gmra.mxu0 %v1307
        %v1481 = vpop.f32.mrf.mxu0
        %v1482 = vadd.f32 %v1300, %v1481
        %1483 = vdwg.mxu0
        %1484 = vmatpush.msra.mxu0 0.0
        %1485 = vmatpush.msra.mxu0 0.0
        %1486 = vmatpush.msra.mxu0 0.0
        %1487 = vmatpush.msra.mxu0 0.0
        %1488 = vmatpush.msra.mxu0 0.0
        %1489 = vmatpush.msra.mxu0 0.0
        %1490 = vmatpush.msra.mxu0 0.0
        %1491 = vmatpush.msra.mxu0 0.0
        %1492 = vmatpush.msra.mxu0 0.0
        %1493 = vmatpush.msra.mxu0 0.0
        %1494 = vmatpush.msra.mxu0 0.0
        %1495 = vmatpush.msra.mxu0 0.0
        %1496 = vmatpush.msra.mxu0 0.0
        %1497 = vmatpush.msra.mxu0 0.0
        %1498 = vmatpush.msra.mxu0 0.0
        %1499 = vmatpush.msra.mxu0 %v1462
        %1500 = vmatmul.f32.gmra.mxu0 %v1307
        %v1501 = vpop.f32.mrf.mxu0
        %v1502 = vadd.f32 %v1300, %v1501
        %1503 = vdwg.mxu0
        %v1504 = vmax.f32 %v1482, 0.0
        %v1505 = vmax.f32 %v1502, 0.0
        %1506 = vmatpush.msra.mxu0 0.0
        %1507 = vmatpush.msra.mxu0 0.0
        %1508 = vmatpush.msra.mxu0 0.0
        %1509 = vmatpush.msra.mxu0 0.0
        %1510 = vmatpush.msra.mxu0 0.0
        %1511 = vmatpush.msra.mxu0 0.0
        %1512 = vmatpush.msra.mxu0 0.0
        %1513 = vmatpush.msra.mxu0 0.0
        %1514 = vmatpush.msra.mxu0 0.0
        %1515 = vmatpush.msra.mxu0 0.0
        %1516 = vmatpush.msra.mxu0 0.0
        %1517 = vmatpush.msra.mxu0 0.0
        %1518 = vmatpush.msra.mxu0 0.0
        %1519 = vmatpush.msra.mxu0 0.0
        %1520 = vmatpush.msra.mxu0 0.0
        %1521 = vmatpush.msra.mxu0 %v1504
        %1522 = vmatmul.f32.gmra.mxu0 %v1361
        %v1523 = vpop.f32.mrf.mxu0
        %v1524 = vadd.f32 %v1357, %v1523
        %1525 = vdwg.mxu0
        %1526 = vmatpush.msra.mxu0 0.0
        %1527 = vmatpush.msra.mxu0 0.0
        %1528 = vmatpush.msra.mxu0 0.0
        %1529 = vmatpush.msra.mxu0 0.0
        %1530 = vmatpush.msra.mxu0 0.0
        %1531 = vmatpush.msra.mxu0 0.0
        %1532 = vmatpush.msra.mxu0 0.0
        %1533 = vmatpush.msra.mxu0 0.0
        %1534 = vmatpush.msra.mxu0 0.0
        %1535 = vmatpush.msra.mxu0 0.0
        %1536 = vmatpush.msra.mxu0 0.0
        %1537 = vmatpush.msra.mxu0 0.0
        %1538 = vmatpush.msra.mxu0 0.0
        %1539 = vmatpush.msra.mxu0 0.0
        %1540 = vmatpush.msra.mxu0 0.0
        %1541 = vmatpush.msra.mxu0 %v1505
        %1542 = vmatmul.f32.gmra.mxu0 %v1361
        %v1543 = vpop.f32.mrf.mxu0
        %v1544 = vadd.f32 %v1357, %v1543
        %1545 = vdwg.mxu0
        %v1546 = vmax.f32 %v1524, 0.0
        %v1547 = vmax.f32 %v1544, 0.0
        %1548 = vmatpush.msra.mxu0 0.0
        %1549 = vmatpush.msra.mxu0 0.0
        %1550 = vmatpush.msra.mxu0 0.0
        %1551 = vmatpush.msra.mxu0 0.0
        %1552 = vmatpush.msra.mxu0 0.0
        %1553 = vmatpush.msra.mxu0 0.0
        %1554 = vmatpush.msra.mxu0 0.0
        %1555 = vmatpush.msra.mxu0 0.0
        %1556 = vmatpush.msra.mxu0 0.0
        %1557 = vmatpush.msra.mxu0 0.0
        %1558 = vmatpush.msra.mxu0 0.0
        %1559 = vmatpush.msra.mxu0 0.0
        %1560 = vmatpush.msra.mxu0 0.0
        %1561 = vmatpush.msra.mxu0 0.0
        %1562 = vmatpush.msra.mxu0 0.0
        %1563 = vmatpush.msra.mxu0 %v1546
        %1564 = vmatmul.f32.gmra.mxu0 %v1410
        %v1565 = vpop.f32.mrf.mxu0
        %v1566 = vadd.f32 %v1407, %v1565
        %1567 = vdwg.mxu0
        %1568 = vmatpush.msra.mxu0 0.0
        %1569 = vmatpush.msra.mxu0 0.0
        %1570 = vmatpush.msra.mxu0 0.0
        %1571 = vmatpush.msra.mxu0 0.0
        %1572 = vmatpush.msra.mxu0 0.0
        %1573 = vmatpush.msra.mxu0 0.0
        %1574 = vmatpush.msra.mxu0 0.0
        %1575 = vmatpush.msra.mxu0 0.0
        %1576 = vmatpush.msra.mxu0 0.0
        %1577 = vmatpush.msra.mxu0 0.0
        %1578 = vmatpush.msra.mxu0 0.0
        %1579 = vmatpush.msra.mxu0 0.0
        %1580 = vmatpush.msra.mxu0 0.0
        %1581 = vmatpush.msra.mxu0 0.0
        %1582 = vmatpush.msra.mxu0 0.0
        %1583 = vmatpush.msra.mxu0 %v1547
        %1584 = vmatmul.f32.gmra.mxu0 %v1410
        %v1585 = vpop.f32.mrf.mxu0
        %v1586 = vadd.f32 %v1407, %v1585
        %1587 = vdwg.mxu0
        %v1588 = vmax.f32 %v1566, 0.0
        %v1589 = vmax.f32 %v1586, 0.0
        %s1590 = scalar_lea.vmem %s440, 16 [#allocation8]
        %1591 = vst [vmem:[%s1590] sm:$0xff] %v1588
        %1592 = vst [vmem:[%s1590 + $0x8] sm:$0xff] %v1589
        %s1593 = sand.u32 %s273, 1
        %s1594 = scalar_lea.sflag [#allocation4], %s1593
        %s1595 = sand.u32 %s273, 1
        %s1596 = smul.addr %s1595, 32
        %s1597 = scalar_lea.vmem [#allocation8], %s1596
        // Predicated region
        $region77: #{tpu_custom_call.1} parent=63 // pred_check
          %p1598 = pneg %p283
        $region78: #{tpu_custom_call.1} parent=63 // pred_check_branch
          %1600 = sbr.rel (%p1598) target = $region80
        $region79: #{tpu_custom_call.1} parent=63 // pred_region
          %s1601 = smul.u32 2, %s29
          %1603 = vsyncadd %s1594, 0
          %s1604 = smul.addr %s1601, 2
          %s1605 = smul.addr %s1604, 8
          %s1606 = scalar_lea.hbm %s11, %s1605
          %s1607 = sshll.u32 %s1597, 4
          %s1608 = int_to_ptr.vmem [resolvable:$true] %s1607
          %s1609 = sshll.u32 %s1606, 4
          %s1610 = int_to_ptr.hbm [resolvable:$true] %s1609
          %1615 = dma.vmem_to_hbm [thread:$0]  %s1608, 512, %s1610, %s1594, 256, 256, 16
        $region80: #{tpu_custom_call.1} parent=63 // pred_fallthru
          _
      $region64: #{tpu_custom_call.1} parent=5 // pred_fallthru
        _
      %p1616 = scmp.le.s32.totalorder 2, %s24
      // Predicated region
      $region81: #{tpu_custom_call.1} parent=5 // pred_check
        %p1617 = pneg %p1616
      $region82: #{tpu_custom_call.1} parent=5 // pred_check_branch
        %1619 = sbr.rel (%p1617) target = $region84
      $region83: #{tpu_custom_call.1} parent=5 // pred_region
        %s1620 = ssub.s32 %s24, 2
        // Predicated region
        $region85: #{tpu_custom_call.1} parent=83 // pred_check
          %p1621 = pneg %p289
        $region86: #{tpu_custom_call.1} parent=83 // pred_check_branch
          %1623 = sbr.rel (%p1621) target = $region88
        $region87: #{tpu_custom_call.1} parent=83 // pred_region
          %s1624 = sand.u32 %s274, 1
          %s1625 = scalar_lea.sflag [#allocation4], %s1624
          %s1626 = sand.u32 %s274, 1
          %s1627 = smul.addr %s1626, 32
          %s1628 = scalar_lea.vmem [#allocation8], %s1627
          %1630 = dma.done %s1625, 512
        $region88: #{tpu_custom_call.1} parent=83 // pred_fallthru
          _
      $region84: #{tpu_custom_call.1} parent=5 // pred_fallthru
        _
    $region6: #{tpu_custom_call.1} parent=1 // loop_footer
      %s28 = sadd.s32 1, %s24
    $region7: #{tpu_custom_call.1} parent=1 // loop_footer_branch
      %23 = sbr.rel target = $region3
    $region8: #{tpu_custom_call.1} parent=1 // loop_exit
      _
    %1631 = vsyncpa [#allocation3], 1
    %s1632 = scalar_lea.sflag [#allocation3], 1
    %1633 = vsyncpa %s1632, 1
    %1634 = vsyncpa [#allocation6], 1
    %1635 = vsyncpa [#allocation4], 1
    %s1636 = scalar_lea.sflag [#allocation4], 1
    %1637 = vsyncpa %s1636, 1

// kernel: tpu_custom_call.1
$region0: #{tpu_custom_call.1}
  #allocation0 [shape = 'u32[]', space=smem, size = 0x4, offset = 0x4, fixed_abs, tag = 'smem constant byte address 0x4 - core index']
  #allocation1 [shape = 'u32[72,128]{1,0:T(1,128)}', space=vmem, size = 0x9000, scoped, tag = 'internal scratch']
  %s0 = inlined_call_operand.hbm [shape: f32[4,4,256], index: 0, kind: input, shape index: {}]
  %s1 = inlined_call_operand.vmem [shape: f32[4,2], index: 1, kind: input, shape index: {}]
  %s2 = inlined_call_operand.vmem [shape: f32[1,2], index: 2, kind: input, shape index: {}]
  %s3 = inlined_call_operand.vmem [shape: f32[2,4], index: 3, kind: input, shape index: {}]
  %s4 = inlined_call_operand.vmem [shape: f32[1,4], index: 4, kind: input, shape index: {}]
  %s5 = inlined_call_operand.hbm [shape: bf16[256,256], index: 5, kind: input, shape index: {}]
  %s6 = inlined_call_operand.hbm [shape: bf16[256,256], index: 6, kind: input, shape index: {}]
  %s7 = inlined_call_operand.vmem [shape: f32[8,4], index: 7, kind: input, shape index: {}]
  %s8 = inlined_call_operand.vmem [shape: f32[8,8], index: 8, kind: input, shape index: {}]
  %s9 = inlined_call_operand.vmem [shape: f32[8,8], index: 9, kind: input, shape index: {}]
  %s10 = inlined_call_operand.vmem [shape: f32[8,3], index: 10, kind: input, shape index: {}]
  %s11 = inlined_call_operand.hbm [shape: f32[4,8,256], index: 11, kind: output, shape index: {}]
  %s12 = sld [smem:[#allocation0]]
  $region89: #{tpu_custom_call.1} parent=0
    _
  %s14 = ssub.s32 1, %s12
  %s15 = scalar_select 0, %s14, %s12
  $region1: #{tpu_custom_call.1} parent=0
    #allocation2 [shape = 'u8[16384]{0}', space=vmem, size = 0x4000, scoped, tag = 'input window, operand 0']
    #allocation3 [shape = 's32[2]{0}', space=sflag, size = 0x8, scoped, tag = 'scoped memory for tpu_custom_call.1']
    #allocation4 [shape = 's32[2]{0}', space=sflag, size = 0x8, scoped, tag = 'scoped memory for tpu_custom_call.1']
    #allocation5 [shape = 'u8[131072]{0}', space=vmem, size = 0x20000, scoped, tag = 'input window, operand 5, single buffered']
    #allocation6 [shape = 's32[1]{0}', space=sflag, size = 0x4, scoped, tag = 'scoped memory for tpu_custom_call.1']
    #allocation7 [shape = 'u8[131072]{0}', space=vmem, size = 0x20000, scoped, tag = 'input window, operand 6, single buffered']
    #allocation8 [shape = 'u8[32768]{0}', space=vmem, size = 0x8000, scoped, tag = 'output window, operand 0']
    %16 = vsyncpa [#allocation3], 0
    %s17 = scalar_lea.sflag [#allocation3], 1
    %18 = vsyncpa %s17, 0
    %19 = vsyncpa [#allocation6], 0
    %20 = vsyncpa [#allocation4], 0
    %s21 = scalar_lea.sflag [#allocation4], 1
    %22 = vsyncpa %s21, 0
    loop: start=0, step=1, limit=4
    $region2: #{tpu_custom_call.1} parent=1 // loop_pre_header
      _
    $region3: #{tpu_custom_call.1} parent=1 // loop_header
      %s24 = sphi 0, %s28
      %p25 = scmp.ge.s32.totalorder %s24, 4
      %s34 = sphi 0, %s36
      %s37 = sphi 0, %s34
      %s38 = sphi 0, %s37
      %s54 = sphi 0, %s38
      %s58 = sphi 0, %s58
      %s60 = sphi 0, %s58
      %s61 = sphi 0, %s60
      %s75 = sphi 0, %s61
      %s79 = sphi 0, %s79
      %s81 = sphi 0, %s79
      %s82 = sphi 0, %s81
      %s96 = sphi 0, %s82
      %s100 = sphi 0, %s100
      %s102 = sphi 0, %s100
      %s103 = sphi 0, %s102
      %s117 = sphi 0, %s103
      %s121 = sphi 0, %s121
      %s123 = sphi 0, %s121
      %s124 = sphi 0, %s123
      %s138 = sphi 0, %s124
      %s142 = sphi 0, %s142
      %s144 = sphi 0, %s142
      %s145 = sphi 0, %s144
      %s159 = sphi 0, %s145
      %s163 = sphi 0, %s163
      %s165 = sphi 0, %s163
      %s166 = sphi 0, %s165
      %s180 = sphi 0, %s166
      %s184 = sphi 0, %s184
      %s186 = sphi 0, %s184
      %s187 = sphi 0, %s186
      %s201 = sphi 0, %s187
      %s205 = sphi 0, %s205
      %s207 = sphi 0, %s205
      %s208 = sphi 0, %s207
      %s222 = sphi 0, %s208
      %s226 = sphi 0, %s226
      %s228 = sphi 0, %s226
      %s229 = sphi 0, %s228
      %s243 = sphi 0, %s229
      %s247 = sphi 0, %s247
      %s249 = sphi 0, %s247
      %s250 = sphi 0, %s249
      %s264 = sphi 0, %s250
      %s270 = sphi 0, %s272
      %s273 = sphi 0, %s270
      %s274 = sphi 0, %s273
      %s290 = sphi 0, %s274
    $region4: #{tpu_custom_call.1} parent=1 // loop_header_branch
      %27 = sbr.rel (%p25) target = $region8
    $region5: #{tpu_custom_call.1} parent=1 // loop_body
      %s29 = ssub.s32 %s24, 1
      %s30 = ssub.s32 %s24, 2
      %s31 = sadd.s32 %s24, 1
      %s32 = ssub.s32 %s24, %s31
      %p33 = scmp.eq.s32.totalorder %s32, 0
      %s35 = sadd.s32 %s34, 1
      %s36 = scalar_select %p33, %s34, %s35
      %p39 = pneg %p33
      %p40 = scmp.eq.s32.totalorder %s24, 1
      %p41 = por %p39, %p40
      %p42 = scmp.ne.s32.totalorder %s34, %s37
      %p43 = scmp.eq.s32.totalorder %s24, 0
      %p44 = por %p42, %p43
      %p45 = scmp.ne.s32.totalorder %s34, %s37
      %p46 = scmp.eq.s32.totalorder %s29, 1
      %p47 = por %p45, %p46
      %p48 = scmp.ne.s32.totalorder %s37, %s38
      %p49 = scmp.eq.s32.totalorder %s29, 0
      %p50 = por %p48, %p49
      %p51 = scmp.ne.s32.totalorder %s37, %s38
      %p52 = scmp.eq.s32.totalorder %s30, 1
      %p53 = por %p51, %p52
      %p55 = scmp.ne.s32.totalorder %s38, %s54
      %p56 = scmp.eq.s32.totalorder %s30, 0
      %p57 = por %p55, %p56
      %s59 = sadd.s32 %s58, 1
      %p62 = scmp.eq.s32.totalorder %s24, 1
      %p63 = scmp.ne.s32.totalorder %s58, %s60
      %p64 = scmp.eq.s32.totalorder %s24, 0
      %p65 = por %p63, %p64
      %p66 = scmp.ne.s32.totalorder %s58, %s60
      %p67 = scmp.eq.s32.totalorder %s29, 1
      %p68 = por %p66, %p67
      %p69 = scmp.ne.s32.totalorder %s60, %s61
      %p70 = scmp.eq.s32.totalorder %s29, 0
      %p71 = por %p69, %p70
      %p72 = scmp.ne.s32.totalorder %s60, %s61
      %p73 = scmp.eq.s32.totalorder %s30, 1
      %p74 = por %p72, %p73
      %p76 = scmp.ne.s32.totalorder %s61, %s75
      %p77 = scmp.eq.s32.totalorder %s30, 0
      %p78 = por %p76, %p77
      %s80 = sadd.s32 %s79, 1
      %p83 = scmp.eq.s32.totalorder %s24, 1
      %p84 = scmp.ne.s32.totalorder %s79, %s81
      %p85 = scmp.eq.s32.totalorder %s24, 0
      %p86 = por %p84, %p85
      %p87 = scmp.ne.s32.totalorder %s79, %s81
      %p88 = scmp.eq.s32.totalorder %s29, 1
      %p89 = por %p87, %p88
      %p90 = scmp.ne.s32.totalorder %s81, %s82
      %p91 = scmp.eq.s32.totalorder %s29, 0
      %p92 = por %p90, %p91
      %p93 = scmp.ne.s32.totalorder %s81, %s82
      %p94 = scmp.eq.s32.totalorder %s30, 1
      %p95 = por %p93, %p94
      %p97 = scmp.ne.s32.totalorder %s82, %s96
      %p98 = scmp.eq.s32.totalorder %s30, 0
      %p99 = por %p97, %p98
      %s101 = sadd.s32 %s100, 1
      %p104 = scmp.eq.s32.totalorder %s24, 1
      %p105 = scmp.ne.s32.totalorder %s100, %s102
      %p106 = scmp.eq.s32.totalorder %s24, 0
      %p107 = por %p105, %p106
      %p108 = scmp.ne.s32.totalorder %s100, %s102
      %p109 = scmp.eq.s32.totalorder %s29, 1
      %p110 = por %p108, %p109
      %p111 = scmp.ne.s32.totalorder %s102, %s103
      %p112 = scmp.eq.s32.totalorder %s29, 0
      %p113 = por %p111, %p112
      %p114 = scmp.ne.s32.totalorder %s102, %s103
      %p115 = scmp.eq.s32.totalorder %s30, 1
      %p116 = por %p114, %p115
      %p118 = scmp.ne.s32.totalorder %s103, %s117
      %p119 = scmp.eq.s32.totalorder %s30, 0
      %p120 = por %p118, %p119
      %s122 = sadd.s32 %s121, 1
      %p125 = scmp.eq.s32.totalorder %s24, 1
      %p126 = scmp.ne.s32.totalorder %s121, %s123
      %p127 = scmp.eq.s32.totalorder %s24, 0
      %p128 = por %p126, %p127
      %p129 = scmp.ne.s32.totalorder %s121, %s123
      %p130 = scmp.eq.s32.totalorder %s29, 1
      %p131 = por %p129, %p130
      %p132 = scmp.ne.s32.totalorder %s123, %s124
      %p133 = scmp.eq.s32.totalorder %s29, 0
      %p134 = por %p132, %p133
      %p135 = scmp.ne.s32.totalorder %s123, %s124
      %p136 = scmp.eq.s32.totalorder %s30, 1
      %p137 = por %p135, %p136
      %p139 = scmp.ne.s32.totalorder %s124, %s138
      %p140 = scmp.eq.s32.totalorder %s30, 0
      %p141 = por %p139, %p140
      %s143 = sadd.s32 %s142, 1
      %p146 = scmp.eq.s32.totalorder %s24, 1
      %p147 = scmp.ne.s32.totalorder %s142, %s144
      %p148 = scmp.eq.s32.totalorder %s24, 0
      %p149 = por %p147, %p148
      %p150 = scmp.ne.s32.totalorder %s142, %s144
      %p151 = scmp.eq.s32.totalorder %s29, 1
      %p152 = por %p150, %p151
      %p153 = scmp.ne.s32.totalorder %s144, %s145
      %p154 = scmp.eq.s32.totalorder %s29, 0
      %p155 = por %p153, %p154
      %p156 = scmp.ne.s32.totalorder %s144, %s145
      %p157 = scmp.eq.s32.totalorder %s30, 1
      %p158 = por %p156, %p157
      %p160 = scmp.ne.s32.totalorder %s145, %s159
      %p161 = scmp.eq.s32.totalorder %s30, 0
      %p162 = por %p160, %p161
      %s164 = sadd.s32 %s163, 1
      %p167 = scmp.eq.s32.totalorder %s24, 1
      %p168 = scmp.ne.s32.totalorder %s163, %s165
      %p169 = scmp.eq.s32.totalorder %s24, 0
      %p170 = por %p168, %p169
      %p171 = scmp.ne.s32.totalorder %s163, %s165
      %p172 = scmp.eq.s32.totalorder %s29, 1
      %p173 = por %p171, %p172
      %p174 = scmp.ne.s32.totalorder %s165, %s166
      %p175 = scmp.eq.s32.totalorder %s29, 0
      %p176 = por %p174, %p175
      %p177 = scmp.ne.s32.totalorder %s165, %s166
      %p178 = scmp.eq.s32.totalorder %s30, 1
      %p179 = por %p177, %p178
      %p181 = scmp.ne.s32.totalorder %s166, %s180
      %p182 = scmp.eq.s32.totalorder %s30, 0
      %p183 = por %p181, %p182
      %s185 = sadd.s32 %s184, 1
      %p188 = scmp.eq.s32.totalorder %s24, 1
      %p189 = scmp.ne.s32.totalorder %s184, %s186
      %p190 = scmp.eq.s32.totalorder %s24, 0
      %p191 = por %p189, %p190
      %p192 = scmp.ne.s32.totalorder %s184, %s186
      %p193 = scmp.eq.s32.totalorder %s29, 1
      %p194 = por %p192, %p193
      %p195 = scmp.ne.s32.totalorder %s186, %s187
      %p196 = scmp.eq.s32.totalorder %s29, 0
      %p197 = por %p195, %p196
      %p198 = scmp.ne.s32.totalorder %s186, %s187
      %p199 = scmp.eq.s32.totalorder %s30, 1
      %p200 = por %p198, %p199
      %p202 = scmp.ne.s32.totalorder %s187, %s201
      %p203 = scmp.eq.s32.totalorder %s30, 0
      %p204 = por %p202, %p203
      %s206 = sadd.s32 %s205, 1
      %p209 = scmp.eq.s32.totalorder %s24, 1
      %p210 = scmp.ne.s32.totalorder %s205, %s207
      %p211 = scmp.eq.s32.totalorder %s24, 0
      %p212 = por %p210, %p211
      %p213 = scmp.ne.s32.totalorder %s205, %s207
      %p214 = scmp.eq.s32.totalorder %s29, 1
      %p215 = por %p213, %p214
      %p216 = scmp.ne.s32.totalorder %s207, %s208
      %p217 = scmp.eq.s32.totalorder %s29, 0
      %p218 = por %p216, %p217
      %p219 = scmp.ne.s32.totalorder %s207, %s208
      %p220 = scmp.eq.s32.totalorder %s30, 1
      %p221 = por %p219, %p220
      %p223 = scmp.ne.s32.totalorder %s208, %s222
      %p224 = scmp.eq.s32.totalorder %s30, 0
      %p225 = por %p223, %p224
      %s227 = sadd.s32 %s226, 1
      %p230 = scmp.eq.s32.totalorder %s24, 1
      %p231 = scmp.ne.s32.totalorder %s226, %s228
      %p232 = scmp.eq.s32.totalorder %s24, 0
      %p233 = por %p231, %p232
      %p234 = scmp.ne.s32.totalorder %s226, %s228
      %p235 = scmp.eq.s32.totalorder %s29, 1
      %p236 = por %p234, %p235
      %p237 = scmp.ne.s32.totalorder %s228, %s229
      %p238 = scmp.eq.s32.totalorder %s29, 0
      %p239 = por %p237, %p238
      %p240 = scmp.ne.s32.totalorder %s228, %s229
      %p241 = scmp.eq.s32.totalorder %s30, 1
      %p242 = por %p240, %p241
      %p244 = scmp.ne.s32.totalorder %s229, %s243
      %p245 = scmp.eq.s32.totalorder %s30, 0
      %p246 = por %p244, %p245
      %s248 = sadd.s32 %s247, 1
      %p251 = scmp.eq.s32.totalorder %s24, 1
      %p252 = scmp.ne.s32.totalorder %s247, %s249
      %p253 = scmp.eq.s32.totalorder %s24, 0
      %p254 = por %p252, %p253
      %p255 = scmp.ne.s32.totalorder %s247, %s249
      %p256 = scmp.eq.s32.totalorder %s29, 1
      %p257 = por %p255, %p256
      %p258 = scmp.ne.s32.totalorder %s249, %s250
      %p259 = scmp.eq.s32.totalorder %s29, 0
      %p260 = por %p258, %p259
      %p261 = scmp.ne.s32.totalorder %s249, %s250
      %p262 = scmp.eq.s32.totalorder %s30, 1
      %p263 = por %p261, %p262
      %p265 = scmp.ne.s32.totalorder %s250, %s264
      %p266 = scmp.eq.s32.totalorder %s30, 0
      %p267 = por %p265, %p266
      %s268 = ssub.s32 %s24, %s31
      %p269 = scmp.eq.s32.totalorder %s268, 0
      %s271 = sadd.s32 %s270, 1
      %s272 = scalar_select %p269, %s270, %s271
      %p275 = pneg %p269
      %p276 = scmp.eq.s32.totalorder %s24, 1
      %p277 = por %p275, %p276
      %p278 = scmp.ne.s32.totalorder %s270, %s273
      %p279 = scmp.eq.s32.totalorder %s24, 0
      %p280 = por %p278, %p279
      %p281 = scmp.ne.s32.totalorder %s270, %s273
      %p282 = scmp.eq.s32.totalorder %s29, 1
      %p283 = por %p281, %p282
      %p284 = scmp.ne.s32.totalorder %s273, %s274
      %p285 = scmp.eq.s32.totalorder %s29, 0
      %p286 = por %p284, %p285
      %p287 = scmp.ne.s32.totalorder %s273, %s274
      %p288 = scmp.eq.s32.totalorder %s30, 1
      %p289 = por %p287, %p288
      %p291 = scmp.ne.s32.totalorder %s274, %s290
      %p292 = scmp.eq.s32.totalorder %s30, 0
      %p293 = por %p291, %p292
      %p294 = scmp.le.s32.totalorder 1, %s24
      %p295 = scmp.lt.s32.totalorder %s24, 3
      %p296 = pnand %p294, %p295
      %p297 = pneg %p296
      // Predicated region
      $region9: #{tpu_custom_call.1} parent=5 // pred_check
        _
      $region10: #{tpu_custom_call.1} parent=5 // pred_check_branch
        %299 = sbr.rel (%p296) target = $region12
      $region11: #{tpu_custom_call.1} parent=5 // pred_region
        %s300 = ssub.s32 %s24, 1
        // Predicated region
        $region13: #{tpu_custom_call.1} parent=11 // pred_check
          %p301 = pneg %p71
        $region14: #{tpu_custom_call.1} parent=11 // pred_check_branch
          %303 = sbr.rel (%p301) target = $region16
        $region15: #{tpu_custom_call.1} parent=11 // pred_region
          _
        $region16: #{tpu_custom_call.1} parent=11 // pred_fallthru
          _
        // Predicated region
        $region17: #{tpu_custom_call.1} parent=11 // pred_check
          %p304 = pneg %p92
        $region18: #{tpu_custom_call.1} parent=11 // pred_check_branch
          %306 = sbr.rel (%p304) target = $region20
        $region19: #{tpu_custom_call.1} parent=11 // pred_region
          _
        $region20: #{tpu_custom_call.1} parent=11 // pred_fallthru
          _
        // Predicated region
        $region21: #{tpu_custom_call.1} parent=11 // pred_check
          %p307 = pneg %p113
        $region22: #{tpu_custom_call.1} parent=11 // pred_check_branch
          %309 = sbr.rel (%p307) target = $region24
        $region23: #{tpu_custom_call.1} parent=11 // pred_region
          _
        $region24: #{tpu_custom_call.1} parent=11 // pred_fallthru
          _
        // Predicated region
        $region25: #{tpu_custom_call.1} parent=11 // pred_check
          %p310 = pneg %p134
        $region26: #{tpu_custom_call.1} parent=11 // pred_check_branch
          %312 = sbr.rel (%p310) target = $region28
        $region27: #{tpu_custom_call.1} parent=11 // pred_region
          _
        $region28: #{tpu_custom_call.1} parent=11 // pred_fallthru
          _
        // Predicated region
        $region29: #{tpu_custom_call.1} parent=11 // pred_check
          %p313 = pneg %p155
        $region30: #{tpu_custom_call.1} parent=11 // pred_check_branch
          %315 = sbr.rel (%p313) target = $region32
        $region31: #{tpu_custom_call.1} parent=11 // pred_region
          %317 = vsyncadd [#allocation6], 0
          %s318 = sshll.u32 %s5, 4
          %s319 = int_to_ptr.hbm [resolvable:$true] %s318
          %s320 = sshll.u32 [#allocation5], 4
          %s321 = int_to_ptr.vmem [resolvable:$true] %s320
          %326 = dma.hbm_to_vmem [thread:$0]  %s319, 4096, %s321, [#allocation6], 128, 128, 8
        $region32: #{tpu_custom_call.1} parent=11 // pred_fallthru
          _
        // Predicated region
        $region33: #{tpu_custom_call.1} parent=11 // pred_check
          %p327 = pneg %p176
        $region34: #{tpu_custom_call.1} parent=11 // pred_check_branch
          %329 = sbr.rel (%p327) target = $region36
        $region35: #{tpu_custom_call.1} parent=11 // pred_region
          %331 = vsyncadd [#allocation6], 0
          %s332 = sshll.u32 %s6, 4
          %s333 = int_to_ptr.hbm [resolvable:$true] %s332
          %s334 = sshll.u32 [#allocation7], 4
          %s335 = int_to_ptr.vmem [resolvable:$true] %s334
          %340 = dma.hbm_to_vmem [thread:$0]  %s333, 4096, %s335, [#allocation6], 128, 128, 8
        $region36: #{tpu_custom_call.1} parent=11 // pred_fallthru
          _
        // Predicated region
        $region37: #{tpu_custom_call.1} parent=11 // pred_check
          %p341 = pneg %p197
        $region38: #{tpu_custom_call.1} parent=11 // pred_check_branch
          %343 = sbr.rel (%p341) target = $region40
        $region39: #{tpu_custom_call.1} parent=11 // pred_region
          _
        $region40: #{tpu_custom_call.1} parent=11 // pred_fallthru
          _
        // Predicated region
        $region41: #{tpu_custom_call.1} parent=11 // pred_check
          %p344 = pneg %p218
        $region42: #{tpu_custom_call.1} parent=11 // pred_check_branch
          %346 = sbr.rel (%p344) target = $region44
        $region43: #{tpu_custom_call.1} parent=11 // pred_region
          _
        $region44: #{tpu_custom_call.1} parent=11 // pred_fallthru
          _
        // Predicated region
        $region45: #{tpu_custom_call.1} parent=11 // pred_check
          %p347 = pneg %p239
        $region46: #{tpu_custom_call.1} parent=11 // pred_check_branch
          %349 = sbr.rel (%p347) target = $region48
        $region47: #{tpu_custom_call.1} parent=11 // pred_region
          _
        $region48: #{tpu_custom_call.1} parent=11 // pred_fallthru
          _
        // Predicated region
        $region49: #{tpu_custom_call.1} parent=11 // pred_check
          %p350 = pneg %p260
        $region50: #{tpu_custom_call.1} parent=11 // pred_check_branch
          %352 = sbr.rel (%p350) target = $region52
        $region51: #{tpu_custom_call.1} parent=11 // pred_region
          _
        $region52: #{tpu_custom_call.1} parent=11 // pred_fallthru
          _
      $region12: #{tpu_custom_call.1} parent=5 // pred_fallthru
        _
      %p353 = scmp.lt.s32.totalorder %s24, 2
      // Predicated region
      $region53: #{tpu_custom_call.1} parent=5 // pred_check
        %p354 = pneg %p353
      $region54: #{tpu_custom_call.1} parent=5 // pred_check_branch
        %356 = sbr.rel (%p354) target = $region56
      $region55: #{tpu_custom_call.1} parent=5 // pred_region
        // Predicated region
        $region57: #{tpu_custom_call.1} parent=55 // pred_check
          %p357 = pneg %p44
        $region58: #{tpu_custom_call.1} parent=55 // pred_check_branch
          %359 = sbr.rel (%p357) target = $region60
        $region59: #{tpu_custom_call.1} parent=55 // pred_region
          %s360 = sand.u32 %s34, 1
          %s361 = scalar_lea.sflag [#allocation3], %s360
          %s362 = sand.u32 %s34, 1
          %s363 = smul.addr %s362, 16
          %s364 = scalar_lea.vmem [#allocation2], %s363
          %s365 = smul.u32 2, %s24
          %367 = vsyncadd %s361, 0
          %s368 = smul.addr %s365, 2
          %s369 = smul.addr %s368, 4
          %s370 = scalar_lea.hbm %s0, %s369
          %s371 = sshll.u32 %s370, 4
          %s372 = int_to_ptr.hbm [resolvable:$true] %s371
          %s373 = sshll.u32 %s364, 4
          %s374 = int_to_ptr.vmem [resolvable:$true] %s373
          %379 = dma.hbm_to_vmem [thread:$0]  %s372, 256, %s374, %s361, 128, 128, 8
        $region60: #{tpu_custom_call.1} parent=55 // pred_fallthru
          _
      $region56: #{tpu_custom_call.1} parent=5 // pred_fallthru
        _
      %p380 = scmp.le.s32.totalorder 1, %s24
      %p381 = scmp.lt.s32.totalorder %s24, 3
      %p382 = pnand %p380, %p381
      %p383 = pneg %p382
      // Predicated region
      $region61: #{tpu_custom_call.1} parent=5 // pred_check
        _
      $region62: #{tpu_custom_call.1} parent=5 // pred_check_branch
        %385 = sbr.rel (%p382) target = $region64
      $region63: #{tpu_custom_call.1} parent=5 // pred_region
        %s386 = ssub.s32 %s24, 1
        %s387 = sand.u32 %s37, 1
        %s388 = scalar_lea.sflag [#allocation3], %s387
        %s389 = sand.u32 %s37, 1
        %s390 = smul.addr %s389, 16
        %s391 = scalar_lea.vmem [#allocation2], %s390
        // Predicated region
        $region65: #{tpu_custom_call.1} parent=63 // pred_check
          %p392 = pneg %p50
        $region66: #{tpu_custom_call.1} parent=63 // pred_check_branch
          %394 = sbr.rel (%p392) target = $region68
        $region67: #{tpu_custom_call.1} parent=63 // pred_region
          %396 = dma.done %s388, 256
        $region68: #{tpu_custom_call.1} parent=63 // pred_fallthru
          _
        // Predicated region
        $region69: #{tpu_custom_call.1} parent=63 // pred_check
          %p397 = pneg %p155
        $region70: #{tpu_custom_call.1} parent=63 // pred_check_branch
          %399 = sbr.rel (%p397) target = $region72
        $region71: #{tpu_custom_call.1} parent=63 // pred_region
          %401 = dma.done [#allocation6], 4096
        $region72: #{tpu_custom_call.1} parent=63 // pred_fallthru
          _
        // Predicated region
        $region73: #{tpu_custom_call.1} parent=63 // pred_check
          %p402 = pneg %p176
        $region74: #{tpu_custom_call.1} parent=63 // pred_check_branch
          %404 = sbr.rel (%p402) target = $region76
        $region75: #{tpu_custom_call.1} parent=63 // pred_region
          %406 = dma.done [#allocation6], 4096
        $region76: #{tpu_custom_call.1} parent=63 // pred_fallthru
          _
        %s407 = sand.u32 %s37, 1
        %s408 = scalar_lea.sflag [#allocation3], %s407
        %s409 = sand.u32 %s37, 1
        %s410 = smul.addr %s409, 16
        %s411 = scalar_lea.vmem [#allocation2], %s410
        %p412 = pneg %p50
        %p413 = pneg %p47
        %p414 = pneg %p71
        %p415 = pneg %p68
        %p416 = pneg %p92
        %p417 = pneg %p89
        %p418 = pneg %p113
        %p419 = pneg %p110
        %p420 = pneg %p134
        %p421 = pneg %p131
        %p422 = pneg %p155
        %p423 = pneg %p152
        %p424 = pneg %p176
        %p425 = pneg %p173
        %p426 = pneg %p197
        %p427 = pneg %p194
        %p428 = pneg %p218
        %p429 = pneg %p215
        %p430 = pneg %p239
        %p431 = pneg %p236
        %p432 = pneg %p260
        %p433 = pneg %p257
        %p434 = pneg %p286
        %p435 = pneg %p283
        %s436 = sand.u32 %s273, 1
        %s437 = scalar_lea.sflag [#allocation4], %s436
        %s438 = sand.u32 %s273, 1
        %s439 = smul.addr %s438, 32
        %s440 = scalar_lea.vmem [#allocation8], %s439
        %s441 = smul.u32 2, %s29
        %s442 = smul.u32 2, %s29
        %v443 = vld [vmem:[%s391] sm:$0xff]
        %v444 = vld [vmem:[%s391 + $0x8] sm:$0xff]
        %447 = vst [vmem:[#allocation1] ss:$2 sm:$0xff] %v443
        %v448 = vld.sshfl [vmem:[#allocation1] sm:$0xff pattern:$0x75316420]
        %v449 = vld.sshfl [vmem:[#allocation1 + $0x8] sm:$0xff pattern:$0x75316420]
        %s450 = scalar_lea.vmem [#allocation1], 16
        %451 = vst [vmem:[%s450] ss:$2 sm:$0xff] %v444
        %v452 = vld.sshfl [vmem:[#allocation1 + $0x10] sm:$0xff pattern:$0x75316420]
        %v453 = vld.sshfl [vmem:[#allocation1 + $0x18] sm:$0xff pattern:$0x75316420]
        %vm458 = vcmask 1043456
        %v459 = vsel %vm458, %v448, -inf
        %v460 = vsel %vm458, %v449, -inf
        %v461 = vmax.f32 %v459, %v460
        %462 = vmax.xlane.f32.xlu0 %v461
        %v463 = vpop.xlane.xlu0 %462
        %v464 = vsel %vm458, %v452, -inf
        %v465 = vsel %vm458, %v453, -inf
        %v466 = vmax.f32 %v464, %v465
        %467 = vmax.xlane.f32.xlu0 %v466
        %v468 = vpop.xlane.xlu0 %467
        %469 = vst [vmem:[#allocation1] ss:$2 sm:$0xff] %v443
        %v470 = vld.sshfl [vmem:[#allocation1] sm:$0xff pattern:$0x75316420]
        %v471 = vld.sshfl [vmem:[#allocation1 + $0x8] sm:$0xff pattern:$0x75316420]
        %s472 = scalar_lea.vmem [#allocation1], 16
        %473 = vst [vmem:[%s472] ss:$2 sm:$0xff] %v444
        %v474 = vld.sshfl [vmem:[#allocation1 + $0x10] sm:$0xff pattern:$0x75316420]
        %v475 = vld.sshfl [vmem:[#allocation1 + $0x18] sm:$0xff pattern:$0x75316420]
        %v480 = vsel %vm458, %v470, 0.0
        %v481 = vsel %vm458, %v471, 0.0
        %v482 = vadd.f32 %v480, %v481
        %483 = vadd.xlane.f32.xlu0 %v482
        %v484 = vpop.xlane.xlu0 %483
        %v485 = vsel %vm458, %v474, 0.0
        %v486 = vsel %vm458, %v475, 0.0
        %v487 = vadd.f32 %v485, %v486
        %488 = vadd.xlane.f32.xlu0 %v487
        %v489 = vpop.xlane.xlu0 %488
        %v490 = vmul.f32 %v484, 0.00390625
        %v491 = vmul.f32 %v489, 0.00390625
        %v494 = vlaneseq
        %v495 = vand.u32 %v494, 127
        %v496 = vperm.slane %v463, %v495
        %v497 = vperm.slane %v468, %v495
        %vm498 = vcmask 1041409
        %v499 = vsel %vm498, %v497, %v496
        %v503 = vperm.slane %v490, %v495
        %v504 = vperm.slane %v491, %v495
        %vm505 = vcmask 1043459
        %v506 = vsel %vm505, %v504, %v503
        %vm508 = vcmask 1041408
        %v509 = vsel %vm508, %v499, %v506
        %v510 = vld [vmem:[%s1] sm:$0xf]
        %v511 = vld [vmem:[%s2] sm:$0x1]
        %v513 = vperm.slane %v511, 0
        %vm515 = vcmask 31744
        %v517 = vsel %vm515, %v509, 0
        %v520 = vsel %vm458, %v510, 0
        %522 = vmatpush.msra.mxu0 0.0
        %523 = vmatpush.msra.mxu0 0.0
        %524 = vmatpush.msra.mxu0 0.0
        %525 = vmatpush.msra.mxu0 0.0
        %526 = vmatpush.msra.mxu0 0.0
        %527 = vmatpush.msra.mxu0 0.0
        %528 = vmatpush.msra.mxu0 0.0
        %529 = vmatpush.msra.mxu0 0.0
        %530 = vmatpush.msra.mxu0 0.0
        %531 = vmatpush.msra.mxu0 0.0
        %532 = vmatpush.msra.mxu0 0.0
        %533 = vmatpush.msra.mxu0 0.0
        %534 = vmatpush.msra.mxu0 0.0
        %535 = vmatpush.msra.mxu0 0.0
        %536 = vmatpush.msra.mxu0 0.0
        %537 = vmatpush.msra.mxu0 %v520
        %538 = vmatmul.f32.gmra.mxu0 %v517
        %v539 = vpop.f32.mrf.mxu0
        %v540 = vadd.f32 %v513, %v539
        %541 = vdwg.mxu0
        %v542 = vmax.f32 %v540, 0.0
        %v543 = vld [vmem:[%s3] sm:$0x3]
        %v544 = vld [vmem:[%s4] sm:$0x1]
        %v546 = vperm.slane %v544, 0
        %vm548 = vcmask 15360
        %v550 = vsel %vm548, %v542, 0
        %v553 = vsel %vm508, %v543, 0
        %555 = vmatpush.msra.mxu0 0.0
        %556 = vmatpush.msra.mxu0 0.0
        %557 = vmatpush.msra.mxu0 0.0
        %558 = vmatpush.msra.mxu0 0.0
        %559 = vmatpush.msra.mxu0 0.0
        %560 = vmatpush.msra.mxu0 0.0
        %561 = vmatpush.msra.mxu0 0.0
        %562 = vmatpush.msra.mxu0 0.0
        %563 = vmatpush.msra.mxu0 0.0
        %564 = vmatpush.msra.mxu0 0.0
        %565 = vmatpush.msra.mxu0 0.0
        %566 = vmatpush.msra.mxu0 0.0
        %567 = vmatpush.msra.mxu0 0.0
        %568 = vmatpush.msra.mxu0 0.0
        %569 = vmatpush.msra.mxu0 0.0
        %570 = vmatpush.msra.mxu0 %v553
        %571 = vmatmul.f32.gmra.mxu0 %v550
        %v572 = vpop.f32.mrf.mxu0
        %v573 = vadd.f32 %v546, %v572
        %574 = vdwg.mxu0
        %v576 = vrot.slane %v573, 2
        %v578 = vadd.f32 %v573, %v576
        %v579 = vxor.u32 %v578, 2147483648
        %v580 = vmul.f32 %v579, 1.442695
        %v581 = vpow.pop %v580
        %v582 = vadd.f32 %v581, 1.0
        %v583 = vrcp.pop %v582
        %v584 = vmul.f32 %v582, %v583
        %v585 = vsub.f32 1.0, %v584
        %v586 = vmul.f32 %v583, %v585
        %v587 = vadd.f32 %v583, %v586
        %vm588 = vweird.f32 %v582
        %vm589 = vweird.f32 %v583
        %vm590 = vmor %vm588, %vm589
        %v591 = vsel %vm590, %v583, %v587
        %v592 = vand.u32 2147483647, %v582
        %vm593 = vcmp.eq.f32.partialorder %v592, 8.507059e+37
        %v594 = vand.u32 %v582, 2147483648
        %v595 = vor.u32 1.1754944e-38, %v594
        %v596 = vsel %vm593, %v595, %v591
        %v597 = vmul.f32 1.0, %v596
        %v598 = vperm.slane %v597, 0
        %v599 = vlaneseq
        %v600 = vshrl.u32 %v599, 7
        %602 = vset.pattern.permute.xlu0 %v600
        %603 = vperm.xlu0 %602, %v598
        %v604 = vpop.permute.xlu0 %603
        %v605 = vperm.slane %v597, 1
        %v606 = vlaneseq
        %v607 = vshrl.u32 %v606, 7
        %609 = vset.pattern.permute.xlu0 %v607
        %610 = vperm.xlu0 %609, %v605
        %v611 = vpop.permute.xlu0 %610
        %v615 = vunpack.c.l.s4 839922192
        %v616 = vunpack.c.0.s8 %v615
        %v617 = vperm.slane %v604, %v616
        %v619 = vunpack.c.l.s4 839922192
        %v620 = vunpack.c.0.s8 %v619
        %v621 = vperm.slane %v611, %v620
        %v624 = vmul.f32 %v443, %v617
        %v625 = vmul.f32 %v444, %v621
        %628 = vst [vmem:[#allocation1] ss:$2 sm:$0xff] %v624
        %v629 = vld.sshfl [vmem:[#allocation1] sm:$0xff pattern:$0x75316420]
        %v630 = vld.sshfl [vmem:[#allocation1 + $0x8] sm:$0xff pattern:$0x75316420]
        %s631 = scalar_lea.vmem [#allocation1], 16
        %632 = vst [vmem:[%s631] ss:$2 sm:$0xff] %v625
        %v633 = vld.sshfl [vmem:[#allocation1 + $0x10] sm:$0xff pattern:$0x75316420]
        %v634 = vld.sshfl [vmem:[#allocation1 + $0x18] sm:$0xff pattern:$0x75316420]
        %v639 = vsel %vm458, %v629, -inf
        %v640 = vrot.slane %v639, 4
        %v641 = vmax.f32 %v639, %v640
        %v642 = vrot.slane %v641, 2
        %v643 = vmax.f32 %v641, %v642
        %v644 = vrot.slane %v643, 1
        %v645 = vmax.f32 %v643, %v644
        %v646 = vsel %vm458, %v630, -inf
        %v647 = vrot.slane %v646, 4
        %v648 = vmax.f32 %v646, %v647
        %v649 = vrot.slane %v648, 2
        %v650 = vmax.f32 %v648, %v649
        %v651 = vrot.slane %v650, 1
        %v652 = vmax.f32 %v650, %v651
        %v653 = vsel %vm458, %v633, -inf
        %v654 = vrot.slane %v653, 4
        %v655 = vmax.f32 %v653, %v654
        %v656 = vrot.slane %v655, 2
        %v657 = vmax.f32 %v655, %v656
        %v658 = vrot.slane %v657, 1
        %v659 = vmax.f32 %v657, %v658
        %v660 = vsel %vm458, %v634, -inf
        %v661 = vrot.slane %v660, 4
        %v662 = vmax.f32 %v660, %v661
        %v663 = vrot.slane %v662, 2
        %v664 = vmax.f32 %v662, %v663
        %v665 = vrot.slane %v664, 1
        %v666 = vmax.f32 %v664, %v665
        %667 = vst [vmem:[#allocation1] ss:$2 sm:$0xff] %v624
        %v668 = vld.sshfl [vmem:[#allocation1] sm:$0xff pattern:$0x75316420]
        %v669 = vld.sshfl [vmem:[#allocation1 + $0x8] sm:$0xff pattern:$0x75316420]
        %s670 = scalar_lea.vmem [#allocation1], 16
        %671 = vst [vmem:[%s670] ss:$2 sm:$0xff] %v625
        %v672 = vld.sshfl [vmem:[#allocation1 + $0x10] sm:$0xff pattern:$0x75316420]
        %v673 = vld.sshfl [vmem:[#allocation1 + $0x18] sm:$0xff pattern:$0x75316420]
        %v678 = vsel %vm458, %v668, 0.0
        %v679 = vrot.slane %v678, 4
        %v680 = vadd.f32 %v678, %v679
        %v681 = vrot.slane %v680, 2
        %v682 = vadd.f32 %v680, %v681
        %v683 = vrot.slane %v682, 1
        %v684 = vadd.f32 %v682, %v683
        %v685 = vsel %vm458, %v669, 0.0
        %v686 = vrot.slane %v685, 4
        %v687 = vadd.f32 %v685, %v686
        %v688 = vrot.slane %v687, 2
        %v689 = vadd.f32 %v687, %v688
        %v690 = vrot.slane %v689, 1
        %v691 = vadd.f32 %v689, %v690
        %v692 = vsel %vm458, %v672, 0.0
        %v693 = vrot.slane %v692, 4
        %v694 = vadd.f32 %v692, %v693
        %v695 = vrot.slane %v694, 2
        %v696 = vadd.f32 %v694, %v695
        %v697 = vrot.slane %v696, 1
        %v698 = vadd.f32 %v696, %v697
        %v699 = vsel %vm458, %v673, 0.0
        %v700 = vrot.slane %v699, 4
        %v701 = vadd.f32 %v699, %v700
        %v702 = vrot.slane %v701, 2
        %v703 = vadd.f32 %v701, %v702
        %v704 = vrot.slane %v703, 1
        %v705 = vadd.f32 %v703, %v704
        %v706 = vmul.f32 %v684, 0.25
        %v707 = vmul.f32 %v691, 0.25
        %v708 = vmul.f32 %v698, 0.25
        %v709 = vmul.f32 %v705, 0.25
        %v710 = vpack.c.bf16 %v645, %v645
        %v711 = vpack.c.bf16 %v652, %v652
        %v712 = vpack.c.bf16 %v659, %v659
        %v713 = vpack.c.bf16 %v666, %v666
        %v714 = vld [vmem:[#allocation5] sm:$0xff]
        %v715 = vld [vmem:[#allocation5 + $0x8] sm:$0xff]
        %v716 = vld [vmem:[#allocation5 + $0x10] sm:$0xff]
        %v717 = vld [vmem:[#allocation5 + $0x18] sm:$0xff]
        %v718 = vld [vmem:[#allocation5 + $0x20] sm:$0xff]
        %v719 = vld [vmem:[#allocation5 + $0x28] sm:$0xff]
        %v720 = vld [vmem:[#allocation5 + $0x30] sm:$0xff]
        %v721 = vld [vmem:[#allocation5 + $0x38] sm:$0xff]
        %v722 = vld [vmem:[#allocation5 + $0x40] sm:$0xff]
        %v723 = vld [vmem:[#allocation5 + $0x48] sm:$0xff]
        %v724 = vld [vmem:[#allocation5 + $0x50] sm:$0xff]
        %v725 = vld [vmem:[#allocation5 + $0x58] sm:$0xff]
        %v726 = vld [vmem:[#allocation5 + $0x60] sm:$0xff]
        %v727 = vld [vmem:[#allocation5 + $0x68] sm:$0xff]
        %v728 = vld [vmem:[#allocation5 + $0x70] sm:$0xff]
        %v729 = vld [vmem:[#allocation5 + $0x78] sm:$0xff]
        %v730 = vld [vmem:[#allocation5 + $0x80] sm:$0xff]
        %v731 = vld [vmem:[#allocation5 + $0x88] sm:$0xff]
        %v732 = vld [vmem:[#allocation5 + $0x90] sm:$0xff]
        %v733 = vld [vmem:[#allocation5 + $0x98] sm:$0xff]
        %v734 = vld [vmem:[#allocation5 + $0xa0] sm:$0xff]
        %v735 = vld [vmem:[#allocation5 + $0xa8] sm:$0xff]
        %v736 = vld [vmem:[#allocation5 + $0xb0] sm:$0xff]
        %v737 = vld [vmem:[#allocation5 + $0xb8] sm:$0xff]
        %v738 = vld [vmem:[#allocation5 + $0xc0] sm:$0xff]
        %v739 = vld [vmem:[#allocation5 + $0xc8] sm:$0xff]
        %v740 = vld [vmem:[#allocation5 + $0xd0] sm:$0xff]
        %v741 = vld [vmem:[#allocation5 + $0xd8] sm:$0xff]
        %v742 = vld [vmem:[#allocation5 + $0xe0] sm:$0xff]
        %v743 = vld [vmem:[#allocation5 + $0xe8] sm:$0xff]
        %v744 = vld [vmem:[#allocation5 + $0xf0] sm:$0xff]
        %v745 = vld [vmem:[#allocation5 + $0xf8] sm:$0xff]
        %v746 = vpack.c.bf16 %v706, %v706
        %v747 = vpack.c.bf16 %v707, %v707
        %v748 = vpack.c.bf16 %v708, %v708
        %v749 = vpack.c.bf16 %v709, %v709
        %v750 = vld [vmem:[#allocation7] sm:$0xff]
        %v751 = vld [vmem:[#allocation7 + $0x8] sm:$0xff]
        %v752 = vld [vmem:[#allocation7 + $0x10] sm:$0xff]
        %v753 = vld [vmem:[#allocation7 + $0x18] sm:$0xff]
        %v754 = vld [vmem:[#allocation7 + $0x20] sm:$0xff]
        %v755 = vld [vmem:[#allocation7 + $0x28] sm:$0xff]
        %v756 = vld [vmem:[#allocation7 + $0x30] sm:$0xff]
        %v757 = vld [vmem:[#allocation7 + $0x38] sm:$0xff]
        %v758 = vld [vmem:[#allocation7 + $0x40] sm:$0xff]
        %v759 = vld [vmem:[#allocation7 + $0x48] sm:$0xff]
        %v760 = vld [vmem:[#allocation7 + $0x50] sm:$0xff]
        %v761 = vld [vmem:[#allocation7 + $0x58] sm:$0xff]
        %v762 = vld [vmem:[#allocation7 + $0x60] sm:$0xff]
        %v763 = vld [vmem:[#allocation7 + $0x68] sm:$0xff]
        %v764 = vld [vmem:[#allocation7 + $0x70] sm:$0xff]
        %v765 = vld [vmem:[#allocation7 + $0x78] sm:$0xff]
        %v766 = vld [vmem:[#allocation7 + $0x80] sm:$0xff]
        %v767 = vld [vmem:[#allocation7 + $0x88] sm:$0xff]
        %v768 = vld [vmem:[#allocation7 + $0x90] sm:$0xff]
        %v769 = vld [vmem:[#allocation7 + $0x98] sm:$0xff]
        %v770 = vld [vmem:[#allocation7 + $0xa0] sm:$0xff]
        %v771 = vld [vmem:[#allocation7 + $0xa8] sm:$0xff]
        %v772 = vld [vmem:[#allocation7 + $0xb0] sm:$0xff]
        %v773 = vld [vmem:[#allocation7 + $0xb8] sm:$0xff]
        %v774 = vld [vmem:[#allocation7 + $0xc0] sm:$0xff]
        %v775 = vld [vmem:[#allocation7 + $0xc8] sm:$0xff]
        %v776 = vld [vmem:[#allocation7 + $0xd0] sm:$0xff]
        %v777 = vld [vmem:[#allocation7 + $0xd8] sm:$0xff]
        %v778 = vld [vmem:[#allocation7 + $0xe0] sm:$0xff]
        %v779 = vld [vmem:[#allocation7 + $0xe8] sm:$0xff]
        %v780 = vld [vmem:[#allocation7 + $0xf0] sm:$0xff]
        %v781 = vld [vmem:[#allocation7 + $0xf8] sm:$0xff]
        %v786 = vunpack.c.l.b16 %v746
        %v787 = vunpack.c.l.b16 %v747
        %v788 = vunpack.c.l.b16 %v748
        %v789 = vunpack.c.l.b16 %v749
        %v790 = vsel %vm498, %v788, %v786
        %v791 = vsel %vm498, %v789, %v787
        %v792 = vpack.c.b16 %v790, %v790
        %v793 = vpack.c.b16 %v791, %v791
        %v828 = vunpack.c.l.b16 %v750
        %v829 = vunpack.c.h.b16 %v750
        %v830 = vunpack.c.l.b16 %v751
        %v831 = vunpack.c.h.b16 %v751
        %v832 = vunpack.c.l.b16 %v752
        %v833 = vunpack.c.h.b16 %v752
        %v834 = vunpack.c.l.b16 %v753
        %v835 = vunpack.c.h.b16 %v753
        %v836 = vunpack.c.l.b16 %v754
        %v837 = vunpack.c.h.b16 %v754
        %v838 = vunpack.c.l.b16 %v755
        %v839 = vunpack.c.h.b16 %v755
        %v840 = vunpack.c.l.b16 %v756
        %v841 = vunpack.c.h.b16 %v756
        %v842 = vunpack.c.l.b16 %v757
        %v843 = vunpack.c.h.b16 %v757
        %v844 = vunpack.c.l.b16 %v758
        %v845 = vunpack.c.h.b16 %v758
        %v846 = vunpack.c.l.b16 %v759
        %v847 = vunpack.c.h.b16 %v759
        %v848 = vunpack.c.l.b16 %v760
        %v849 = vunpack.c.h.b16 %v760
        %v850 = vunpack.c.l.b16 %v761
        %v851 = vunpack.c.h.b16 %v761
        %v852 = vunpack.c.l.b16 %v762
        %v853 = vunpack.c.h.b16 %v762
        %v854 = vunpack.c.l.b16 %v763
        %v855 = vunpack.c.h.b16 %v763
        %v856 = vunpack.c.l.b16 %v764
        %v857 = vunpack.c.h.b16 %v764
        %v858 = vunpack.c.l.b16 %v765
        %v859 = vunpack.c.h.b16 %v765
        %v860 = vunpack.c.l.b16 %v766
        %v861 = vunpack.c.h.b16 %v766
        %v862 = vunpack.c.l.b16 %v767
        %v863 = vunpack.c.h.b16 %v767
        %v864 = vunpack.c.l.b16 %v768
        %v865 = vunpack.c.h.b16 %v768
        %v866 = vunpack.c.l.b16 %v769
        %v867 = vunpack.c.h.b16 %v769
        %v868 = vunpack.c.l.b16 %v770
        %v869 = vunpack.c.h.b16 %v770
        %v870 = vunpack.c.l.b16 %v771
        %v871 = vunpack.c.h.b16 %v771
        %v872 = vunpack.c.l.b16 %v772
        %v873 = vunpack.c.h.b16 %v772
        %v874 = vunpack.c.l.b16 %v773
        %v875 = vunpack.c.h.b16 %v773
        %v876 = vunpack.c.l.b16 %v774
        %v877 = vunpack.c.h.b16 %v774
        %v878 = vunpack.c.l.b16 %v775
        %v879 = vunpack.c.h.b16 %v775
        %v880 = vunpack.c.l.b16 %v776
        %v881 = vunpack.c.h.b16 %v776
        %v882 = vunpack.c.l.b16 %v777
        %v883 = vunpack.c.h.b16 %v777
        %v884 = vunpack.c.l.b16 %v778
        %v885 = vunpack.c.h.b16 %v778
        %v886 = vunpack.c.l.b16 %v779
        %v887 = vunpack.c.h.b16 %v779
        %v888 = vunpack.c.l.b16 %v780
        %v889 = vunpack.c.h.b16 %v780
        %v890 = vunpack.c.l.b16 %v781
        %v891 = vunpack.c.h.b16 %v781
        %v892 = vpack.c.b16 %v830, %v828
        %v893 = vpack.c.b16 %v831, %v829
        %v894 = vpack.c.b16 %v834, %v832
        %v895 = vpack.c.b16 %v835, %v833
        %v896 = vpack.c.b16 %v838, %v836
        %v897 = vpack.c.b16 %v839, %v837
        %v898 = vpack.c.b16 %v842, %v840
        %v899 = vpack.c.b16 %v843, %v841
        %v900 = vpack.c.b16 %v846, %v844
        %v901 = vpack.c.b16 %v847, %v845
        %v902 = vpack.c.b16 %v850, %v848
        %v903 = vpack.c.b16 %v851, %v849
        %v904 = vpack.c.b16 %v854, %v852
        %v905 = vpack.c.b16 %v855, %v853
        %v906 = vpack.c.b16 %v858, %v856
        %v907 = vpack.c.b16 %v859, %v857
        %v908 = vpack.c.b16 %v862, %v860
        %v909 = vpack.c.b16 %v863, %v861
        %v910 = vpack.c.b16 %v866, %v864
        %v911 = vpack.c.b16 %v867, %v865
        %v912 = vpack.c.b16 %v870, %v868
        %v913 = vpack.c.b16 %v871, %v869
        %v914 = vpack.c.b16 %v874, %v872
        %v915 = vpack.c.b16 %v875, %v873
        %v916 = vpack.c.b16 %v878, %v876
        %v917 = vpack.c.b16 %v879, %v877
        %v918 = vpack.c.b16 %v882, %v880
        %v919 = vpack.c.b16 %v883, %v881
        %v920 = vpack.c.b16 %v886, %v884
        %v921 = vpack.c.b16 %v887, %v885
        %v922 = vpack.c.b16 %v890, %v888
        %v923 = vpack.c.b16 %v891, %v889
        %956 = vmatpush.bf16.msra.mxu0 %v906
        %957 = vmatpush.bf16.msra.mxu0 %v904
        %958 = vmatpush.bf16.msra.mxu0 %v902
        %959 = vmatpush.bf16.msra.mxu0 %v900
        %960 = vmatpush.bf16.msra.mxu0 %v898
        %961 = vmatpush.bf16.msra.mxu0 %v896
        %962 = vmatpush.bf16.msra.mxu0 %v894
        %963 = vmatpush.bf16.msra.mxu0 %v892
        %964 = vmatmul.bf16.gmra.mxu0 %v792
        %v965 = vpop.f32.mrf.mxu0
        %v966 = vadd.f32 0.0, %v965
        %v967 = vpop.f32.mrf.mxu0
        %968 = vdwg.mxu0
        %969 = vmatpush.bf16.msra.mxu0 %v922
        %970 = vmatpush.bf16.msra.mxu0 %v920
        %971 = vmatpush.bf16.msra.mxu0 %v918
        %972 = vmatpush.bf16.msra.mxu0 %v916
        %973 = vmatpush.bf16.msra.mxu0 %v914
        %974 = vmatpush.bf16.msra.mxu0 %v912
        %975 = vmatpush.bf16.msra.mxu0 %v910
        %976 = vmatpush.bf16.msra.mxu0 %v908
        %977 = vmatmul.bf16.gmra.mxu0 %v793
        %v978 = vpop.f32.mrf.mxu0
        %v979 = vadd.f32 %v966, %v978
        %v980 = vpop.f32.mrf.mxu0
        %981 = vdwg.mxu0
        %982 = vmatpush.bf16.msra.mxu0 %v907
        %983 = vmatpush.bf16.msra.mxu0 %v905
        %984 = vmatpush.bf16.msra.mxu0 %v903
        %985 = vmatpush.bf16.msra.mxu0 %v901
        %986 = vmatpush.bf16.msra.mxu0 %v899
        %987 = vmatpush.bf16.msra.mxu0 %v897
        %988 = vmatpush.bf16.msra.mxu0 %v895
        %989 = vmatpush.bf16.msra.mxu0 %v893
        %990 = vmatmul.bf16.gmra.mxu0 %v792
        %v991 = vpop.f32.mrf.mxu0
        %v992 = vadd.f32 0.0, %v991
        %v993 = vpop.f32.mrf.mxu0
        %994 = vdwg.mxu0
        %995 = vmatpush.bf16.msra.mxu0 %v923
        %996 = vmatpush.bf16.msra.mxu0 %v921
        %997 = vmatpush.bf16.msra.mxu0 %v919
        %998 = vmatpush.bf16.msra.mxu0 %v917
        %999 = vmatpush.bf16.msra.mxu0 %v915
        %1000 = vmatpush.bf16.msra.mxu0 %v913
        %1001 = vmatpush.bf16.msra.mxu0 %v911
        %1002 = vmatpush.bf16.msra.mxu0 %v909
        %1003 = vmatmul.bf16.gmra.mxu0 %v793
        %v1004 = vpop.f32.mrf.mxu0
        %v1005 = vadd.f32 %v992, %v1004
        %v1006 = vpop.f32.mrf.mxu0
        %1007 = vdwg.mxu0
        %v1012 = vunpack.c.l.b16 %v710
        %v1013 = vunpack.c.l.b16 %v711
        %v1014 = vunpack.c.l.b16 %v712
        %v1015 = vunpack.c.l.b16 %v713
        %v1016 = vsel %vm498, %v1014, %v1012
        %v1017 = vsel %vm498, %v1015, %v1013
        %v1018 = vpack.c.b16 %v1016, %v1016
        %v1019 = vpack.c.b16 %v1017, %v1017
        %v1054 = vunpack.c.l.b16 %v714
        %v1055 = vunpack.c.h.b16 %v714
        %v1056 = vunpack.c.l.b16 %v715
        %v1057 = vunpack.c.h.b16 %v715
        %v1058 = vunpack.c.l.b16 %v716
        %v1059 = vunpack.c.h.b16 %v716
        %v1060 = vunpack.c.l.b16 %v717
        %v1061 = vunpack.c.h.b16 %v717
        %v1062 = vunpack.c.l.b16 %v718
        %v1063 = vunpack.c.h.b16 %v718
        %v1064 = vunpack.c.l.b16 %v719
        %v1065 = vunpack.c.h.b16 %v719
        %v1066 = vunpack.c.l.b16 %v720
        %v1067 = vunpack.c.h.b16 %v720
        %v1068 = vunpack.c.l.b16 %v721
        %v1069 = vunpack.c.h.b16 %v721
        %v1070 = vunpack.c.l.b16 %v722
        %v1071 = vunpack.c.h.b16 %v722
        %v1072 = vunpack.c.l.b16 %v723
        %v1073 = vunpack.c.h.b16 %v723
        %v1074 = vunpack.c.l.b16 %v724
        %v1075 = vunpack.c.h.b16 %v724
        %v1076 = vunpack.c.l.b16 %v725
        %v1077 = vunpack.c.h.b16 %v725
        %v1078 = vunpack.c.l.b16 %v726
        %v1079 = vunpack.c.h.b16 %v726
        %v1080 = vunpack.c.l.b16 %v727
        %v1081 = vunpack.c.h.b16 %v727
        %v1082 = vunpack.c.l.b16 %v728
        %v1083 = vunpack.c.h.b16 %v728
        %v1084 = vunpack.c.l.b16 %v729
        %v1085 = vunpack.c.h.b16 %v729
        %v1086 = vunpack.c.l.b16 %v730
        %v1087 = vunpack.c.h.b16 %v730
        %v1088 = vunpack.c.l.b16 %v731
        %v1089 = vunpack.c.h.b16 %v731
        %v1090 = vunpack.c.l.b16 %v732
        %v1091 = vunpack.c.h.b16 %v732
        %v1092 = vunpack.c.l.b16 %v733
        %v1093 = vunpack.c.h.b16 %v733
        %v1094 = vunpack.c.l.b16 %v734
        %v1095 = vunpack.c.h.b16 %v734
        %v1096 = vunpack.c.l.b16 %v735
        %v1097 = vunpack.c.h.b16 %v735
        %v1098 = vunpack.c.l.b16 %v736
        %v1099 = vunpack.c.h.b16 %v736
        %v1100 = vunpack.c.l.b16 %v737
        %v1101 = vunpack.c.h.b16 %v737
        %v1102 = vunpack.c.l.b16 %v738
        %v1103 = vunpack.c.h.b16 %v738
        %v1104 = vunpack.c.l.b16 %v739
        %v1105 = vunpack.c.h.b16 %v739
        %v1106 = vunpack.c.l.b16 %v740
        %v1107 = vunpack.c.h.b16 %v740
        %v1108 = vunpack.c.l.b16 %v741
        %v1109 = vunpack.c.h.b16 %v741
        %v1110 = vunpack.c.l.b16 %v742
        %v1111 = vunpack.c.h.b16 %v742
        %v1112 = vunpack.c.l.b16 %v743
        %v1113 = vunpack.c.h.b16 %v743
        %v1114 = vunpack.c.l.b16 %v744
        %v1115 = vunpack.c.h.b16 %v744
        %v1116 = vunpack.c.l.b16 %v745
        %v1117 = vunpack.c.h.b16 %v745
        %v1118 = vpack.c.b16 %v1056, %v1054
        %v1119 = vpack.c.b16 %v1057, %v1055
        %v1120 = vpack.c.b16 %v1060, %v1058
        %v1121 = vpack.c.b16 %v1061, %v1059
        %v1122 = vpack.c.b16 %v1064, %v1062
        %v1123 = vpack.c.b16 %v1065, %v1063
        %v1124 = vpack.c.b16 %v1068, %v1066
        %v1125 = vpack.c.b16 %v1069, %v1067
        %v1126 = vpack.c.b16 %v1072, %v1070
        %v1127 = vpack.c.b16 %v1073, %v1071
        %v1128 = vpack.c.b16 %v1076, %v1074
        %v1129 = vpack.c.b16 %v1077, %v1075
        %v1130 = vpack.c.b16 %v1080, %v1078
        %v1131 = vpack.c.b16 %v1081, %v1079
        %v1132 = vpack.c.b16 %v1084, %v1082
        %v1133 = vpack.c.b16 %v1085, %v1083
        %v1134 = vpack.c.b16 %v1088, %v1086
        %v1135 = vpack.c.b16 %v1089, %v1087
        %v1136 = vpack.c.b16 %v1092, %v1090
        %v1137 = vpack.c.b16 %v1093, %v1091
        %v1138 = vpack.c.b16 %v1096, %v1094
        %v1139 = vpack.c.b16 %v1097, %v1095
        %v1140 = vpack.c.b16 %v1100, %v1098
        %v1141 = vpack.c.b16 %v1101, %v1099
        %v1142 = vpack.c.b16 %v1104, %v1102
        %v1143 = vpack.c.b16 %v1105, %v1103
        %v1144 = vpack.c.b16 %v1108, %v1106
        %v1145 = vpack.c.b16 %v1109, %v1107
        %v1146 = vpack.c.b16 %v1112, %v1110
        %v1147 = vpack.c.b16 %v1113, %v1111
        %v1148 = vpack.c.b16 %v1116, %v1114
        %v1149 = vpack.c.b16 %v1117, %v1115
        %1182 = vmatpush.bf16.msra.mxu0 %v1132
        %1183 = vmatpush.bf16.msra.mxu0 %v1130
        %1184 = vmatpush.bf16.msra.mxu0 %v1128
        %1185 = vmatpush.bf16.msra.mxu0 %v1126
        %1186 = vmatpush.bf16.msra.mxu0 %v1124
        %1187 = vmatpush.bf16.msra.mxu0 %v1122
        %1188 = vmatpush.bf16.msra.mxu0 %v1120
        %1189 = vmatpush.bf16.msra.mxu0 %v1118
        %1190 = vmatmul.bf16.gmra.mxu0 %v1018
        %v1191 = vpop.f32.mrf.mxu0
        %v1192 = vadd.f32 %v979, %v1191
        %v1193 = vpop.f32.mrf.mxu0
        %1194 = vdwg.mxu0
        %1195 = vmatpush.bf16.msra.mxu0 %v1148
        %1196 = vmatpush.bf16.msra.mxu0 %v1146
        %1197 = vmatpush.bf16.msra.mxu0 %v1144
        %1198 = vmatpush.bf16.msra.mxu0 %v1142
        %1199 = vmatpush.bf16.msra.mxu0 %v1140
        %1200 = vmatpush.bf16.msra.mxu0 %v1138
        %1201 = vmatpush.bf16.msra.mxu0 %v1136
        %1202 = vmatpush.bf16.msra.mxu0 %v1134
        %1203 = vmatmul.bf16.gmra.mxu0 %v1019
        %v1204 = vpop.f32.mrf.mxu0
        %v1205 = vadd.f32 %v1192, %v1204
        %v1206 = vpop.f32.mrf.mxu0
        %1207 = vdwg.mxu0
        %1208 = vmatpush.bf16.msra.mxu0 %v1133
        %1209 = vmatpush.bf16.msra.mxu0 %v1131
        %1210 = vmatpush.bf16.msra.mxu0 %v1129
        %1211 = vmatpush.bf16.msra.mxu0 %v1127
        %1212 = vmatpush.bf16.msra.mxu0 %v1125
        %1213 = vmatpush.bf16.msra.mxu0 %v1123
        %1214 = vmatpush.bf16.msra.mxu0 %v1121
        %1215 = vmatpush.bf16.msra.mxu0 %v1119
        %1216 = vmatmul.bf16.gmra.mxu0 %v1018
        %v1217 = vpop.f32.mrf.mxu0
        %v1218 = vadd.f32 %v1005, %v1217
        %v1219 = vpop.f32.mrf.mxu0
        %1220 = vdwg.mxu0
        %1221 = vmatpush.bf16.msra.mxu0 %v1149
        %1222 = vmatpush.bf16.msra.mxu0 %v1147
        %1223 = vmatpush.bf16.msra.mxu0 %v1145
        %1224 = vmatpush.bf16.msra.mxu0 %v1143
        %1225 = vmatpush.bf16.msra.mxu0 %v1141
        %1226 = vmatpush.bf16.msra.mxu0 %v1139
        %1227 = vmatpush.bf16.msra.mxu0 %v1137
        %1228 = vmatpush.bf16.msra.mxu0 %v1135
        %1229 = vmatmul.bf16.gmra.mxu0 %v1019
        %v1230 = vpop.f32.mrf.mxu0
        %v1231 = vadd.f32 %v1218, %v1230
        %v1232 = vpop.f32.mrf.mxu0
        %1233 = vdwg.mxu0
        %v1234 = vxor.u32 %v1205, 2147483648
        %v1235 = vxor.u32 %v1231, 2147483648
        %v1236 = vmul.f32 %v1234, 1.442695
        %v1237 = vpow.pop %v1236
        %v1238 = vmul.f32 %v1235, 1.442695
        %v1239 = vpow.pop %v1238
        %v1240 = vadd.f32 %v1237, 1.0
        %v1241 = vadd.f32 %v1239, 1.0
        %v1242 = vrcp.pop %v1240
        %v1243 = vmul.f32 %v1240, %v1242
        %v1244 = vsub.f32 1.0, %v1243
        %v1245 = vmul.f32 %v1242, %v1244
        %v1246 = vadd.f32 %v1242, %v1245
        %vm1247 = vweird.f32 %v1240
        %vm1248 = vweird.f32 %v1242
        %vm1249 = vmor %vm1247, %vm1248
        %v1250 = vsel %vm1249, %v1242, %v1246
        %v1251 = vand.u32 2147483647, %v1240
        %vm1252 = vcmp.eq.f32.partialorder %v1251, 8.507059e+37
        %v1253 = vand.u32 %v1240, 2147483648
        %v1254 = vor.u32 1.1754944e-38, %v1253
        %v1255 = vsel %vm1252, %v1254, %v1250
        %v1256 = vmul.f32 1.0, %v1255
        %v1257 = vrcp.pop %v1241
        %v1258 = vmul.f32 %v1241, %v1257
        %v1259 = vsub.f32 1.0, %v1258
        %v1260 = vmul.f32 %v1257, %v1259
        %v1261 = vadd.f32 %v1257, %v1260
        %vm1262 = vweird.f32 %v1241
        %vm1263 = vweird.f32 %v1257
        %vm1264 = vmor %vm1262, %vm1263
        %v1265 = vsel %vm1264, %v1257, %v1261
        %v1266 = vand.u32 2147483647, %v1241
        %vm1267 = vcmp.eq.f32.partialorder %v1266, 8.507059e+37
        %v1268 = vand.u32 %v1241, 2147483648
        %v1269 = vor.u32 1.1754944e-38, %v1268
        %v1270 = vsel %vm1267, %v1269, %v1265
        %v1271 = vmul.f32 1.0, %v1270
        %v1274 = vrot.slane %v1271, 7
        %vm1275 = vcmask 1040384
        %v1276 = vsel %vm1275, %v1256, %v1274
        %v1277 = vsel %vm498, %v1256, %v1274
        %v1278 = vrot.slane %v1277, 1
        %v1279 = vperm.slane %v1276, 0
        %v1280 = vperm.slane %v1276, 1
        %v1281 = vperm.slane %v1278, 0
        %v1282 = vperm.slane %v1278, 1
        %v1283 = vrot.slane %v1280, 4
        %v1284 = vrot.slane %v1282, 4
        %v1285 = vsel %vm458, %v1279, %v1283
        %v1286 = vsel %vm458, %v1281, %v1284
        %v1289 = vmul.f32 %v624, %v1285
        %v1290 = vmul.f32 %v625, %v1286
        %v1291 = vadd.f32 %v1289, %v443
        %v1292 = vadd.f32 %v1290, %v444
        %v1293 = vld [vmem:[%s7] sm:$0xff]
        %v1294 = vld [vmem:[%s8] sm:$0xff]
        %v1295 = vld [vmem:[%s9] sm:$0xff]
        %v1296 = vld [vmem:[%s10] sm:$0xff]
        %1298 = vset.pattern.permute.xlu0 0
        %1299 = vperm.xlu0 %1298, %v1296
        %v1300 = vpop.permute.xlu0 %1299
        %1303 = vst [vmem:[#allocation1] ss:$2 sm:$0xff] %v1291
        %v1304 = vld.sshfl [vmem:[#allocation1] sm:$0xff pattern:$0x75316420]
        %v1305 = vld.sshfl [vmem:[#allocation1 + $0x8] sm:$0xff pattern:$0x75316420]
        %v1307 = vsel %vm515, %v1293, 0
        %v1309 = vsel %vm458, %v1304, 0
        %v1311 = vsel %vm458, %v1305, 0
        %1313 = vmatpush.msra.mxu0 0.0
        %1314 = vmatpush.msra.mxu0 0.0
        %1315 = vmatpush.msra.mxu0 0.0
        %1316 = vmatpush.msra.mxu0 0.0
        %1317 = vmatpush.msra.mxu0 0.0
        %1318 = vmatpush.msra.mxu0 0.0
        %1319 = vmatpush.msra.mxu0 0.0
        %1320 = vmatpush.msra.mxu0 0.0
        %1321 = vmatpush.msra.mxu0 0.0
        %1322 = vmatpush.msra.mxu0 0.0
        %1323 = vmatpush.msra.mxu0 0.0
        %1324 = vmatpush.msra.mxu0 0.0
        %1325 = vmatpush.msra.mxu0 0.0
        %1326 = vmatpush.msra.mxu0 0.0
        %1327 = vmatpush.msra.mxu0 0.0
        %1328 = vmatpush.msra.mxu0 %v1309
        %1329 = vmatmul.f32.gmra.mxu0 %v1307
        %v1330 = vpop.f32.mrf.mxu0
        %v1331 = vadd.f32 %v1300, %v1330
        %1332 = vdwg.mxu0
        %1333 = vmatpush.msra.mxu0 0.0
        %1334 = vmatpush.msra.mxu0 0.0
        %1335 = vmatpush.msra.mxu0 0.0
        %1336 = vmatpush.msra.mxu0 0.0
        %1337 = vmatpush.msra.mxu0 0.0
        %1338 = vmatpush.msra.mxu0 0.0
        %1339 = vmatpush.msra.mxu0 0.0
        %1340 = vmatpush.msra.mxu0 0.0
        %1341 = vmatpush.msra.mxu0 0.0
        %1342 = vmatpush.msra.mxu0 0.0
        %1343 = vmatpush.msra.mxu0 0.0
        %1344 = vmatpush.msra.mxu0 0.0
        %1345 = vmatpush.msra.mxu0 0.0
        %1346 = vmatpush.msra.mxu0 0.0
        %1347 = vmatpush.msra.mxu0 0.0
        %1348 = vmatpush.msra.mxu0 %v1311
        %1349 = vmatmul.f32.gmra.mxu0 %v1307
        %v1350 = vpop.f32.mrf.mxu0
        %v1351 = vadd.f32 %v1300, %v1350
        %1352 = vdwg.mxu0
        %v1353 = vmax.f32 %v1331, 0.0
        %v1354 = vmax.f32 %v1351, 0.0
        %1355 = vset.pattern.permute.xlu0 1
        %1356 = vperm.xlu0 %1355, %v1296
        %v1357 = vpop.permute.xlu0 %1356
        %vm1359 = vcmask 64512
        %v1361 = vsel %vm1359, %v1294, 0
        %1363 = vmatpush.msra.mxu0 0.0
        %1364 = vmatpush.msra.mxu0 0.0
        %1365 = vmatpush.msra.mxu0 0.0
        %1366 = vmatpush.msra.mxu0 0.0
        %1367 = vmatpush.msra.mxu0 0.0
        %1368 = vmatpush.msra.mxu0 0.0
        %1369 = vmatpush.msra.mxu0 0.0
        %1370 = vmatpush.msra.mxu0 0.0
        %1371 = vmatpush.msra.mxu0 0.0
        %1372 = vmatpush.msra.mxu0 0.0
        %1373 = vmatpush.msra.mxu0 0.0
        %1374 = vmatpush.msra.mxu0 0.0
        %1375 = vmatpush.msra.mxu0 0.0
        %1376 = vmatpush.msra.mxu0 0.0
        %1377 = vmatpush.msra.mxu0 0.0
        %1378 = vmatpush.msra.mxu0 %v1353
        %1379 = vmatmul.f32.gmra.mxu0 %v1361
        %v1380 = vpop.f32.mrf.mxu0
        %v1381 = vadd.f32 %v1357, %v1380
        %1382 = vdwg.mxu0
        %1383 = vmatpush.msra.mxu0 0.0
        %1384 = vmatpush.msra.mxu0 0.0
        %1385 = vmatpush.msra.mxu0 0.0
        %1386 = vmatpush.msra.mxu0 0.0
        %1387 = vmatpush.msra.mxu0 0.0
        %1388 = vmatpush.msra.mxu0 0.0
        %1389 = vmatpush.msra.mxu0 0.0
        %1390 = vmatpush.msra.mxu0 0.0
        %1391 = vmatpush.msra.mxu0 0.0
        %1392 = vmatpush.msra.mxu0 0.0
        %1393 = vmatpush.msra.mxu0 0.0
        %1394 = vmatpush.msra.mxu0 0.0
        %1395 = vmatpush.msra.mxu0 0.0
        %1396 = vmatpush.msra.mxu0 0.0
        %1397 = vmatpush.msra.mxu0 0.0
        %1398 = vmatpush.msra.mxu0 %v1354
        %1399 = vmatmul.f32.gmra.mxu0 %v1361
        %v1400 = vpop.f32.mrf.mxu0
        %v1401 = vadd.f32 %v1357, %v1400
        %1402 = vdwg.mxu0
        %v1403 = vmax.f32 %v1381, 0.0
        %v1404 = vmax.f32 %v1401, 0.0
        %1405 = vset.pattern.permute.xlu0 2
        %1406 = vperm.xlu0 %1405, %v1296
        %v1407 = vpop.permute.xlu0 %1406
        %v1410 = vsel %vm1359, %v1295, 0
        %1412 = vmatpush.msra.mxu0 0.0
        %1413 = vmatpush.msra.mxu0 0.0
        %1414 = vmatpush.msra.mxu0 0.0
        %1415 = vmatpush.msra.mxu0 0.0
        %1416 = vmatpush.msra.mxu0 0.0
        %1417 = vmatpush.msra.mxu0 0.0
        %1418 = vmatpush.msra.mxu0 0.0
        %1419 = vmatpush.msra.mxu0 0.0
        %1420 = vmatpush.msra.mxu0 0.0
        %1421 = vmatpush.msra.mxu0 0.0
        %1422 = vmatpush.msra.mxu0 0.0
        %1423 = vmatpush.msra.mxu0 0.0
        %1424 = vmatpush.msra.mxu0 0.0
        %1425 = vmatpush.msra.mxu0 0.0
        %1426 = vmatpush.msra.mxu0 0.0
        %1427 = vmatpush.msra.mxu0 %v1403
        %1428 = vmatmul.f32.gmra.mxu0 %v1410
        %v1429 = vpop.f32.mrf.mxu0
        %v1430 = vadd.f32 %v1407, %v1429
        %1431 = vdwg.mxu0
        %1432 = vmatpush.msra.mxu0 0.0
        %1433 = vmatpush.msra.mxu0 0.0
        %1434 = vmatpush.msra.mxu0 0.0
        %1435 = vmatpush.msra.mxu0 0.0
        %1436 = vmatpush.msra.mxu0 0.0
        %1437 = vmatpush.msra.mxu0 0.0
        %1438 = vmatpush.msra.mxu0 0.0
        %1439 = vmatpush.msra.mxu0 0.0
        %1440 = vmatpush.msra.mxu0 0.0
        %1441 = vmatpush.msra.mxu0 0.0
        %1442 = vmatpush.msra.mxu0 0.0
        %1443 = vmatpush.msra.mxu0 0.0
        %1444 = vmatpush.msra.mxu0 0.0
        %1445 = vmatpush.msra.mxu0 0.0
        %1446 = vmatpush.msra.mxu0 0.0
        %1447 = vmatpush.msra.mxu0 %v1404
        %1448 = vmatmul.f32.gmra.mxu0 %v1410
        %v1449 = vpop.f32.mrf.mxu0
        %v1450 = vadd.f32 %v1407, %v1449
        %1451 = vdwg.mxu0
        %v1452 = vmax.f32 %v1430, 0.0
        %v1453 = vmax.f32 %v1450, 0.0
        %1454 = vst [vmem:[%s440] sm:$0xff] %v1452
        %1455 = vst [vmem:[%s440 + $0x8] sm:$0xff] %v1453
        %1457 = vst [vmem:[#allocation1] ss:$2 sm:$0xff] %v1292
        %v1458 = vld.sshfl [vmem:[#allocation1] sm:$0xff pattern:$0x75316420]
        %v1459 = vld.sshfl [vmem:[#allocation1 + $0x8] sm:$0xff pattern:$0x75316420]
        %v1460 = vsel %vm458, %v1458, 0
        %v1462 = vsel %vm458, %v1459, 0
        %1464 = vmatpush.msra.mxu0 0.0
        %1465 = vmatpush.msra.mxu0 0.0
        %1466 = vmatpush.msra.mxu0 0.0
        %1467 = vmatpush.msra.mxu0 0.0
        %1468 = vmatpush.msra.mxu0 0.0
        %1469 = vmatpush.msra.mxu0 0.0
        %1470 = vmatpush.msra.mxu0 0.0
        %1471 = vmatpush.msra.mxu0 0.0
        %1472 = vmatpush.msra.mxu0 0.0
        %1473 = vmatpush.msra.mxu0 0.0
        %1474 = vmatpush.msra.mxu0 0.0
        %1475 = vmatpush.msra.mxu0 0.0
        %1476 = vmatpush.msra.mxu0 0.0
        %1477 = vmatpush.msra.mxu0 0.0
        %1478 = vmatpush.msra.mxu0 0.0
        %1479 = vmatpush.msra.mxu0 %v1460
        %1480 = vmatmul.f32.gmra.mxu0 %v1307
        %v1481 = vpop.f32.mrf.mxu0
        %v1482 = vadd.f32 %v1300, %v1481
        %1483 = vdwg.mxu0
        %1484 = vmatpush.msra.mxu0 0.0
        %1485 = vmatpush.msra.mxu0 0.0
        %1486 = vmatpush.msra.mxu0 0.0
        %1487 = vmatpush.msra.mxu0 0.0
        %1488 = vmatpush.msra.mxu0 0.0
        %1489 = vmatpush.msra.mxu0 0.0
        %1490 = vmatpush.msra.mxu0 0.0
        %1491 = vmatpush.msra.mxu0 0.0
        %1492 = vmatpush.msra.mxu0 0.0
        %1493 = vmatpush.msra.mxu0 0.0
        %1494 = vmatpush.msra.mxu0 0.0
        %1495 = vmatpush.msra.mxu0 0.0
        %1496 = vmatpush.msra.mxu0 0.0
        %1497 = vmatpush.msra.mxu0 0.0
        %1498 = vmatpush.msra.mxu0 0.0
        %1499 = vmatpush.msra.mxu0 %v1462
        %1500 = vmatmul.f32.gmra.mxu0 %v1307
        %v1501 = vpop.f32.mrf.mxu0
        %v1502 = vadd.f32 %v1300, %v1501
        %1503 = vdwg.mxu0
        %v1504 = vmax.f32 %v1482, 0.0
        %v1505 = vmax.f32 %v1502, 0.0
        %1506 = vmatpush.msra.mxu0 0.0
        %1507 = vmatpush.msra.mxu0 0.0
        %1508 = vmatpush.msra.mxu0 0.0
        %1509 = vmatpush.msra.mxu0 0.0
        %1510 = vmatpush.msra.mxu0 0.0
        %1511 = vmatpush.msra.mxu0 0.0
        %1512 = vmatpush.msra.mxu0 0.0
        %1513 = vmatpush.msra.mxu0 0.0
        %1514 = vmatpush.msra.mxu0 0.0
        %1515 = vmatpush.msra.mxu0 0.0
        %1516 = vmatpush.msra.mxu0 0.0
        %1517 = vmatpush.msra.mxu0 0.0
        %1518 = vmatpush.msra.mxu0 0.0
        %1519 = vmatpush.msra.mxu0 0.0
        %1520 = vmatpush.msra.mxu0 0.0
        %1521 = vmatpush.msra.mxu0 %v1504
        %1522 = vmatmul.f32.gmra.mxu0 %v1361
        %v1523 = vpop.f32.mrf.mxu0
        %v1524 = vadd.f32 %v1357, %v1523
        %1525 = vdwg.mxu0
        %1526 = vmatpush.msra.mxu0 0.0
        %1527 = vmatpush.msra.mxu0 0.0
        %1528 = vmatpush.msra.mxu0 0.0
        %1529 = vmatpush.msra.mxu0 0.0
        %1530 = vmatpush.msra.mxu0 0.0
        %1531 = vmatpush.msra.mxu0 0.0
        %1532 = vmatpush.msra.mxu0 0.0
        %1533 = vmatpush.msra.mxu0 0.0
        %1534 = vmatpush.msra.mxu0 0.0
        %1535 = vmatpush.msra.mxu0 0.0
        %1536 = vmatpush.msra.mxu0 0.0
        %1537 = vmatpush.msra.mxu0 0.0
        %1538 = vmatpush.msra.mxu0 0.0
        %1539 = vmatpush.msra.mxu0 0.0
        %1540 = vmatpush.msra.mxu0 0.0
        %1541 = vmatpush.msra.mxu0 %v1505
        %1542 = vmatmul.f32.gmra.mxu0 %v1361
        %v1543 = vpop.f32.mrf.mxu0
        %v1544 = vadd.f32 %v1357, %v1543
        %1545 = vdwg.mxu0
        %v1546 = vmax.f32 %v1524, 0.0
        %v1547 = vmax.f32 %v1544, 0.0
        %1548 = vmatpush.msra.mxu0 0.0
        %1549 = vmatpush.msra.mxu0 0.0
        %1550 = vmatpush.msra.mxu0 0.0
        %1551 = vmatpush.msra.mxu0 0.0
        %1552 = vmatpush.msra.mxu0 0.0
        %1553 = vmatpush.msra.mxu0 0.0
        %1554 = vmatpush.msra.mxu0 0.0
        %1555 = vmatpush.msra.mxu0 0.0
        %1556 = vmatpush.msra.mxu0 0.0
        %1557 = vmatpush.msra.mxu0 0.0
        %1558 = vmatpush.msra.mxu0 0.0
        %1559 = vmatpush.msra.mxu0 0.0
        %1560 = vmatpush.msra.mxu0 0.0
        %1561 = vmatpush.msra.mxu0 0.0
        %1562 = vmatpush.msra.mxu0 0.0
        %1563 = vmatpush.msra.mxu0 %v1546
        %1564 = vmatmul.f32.gmra.mxu0 %v1410
        %v1565 = vpop.f32.mrf.mxu0
        %v1566 = vadd.f32 %v1407, %v1565
        %1567 = vdwg.mxu0
        %1568 = vmatpush.msra.mxu0 0.0
        %1569 = vmatpush.msra.mxu0 0.0
        %1570 = vmatpush.msra.mxu0 0.0
        %1571 = vmatpush.msra.mxu0 0.0
        %1572 = vmatpush.msra.mxu0 0.0
        %1573 = vmatpush.msra.mxu0 0.0
        %1574 = vmatpush.msra.mxu0 0.0
        %1575 = vmatpush.msra.mxu0 0.0
        %1576 = vmatpush.msra.mxu0 0.0
        %1577 = vmatpush.msra.mxu0 0.0
        %1578 = vmatpush.msra.mxu0 0.0
        %1579 = vmatpush.msra.mxu0 0.0
        %1580 = vmatpush.msra.mxu0 0.0
        %1581 = vmatpush.msra.mxu0 0.0
        %1582 = vmatpush.msra.mxu0 0.0
        %1583 = vmatpush.msra.mxu0 %v1547
        %1584 = vmatmul.f32.gmra.mxu0 %v1410
        %v1585 = vpop.f32.mrf.mxu0
        %v1586 = vadd.f32 %v1407, %v1585
        %1587 = vdwg.mxu0
        %v1588 = vmax.f32 %v1566, 0.0
        %v1589 = vmax.f32 %v1586, 0.0
        %s1590 = scalar_lea.vmem %s440, 16 [#allocation8]
        %1591 = vst [vmem:[%s1590] sm:$0xff] %v1588
        %1592 = vst [vmem:[%s1590 + $0x8] sm:$0xff] %v1589
        %s1593 = sand.u32 %s273, 1
        %s1594 = scalar_lea.sflag [#allocation4], %s1593
        %s1595 = sand.u32 %s273, 1
        %s1596 = smul.addr %s1595, 32
        %s1597 = scalar_lea.vmem [#allocation8], %s1596
        // Predicated region
        $region77: #{tpu_custom_call.1} parent=63 // pred_check
          %p1598 = pneg %p283
        $region78: #{tpu_custom_call.1} parent=63 // pred_check_branch
          %1600 = sbr.rel (%p1598) target = $region80
        $region79: #{tpu_custom_call.1} parent=63 // pred_region
          %s1601 = smul.u32 2, %s29
          %1603 = vsyncadd %s1594, 0
          %s1604 = smul.addr %s1601, 2
          %s1605 = smul.addr %s1604, 8
          %s1606 = scalar_lea.hbm %s11, %s1605
          %s1607 = sshll.u32 %s1597, 4
          %s1608 = int_to_ptr.vmem [resolvable:$true] %s1607
          %s1609 = sshll.u32 %s1606, 4
          %s1610 = int_to_ptr.hbm [resolvable:$true] %s1609
          %1615 = dma.vmem_to_hbm [thread:$0]  %s1608, 512, %s1610, %s1594, 256, 256, 16
        $region80: #{tpu_custom_call.1} parent=63 // pred_fallthru
          _
      $region64: #{tpu_custom_call.1} parent=5 // pred_fallthru
        _
      %p1616 = scmp.le.s32.totalorder 2, %s24
      // Predicated region
      $region81: #{tpu_custom_call.1} parent=5 // pred_check
        %p1617 = pneg %p1616
      $region82: #{tpu_custom_call.1} parent=5 // pred_check_branch
        %1619 = sbr.rel (%p1617) target = $region84
      $region83: #{tpu_custom_call.1} parent=5 // pred_region
        %s1620 = ssub.s32 %s24, 2
        // Predicated region
        $region85: #{tpu_custom_call.1} parent=83 // pred_check
          %p1621 = pneg %p289
        $region86: #{tpu_custom_call.1} parent=83 // pred_check_branch
          %1623 = sbr.rel (%p1621) target = $region88
        $region87: #{tpu_custom_call.1} parent=83 // pred_region
          %s1624 = sand.u32 %s274, 1
          %s1625 = scalar_lea.sflag [#allocation4], %s1624
          %s1626 = sand.u32 %s274, 1
          %s1627 = smul.addr %s1626, 32
          %s1628 = scalar_lea.vmem [#allocation8], %s1627
          %1630 = dma.done %s1625, 512
        $region88: #{tpu_custom_call.1} parent=83 // pred_fallthru
          _
      $region84: #{tpu_custom_call.1} parent=5 // pred_fallthru
        _
    $region6: #{tpu_custom_call.1} parent=1 // loop_footer
      %s28 = sadd.s32 1, %s24
    $region7: #{tpu_custom_call.1} parent=1 // loop_footer_branch
      %23 = sbr.rel target = $region3
    $region8: #{tpu_custom_call.1} parent=1 // loop_exit
      _
    %1631 = vsyncpa [#allocation3], 1
    %s1632 = scalar_lea.sflag [#allocation3], 1
    %1633 = vsyncpa %s1632, 1
    %1634 = vsyncpa [#allocation6], 1
    %1635 = vsyncpa [#allocation4], 1
    %s1636 = scalar_lea.sflag [#allocation4], 1
    %1637 = vsyncpa %s1636, 1

</llo_original>
